<compile_context>
chip_gen: v6e
topology: v6e:2x2x1
jax: 0.10.0
libtpu: 0.0.40
codegen_flags: <defaults>
</compile_context>

<pallas_src>
import jax
import jax.numpy as jnp
import numpy as np
from jax import lax
from jax.experimental import pallas as pl
from jax.experimental.pallas import tpu as pltpu

CHN_MID = 32
EPS = 0.1
NEG_SLOPE = 0.2

SUBLANES = 8                   # rows of the dense (8, M/8) I/O layout
CHUNK_COLS = 512               # lanes per inner step -> intermediates are (40,512)
MAX_BLOCK_COLS = 32768         # 8*32768 px = 1 MiB f32 per operand per grid step
ALIGN_PIXELS = SUBLANES * CHUNK_COLS   # 4096

K_IN = 5 * SUBLANES            # 40: [d0 rows | d1 rows | r0 rows | r1 rows | ones]
M_OUT = CHN_MID + SUBLANES     # 40: 32 real channels + 8 constant-1 (bias) channels


def dist2logit_kernel(d0_ref, d1_ref, w1s_ref, w2_ref, w3_ref, b3_ref,
                      o_ref, ybuf_ref):
    # Hoisted once per grid step (loop-invariant): w3 lane-broadcast, b3, ones.
    w3b = jnp.broadcast_to(w3_ref[...], (CHN_MID, CHUNK_COLS))   # (32, 512) f32
    b3 = b3_ref[...]                                             # (1, 1) f32
    ones = jnp.ones((SUBLANES, CHUNK_COLS), jnp.float32)

    n_chunks = o_ref.shape[1] // CHUNK_COLS                      # static

    def chunk_body(ci, carry):
        col = pl.multiple_of(ci * CHUNK_COLS, CHUNK_COLS)
        d0 = d0_ref[:, pl.ds(col, CHUNK_COLS)]                   # (8, 512) f32 dense
        d1 = d1_ref[:, pl.ds(col, CHUNK_COLS)]                   # (8, 512) f32 dense

        # Dense once-per-chunk ratio channels (EUP reciprocal on full vregs).
        r0 = d0 * pl.reciprocal(d1 + EPS, approx=True)           # d0 / (d1 + eps)
        r1 = d1 * pl.reciprocal(d0 + EPS, approx=True)           # d1 / (d0 + eps)

        # Channel matrix for the whole chunk: whole-vreg concat (no per-row
        # sublane gathers); one f32->bf16 cast for the MXU.
        x = jnp.concatenate([d0, d1, r0, r1, ones], axis=0)      # (40, 512) f32
        xb = x.astype(jnp.bfloat16)

        # Per pixel-row MLP.  w1s_ref[s] picks row s's channels out of x,
        # folds b1 and emits 8 constant-1 channels that carry b2 into layer 2.
        for s in range(SUBLANES):
            h1 = jnp.dot(w1s_ref[s], xb,
                         preferred_element_type=jnp.float32)     # (40, 512) f32
            a1 = jnp.maximum(h1, NEG_SLOPE * h1)                 # LeakyReLU(0.2)
            h2 = jnp.dot(w2_ref[...], a1.astype(jnp.bfloat16),
                         preferred_element_type=jnp.float32)     # (32, 512), b2 folded
            a2 = jnp.maximum(h2, NEG_SLOPE * h2)                 # LeakyReLU(0.2)
            y = jnp.sum(a2 * w3b, axis=0, keepdims=True)         # (1, 512) XLU reduce
            ybuf_ref[pl.ds(s, 1), :] = y

        # Dense sigmoid (exp + approx reciprocal) + dense unmasked (8,512) store.
        z = ybuf_ref[...] + b3
        o_ref[:, pl.ds(col, CHUNK_COLS)] = pl.reciprocal(1.0 + jnp.exp(-z),
                                                         approx=True)
        return carry

    lax.fori_loop(0, n_chunks, chunk_body, 0)


def _plan_grid(n_units):
    """Given the number of 4096-pixel units needed (ceil), pick a uniform block
    size (in units) and grid count such that block*grid >= n_units with minimal
    padding, block <= MAX_BLOCK_COLS, and grid >= 2 whenever more than one unit
    exists (so both v7x TensorCores get work).  No ragged last block ever."""
    if n_units <= 1:
        return 1, 1
    max_units = MAX_BLOCK_COLS // CHUNK_COLS
    grid = max(2, -(-n_units // max_units))
    block_units = -(-n_units // grid)
    return block_units, grid


def fold_params(params):
    """Wrapper-side one-time precompute.
    Builds:
      w1s  (8, 40, 40) bf16 : per-pixel-row layer-1 weights.  Column blocks of
            size 8 correspond to [d0 rows | d1 rows | r0 rows | r1 rows | ones];
            only column s of each block is nonzero, so the matmul against the
            dense (40, 512) channel matrix selects pixel row s.  The (d0-d1)
            channel is folded into the d0/d1 coefficients, b1 rides on the ones
            rows, and output rows 32..39 produce the constant 1 (for b2).
      w2aug (32, 40) bf16 : W2^T with b2 in the aug-constant column.
      w3    (32, 1)  f32, b3 (1, 1) f32."""
    w1, b1, w2, b2, w3, b3 = [np.asarray(p, np.float32) for p in params]
    chn = w1.shape[1]
    assert chn == CHN_MID
    wa = w1[0] + w1[2]            # coeff of d0 (folds d0-d1)
    wb = w1[1] - w1[2]            # coeff of d1 (folds d0-d1)
    wc = w1[3]                    # coeff of d0/(d1+eps)
    wd = w1[4]                    # coeff of d1/(d0+eps)
    b1v = b1.reshape(chn)

    w1s = np.zeros((SUBLANES, M_OUT, K_IN), np.float32)
    for s in range(SUBLANES):
        w1s[s, :chn, 0 * SUBLANES + s] = wa
        w1s[s, :chn, 1 * SUBLANES + s] = wb
        w1s[s, :chn, 2 * SUBLANES + s] = wc
        w1s[s, :chn, 3 * SUBLANES + s] = wd
        w1s[s, :chn, 4 * SUBLANES + s] = b1v    # b1 via the ones rows
        w1s[s, chn:, 4 * SUBLANES + s] = 1.0    # aug channels output exactly 1

    w2aug = np.zeros((chn, M_OUT), np.float32)
    w2aug[:, :chn] = w2.T                       # [out, in]
    w2aug[:, chn] = b2.reshape(chn)             # b2 via aug-constant-1 channel

    return (jnp.asarray(w1s, dtype=jnp.bfloat16),
            jnp.asarray(w2aug, dtype=jnp.bfloat16),
            jnp.asarray(w3, dtype=jnp.float32),          # (32, 1)
            jnp.asarray(b3.reshape(1, 1), dtype=jnp.float32))


def dist2logit(d0, d1, kparams):
    """d0, d1: (N, 1, H, W) NCHW arrays. kparams = fold_params(params).
    Returns (N, 1, H, W) float32 in [0, 1]."""
    w1s, w2aug, w3c, b3c = kparams
    N, C, H, W = d0.shape
    assert C == 1, "Dist2LogitLayer expects single-channel distance maps"
    M = N * H * W

    d0f = d0.reshape(M).astype(jnp.float32)
    d1f = d1.reshape(M).astype(jnp.float32)

    n_units = -(-M // ALIGN_PIXELS)                  # ceil
    block_units, grid_n = _plan_grid(n_units)
    Mpad = block_units * grid_n * ALIGN_PIXELS
    if Mpad != M:
        # Pad value 1.0 keeps the divisions finite in the discarded tail.
        d0f = jnp.pad(d0f, (0, Mpad - M), constant_values=1.0)
        d1f = jnp.pad(d1f, (0, Mpad - M), constant_values=1.0)

    cols = Mpad // SUBLANES                          # = block_cols * grid_n exactly
    lc = block_units * CHUNK_COLS
    d0_2d = d0f.reshape(SUBLANES, cols)              # free row-major reshape
    d1_2d = d1f.reshape(SUBLANES, cols)

    io_spec = pl.BlockSpec((SUBLANES, lc), lambda i: (0, i))
    w1s_spec = pl.BlockSpec(w1s.shape, lambda i: (0, 0, 0))
    w2_spec = pl.BlockSpec(w2aug.shape, lambda i: (0, 0))
    w3_spec = pl.BlockSpec(w3c.shape, lambda i: (0, 0))
    b3_spec = pl.BlockSpec(b3c.shape, lambda i: (0, 0))

    out = pl.pallas_call(
        dist2logit_kernel,
        out_shape=jax.ShapeDtypeStruct((SUBLANES, cols), jnp.float32),
        grid=(grid_n,),
        in_specs=[io_spec, io_spec, w1s_spec, w2_spec, w3_spec, b3_spec],
        out_specs=io_spec,
        scratch_shapes=[pltpu.VMEM((SUBLANES, CHUNK_COLS), jnp.float32)],
        compiler_params=pltpu.CompilerParams(
            dimension_semantics=("parallel",)),
    )(d0_2d, d1_2d, w1s, w2aug, w3c, b3c)

    flat = out.reshape(Mpad)
    if Mpad != M:
        flat = flat[:M]
    return flat.reshape(N, 1, H, W)


def init_params(key, chn_mid=CHN_MID):
    """Deterministic synthetic init. Weights stored as (C_in, C_out), i.e. the
    transpose of PyTorch's Conv2d (C_out, C_in, 1, 1) squeezed weights."""
    k1, k2, k3, k4, k5, k6 = jax.random.split(key, 6)
    w1 = jax.random.normal(k1, (5, chn_mid), jnp.float32) * (1.0 / np.sqrt(5))
    b1 = jax.random.normal(k2, (1, chn_mid), jnp.float32) * 0.05
    w2 = jax.random.normal(k3, (chn_mid, chn_mid), jnp.float32) * (1.0 / np.sqrt(chn_mid))
    b2 = jax.random.normal(k4, (1, chn_mid), jnp.float32) * 0.05
    w3 = jax.random.normal(k5, (chn_mid, 1), jnp.float32) * (1.0 / np.sqrt(chn_mid))
    b3 = jax.random.normal(k6, (1, 1), jnp.float32) * 0.05
    return (w1, b1, w2, b2, w3, b3)


def reference(d0, d1, params, eps=EPS):
    """Pure-JAX f32 reference mirroring the PyTorch forward exactly."""
    w1, b1, w2, b2, w3, b3 = params
    N, _, H, W = d0.shape
    x = jnp.concatenate(
        [d0, d1, d0 - d1, d0 / (d1 + eps), d1 / (d0 + eps)], axis=1)  # (N,5,H,W)
    x = x.transpose(0, 2, 3, 1).reshape(-1, 5)                        # (M, 5)
    h = x @ w1 + b1
    h = jnp.where(h >= 0, h, NEG_SLOPE * h)
    h = h @ w2 + b2
    h = jnp.where(h >= 0, h, NEG_SLOPE * h)
    y = jax.nn.sigmoid(h @ w3 + b3)
    return y.reshape(N, H, W, 1).transpose(0, 3, 1, 2)                # (N,1,H,W)


def _check(d0, d1, params, kparams):
    out = jax.block_until_ready(dist2logit(d0, d1, kparams))
    ref = reference(d0, d1, params)
    assert out.shape == d0.shape
    # Tolerance is loosened relative to the f32 reference because layers 1 and 2
    # run with bf16 operands (f32 accumulation) on the MXU and the reciprocals /
    # sigmoid use the EUP approx path; LPIPS logits (in [0,1]) tolerate this.
    np.testing.assert_allclose(np.asarray(out), np.asarray(ref),
                               rtol=4e-2, atol=4e-2)


if __name__ == "__main__":
    key = jax.random.PRNGKey(0)
    kp, k0, k1, k2, k3 = jax.random.split(key, 5)

    params = init_params(kp)
    kparams = fold_params(params)

    # Case 1: small ragged size (exercises the tail-padding path, single block).
    N, H, W = 2, 16, 16
    d0 = jax.random.uniform(k0, (N, 1, H, W), jnp.float32)   # distances >= 0
    d1 = jax.random.uniform(k1, (N, 1, H, W), jnp.float32)
    _check(d0, d1, params, kparams)

    # Case 2: aligned size (no padding, 2-step grid + inner chunk loop).
    N2, H2, W2 = 4, 256, 256
    d0b = jax.random.uniform(k2, (N2, 1, H2, W2), jnp.float32)
    d1b = jax.random.uniform(k3, (N2, 1, H2, W2), jnp.float32)
    _check(d0b, d1b, params, kparams)

    print("KERNEL_OK")
</pallas_src>

<mosaic_0001>
module attributes {stable_mosaic.version = 11 : i64} {
  func.func @dist2logit_kernel(%arg0: i32, %arg1: memref<8x512xf32, #tpu.memory_space<vmem>>, %arg2: memref<8x512xf32, #tpu.memory_space<vmem>>, %arg3: memref<8x40x40xbf16, #tpu.memory_space<vmem>>, %arg4: memref<32x40xbf16, #tpu.memory_space<vmem>>, %arg5: memref<32x1xf32, #tpu.memory_space<vmem>>, %arg6: memref<1x1xf32, #tpu.memory_space<vmem>>, %arg7: memref<8x512xf32, #tpu.memory_space<vmem>>, %arg8: memref<8x512xf32, #tpu.memory_space<vmem>>) attributes {dimension_semantics = [#tpu.dimension_semantics<parallel>], iteration_bounds = array<i64: 1>, scalar_prefetch = 0 : i64, scratch_operands = 1 : i64, tpu.core_type = #tpu.core_type<tc>, window_params = [{transform_indices = @transform_0, window_bounds = array<i64: 8, 512>}, {transform_indices = @transform_1, window_bounds = array<i64: 8, 512>}, {pipeline_mode = #tpu.pipeline_mode<synchronous>, transform_indices = @transform_2, window_bounds = array<i64: 8, 40, 40>}, {pipeline_mode = #tpu.pipeline_mode<synchronous>, transform_indices = @transform_3, window_bounds = array<i64: 32, 40>}, {pipeline_mode = #tpu.pipeline_mode<synchronous>, transform_indices = @transform_4, window_bounds = array<i64: 32, 1>}, {pipeline_mode = #tpu.pipeline_mode<synchronous>, transform_indices = @transform_5, window_bounds = array<i64: 1, 1>}, {transform_indices = @transform_6, window_bounds = array<i64: 8, 512>}]} {
    %c0 = arith.constant 0 : index
    %c0_0 = arith.constant 0 : index
    %0 = vector.load %arg5[%c0, %c0_0] : memref<32x1xf32, #tpu.memory_space<vmem>>, vector<32x1xf32>
    %1 = vector.shape_cast %0 : vector<32x1xf32> to vector<32x1xf32>
    %2 = vector.broadcast %1 : vector<32x1xf32> to vector<32x512xf32>
    %c0_1 = arith.constant 0 : index
    %c0_2 = arith.constant 0 : index
    %3 = vector.load %arg6[%c0_1, %c0_2] : memref<1x1xf32, #tpu.memory_space<vmem>>, vector<1x1xf32>
    %cst = arith.constant 1.000000e+00 : f32
    %4 = vector.broadcast %cst : f32 to vector<8x512xf32>
    %c0_i32 = arith.constant 0 : i32
    %c512_i32 = arith.constant 512 : i32
    %5 = arith.muli %c0_i32, %c512_i32 : i32
    %6 = tpu.assume_multiple %5, 512 : i32
    %c0_3 = arith.constant 0 : index
    %7 = arith.index_cast %6 : i32 to index
    %8 = vector.load %arg1[%c0_3, %7] : memref<8x512xf32, #tpu.memory_space<vmem>>, vector<8x512xf32>
    %c0_4 = arith.constant 0 : index
    %9 = arith.index_cast %6 : i32 to index
    %10 = vector.load %arg2[%c0_4, %9] : memref<8x512xf32, #tpu.memory_space<vmem>>, vector<8x512xf32>
    %cst_5 = arith.constant 1.000000e-01 : f32
    %11 = vector.broadcast %cst_5 : f32 to vector<8x512xf32>
    %12 = arith.addf %10, %11 : vector<8x512xf32>
    %13 = tpu.reciprocal %12 {approx = true} : vector<8x512xf32> -> vector<8x512xf32>
    %14 = arith.mulf %8, %13 : vector<8x512xf32>
    %cst_6 = arith.constant 1.000000e-01 : f32
    %15 = vector.broadcast %cst_6 : f32 to vector<8x512xf32>
    %16 = arith.addf %8, %15 : vector<8x512xf32>
    %17 = tpu.reciprocal %16 {approx = true} : vector<8x512xf32> -> vector<8x512xf32>
    %18 = arith.mulf %10, %17 : vector<8x512xf32>
    %19 = tpu.concatenate %8, %10, %14, %18, %4 in 0 : vector<8x512xf32>, vector<8x512xf32>, vector<8x512xf32>, vector<8x512xf32>, vector<8x512xf32> -> vector<40x512xf32>
    %20 = arith.truncf %19 : vector<40x512xf32> to vector<40x512xbf16>
    %c0_7 = arith.constant 0 : index
    %c0_8 = arith.constant 0 : index
    %c0_9 = arith.constant 0 : index
    %21 = vector.load %arg3[%c0_7, %c0_8, %c0_9] : memref<8x40x40xbf16, #tpu.memory_space<vmem>>, vector<1x40x40xbf16>
    %22 = vector.shape_cast %21 : vector<1x40x40xbf16> to vector<40x40xbf16>
    %cst_10 = arith.constant dense<0.000000e+00> : vector<40x512xf32>
    %23 = tpu.matmul %22, %20, %cst_10 {dimension_numbers = #tpu.dot_dimension_numbers<[1], [0], [0], [1], [0, 0, 1, 1], [], []>} : vector<40x40xbf16>, vector<40x512xbf16>, vector<40x512xf32> -> vector<40x512xf32>
    %cst_11 = arith.constant 2.000000e-01 : f32
    %24 = vector.broadcast %cst_11 : f32 to vector<40x512xf32>
    %25 = arith.mulf %24, %23 : vector<40x512xf32>
    %26 = arith.maximumf %23, %25 : vector<40x512xf32>
    %c0_12 = arith.constant 0 : index
    %c0_13 = arith.constant 0 : index
    %27 = vector.load %arg4[%c0_12, %c0_13] : memref<32x40xbf16, #tpu.memory_space<vmem>>, vector<32x40xbf16>
    %28 = arith.truncf %26 : vector<40x512xf32> to vector<40x512xbf16>
    %cst_14 = arith.constant dense<0.000000e+00> : vector<32x512xf32>
    %29 = tpu.matmul %27, %28, %cst_14 {dimension_numbers = #tpu.dot_dimension_numbers<[1], [0], [0], [1], [0, 0, 1, 1], [], []>} : vector<32x40xbf16>, vector<40x512xbf16>, vector<32x512xf32> -> vector<32x512xf32>
    %cst_15 = arith.constant 2.000000e-01 : f32
    %30 = vector.broadcast %cst_15 : f32 to vector<32x512xf32>
    %31 = arith.mulf %30, %29 : vector<32x512xf32>
    %32 = arith.maximumf %29, %31 : vector<32x512xf32>
    %33 = arith.mulf %32, %2 : vector<32x512xf32>
    %cst_16 = arith.constant dense<0.000000e+00> : vector<512xf32>
    %34 = vector.multi_reduction <add>, %33, %cst_16 [0] : vector<32x512xf32> to vector<512xf32>
    %35 = vector.shape_cast %34 : vector<512xf32> to vector<1x512xf32>
    %c0_17 = arith.constant 0 : index
    %c0_18 = arith.constant 0 : index
    %36 = vector.load %arg8[%c0_17, %c0_18] : memref<8x512xf32, #tpu.memory_space<vmem>>, vector<1x512xf32>
    tpu.vector_store %arg8[%c0_17, %c0_18], %35 {strides = array<i32>} : memref<8x512xf32, #tpu.memory_space<vmem>>, vector<1x512xf32>,
    %c1 = arith.constant 1 : index
    %c0_19 = arith.constant 0 : index
    %c0_20 = arith.constant 0 : index
    %37 = vector.load %arg3[%c1, %c0_19, %c0_20] : memref<8x40x40xbf16, #tpu.memory_space<vmem>>, vector<1x40x40xbf16>
    %38 = vector.shape_cast %37 : vector<1x40x40xbf16> to vector<40x40xbf16>
    %cst_21 = arith.constant dense<0.000000e+00> : vector<40x512xf32>
    %39 = tpu.matmul %38, %20, %cst_21 {dimension_numbers = #tpu.dot_dimension_numbers<[1], [0], [0], [1], [0, 0, 1, 1], [], []>} : vector<40x40xbf16>, vector<40x512xbf16>, vector<40x512xf32> -> vector<40x512xf32>
    %cst_22 = arith.constant 2.000000e-01 : f32
    %40 = vector.broadcast %cst_22 : f32 to vector<40x512xf32>
    %41 = arith.mulf %40, %39 : vector<40x512xf32>
    %42 = arith.maximumf %39, %41 : vector<40x512xf32>
    %c0_23 = arith.constant 0 : index
    %c0_24 = arith.constant 0 : index
    %43 = vector.load %arg4[%c0_23, %c0_24] : memref<32x40xbf16, #tpu.memory_space<vmem>>, vector<32x40xbf16>
    %44 = arith.truncf %42 : vector<40x512xf32> to vector<40x512xbf16>
    %cst_25 = arith.constant dense<0.000000e+00> : vector<32x512xf32>
    %45 = tpu.matmul %43, %44, %cst_25 {dimension_numbers = #tpu.dot_dimension_numbers<[1], [0], [0], [1], [0, 0, 1, 1], [], []>} : vector<32x40xbf16>, vector<40x512xbf16>, vector<32x512xf32> -> vector<32x512xf32>
    %cst_26 = arith.constant 2.000000e-01 : f32
    %46 = vector.broadcast %cst_26 : f32 to vector<32x512xf32>
    %47 = arith.mulf %46, %45 : vector<32x512xf32>
    %48 = arith.maximumf %45, %47 : vector<32x512xf32>
    %49 = arith.mulf %48, %2 : vector<32x512xf32>
    %cst_27 = arith.constant dense<0.000000e+00> : vector<512xf32>
    %50 = vector.multi_reduction <add>, %49, %cst_27 [0] : vector<32x512xf32> to vector<512xf32>
    %51 = vector.shape_cast %50 : vector<512xf32> to vector<1x512xf32>
    %c1_28 = arith.constant 1 : index
    %c0_29 = arith.constant 0 : index
    %52 = vector.load %arg8[%c1_28, %c0_29] : memref<8x512xf32, #tpu.memory_space<vmem>>, vector<1x512xf32>
    tpu.vector_store %arg8[%c1_28, %c0_29], %51 {strides = array<i32>} : memref<8x512xf32, #tpu.memory_space<vmem>>, vector<1x512xf32>,
    %c2 = arith.constant 2 : index
    %c0_30 = arith.constant 0 : index
    %c0_31 = arith.constant 0 : index
    %53 = vector.load %arg3[%c2, %c0_30, %c0_31] : memref<8x40x40xbf16, #tpu.memory_space<vmem>>, vector<1x40x40xbf16>
    %54 = vector.shape_cast %53 : vector<1x40x40xbf16> to vector<40x40xbf16>
    %cst_32 = arith.constant dense<0.000000e+00> : vector<40x512xf32>
    %55 = tpu.matmul %54, %20, %cst_32 {dimension_numbers = #tpu.dot_dimension_numbers<[1], [0], [0], [1], [0, 0, 1, 1], [], []>} : vector<40x40xbf16>, vector<40x512xbf16>, vector<40x512xf32> -> vector<40x512xf32>
    %cst_33 = arith.constant 2.000000e-01 : f32
    %56 = vector.broadcast %cst_33 : f32 to vector<40x512xf32>
    %57 = arith.mulf %56, %55 : vector<40x512xf32>
    %58 = arith.maximumf %55, %57 : vector<40x512xf32>
    %c0_34 = arith.constant 0 : index
    %c0_35 = arith.constant 0 : index
    %59 = vector.load %arg4[%c0_34, %c0_35] : memref<32x40xbf16, #tpu.memory_space<vmem>>, vector<32x40xbf16>
    %60 = arith.truncf %58 : vector<40x512xf32> to vector<40x512xbf16>
    %cst_36 = arith.constant dense<0.000000e+00> : vector<32x512xf32>
    %61 = tpu.matmul %59, %60, %cst_36 {dimension_numbers = #tpu.dot_dimension_numbers<[1], [0], [0], [1], [0, 0, 1, 1], [], []>} : vector<32x40xbf16>, vector<40x512xbf16>, vector<32x512xf32> -> vector<32x512xf32>
    %cst_37 = arith.constant 2.000000e-01 : f32
    %62 = vector.broadcast %cst_37 : f32 to vector<32x512xf32>
    %63 = arith.mulf %62, %61 : vector<32x512xf32>
    %64 = arith.maximumf %61, %63 : vector<32x512xf32>
    %65 = arith.mulf %64, %2 : vector<32x512xf32>
    %cst_38 = arith.constant dense<0.000000e+00> : vector<512xf32>
    %66 = vector.multi_reduction <add>, %65, %cst_38 [0] : vector<32x512xf32> to vector<512xf32>
    %67 = vector.shape_cast %66 : vector<512xf32> to vector<1x512xf32>
    %c2_39 = arith.constant 2 : index
    %c0_40 = arith.constant 0 : index
    %68 = vector.load %arg8[%c2_39, %c0_40] : memref<8x512xf32, #tpu.memory_space<vmem>>, vector<1x512xf32>
    tpu.vector_store %arg8[%c2_39, %c0_40], %67 {strides = array<i32>} : memref<8x512xf32, #tpu.memory_space<vmem>>, vector<1x512xf32>,
    %c3 = arith.constant 3 : index
    %c0_41 = arith.constant 0 : index
    %c0_42 = arith.constant 0 : index
    %69 = vector.load %arg3[%c3, %c0_41, %c0_42] : memref<8x40x40xbf16, #tpu.memory_space<vmem>>, vector<1x40x40xbf16>
    %70 = vector.shape_cast %69 : vector<1x40x40xbf16> to vector<40x40xbf16>
    %cst_43 = arith.constant dense<0.000000e+00> : vector<40x512xf32>
    %71 = tpu.matmul %70, %20, %cst_43 {dimension_numbers = #tpu.dot_dimension_numbers<[1], [0], [0], [1], [0, 0, 1, 1], [], []>} : vector<40x40xbf16>, vector<40x512xbf16>, vector<40x512xf32> -> vector<40x512xf32>
    %cst_44 = arith.constant 2.000000e-01 : f32
    %72 = vector.broadcast %cst_44 : f32 to vector<40x512xf32>
    %73 = arith.mulf %72, %71 : vector<40x512xf32>
    %74 = arith.maximumf %71, %73 : vector<40x512xf32>
    %c0_45 = arith.constant 0 : index
    %c0_46 = arith.constant 0 : index
    %75 = vector.load %arg4[%c0_45, %c0_46] : memref<32x40xbf16, #tpu.memory_space<vmem>>, vector<32x40xbf16>
    %76 = arith.truncf %74 : vector<40x512xf32> to vector<40x512xbf16>
    %cst_47 = arith.constant dense<0.000000e+00> : vector<32x512xf32>
    %77 = tpu.matmul %75, %76, %cst_47 {dimension_numbers = #tpu.dot_dimension_numbers<[1], [0], [0], [1], [0, 0, 1, 1], [], []>} : vector<32x40xbf16>, vector<40x512xbf16>, vector<32x512xf32> -> vector<32x512xf32>
    %cst_48 = arith.constant 2.000000e-01 : f32
    %78 = vector.broadcast %cst_48 : f32 to vector<32x512xf32>
    %79 = arith.mulf %78, %77 : vector<32x512xf32>
    %80 = arith.maximumf %77, %79 : vector<32x512xf32>
    %81 = arith.mulf %80, %2 : vector<32x512xf32>
    %cst_49 = arith.constant dense<0.000000e+00> : vector<512xf32>
    %82 = vector.multi_reduction <add>, %81, %cst_49 [0] : vector<32x512xf32> to vector<512xf32>
    %83 = vector.shape_cast %82 : vector<512xf32> to vector<1x512xf32>
    %c3_50 = arith.constant 3 : index
    %c0_51 = arith.constant 0 : index
    %84 = vector.load %arg8[%c3_50, %c0_51] : memref<8x512xf32, #tpu.memory_space<vmem>>, vector<1x512xf32>
    tpu.vector_store %arg8[%c3_50, %c0_51], %83 {strides = array<i32>} : memref<8x512xf32, #tpu.memory_space<vmem>>, vector<1x512xf32>,
    %c4 = arith.constant 4 : index
    %c0_52 = arith.constant 0 : index
    %c0_53 = arith.constant 0 : index
    %85 = vector.load %arg3[%c4, %c0_52, %c0_53] : memref<8x40x40xbf16, #tpu.memory_space<vmem>>, vector<1x40x40xbf16>
    %86 = vector.shape_cast %85 : vector<1x40x40xbf16> to vector<40x40xbf16>
    %cst_54 = arith.constant dense<0.000000e+00> : vector<40x512xf32>
    %87 = tpu.matmul %86, %20, %cst_54 {dimension_numbers = #tpu.dot_dimension_numbers<[1], [0], [0], [1], [0, 0, 1, 1], [], []>} : vector<40x40xbf16>, vector<40x512xbf16>, vector<40x512xf32> -> vector<40x512xf32>
    %cst_55 = arith.constant 2.000000e-01 : f32
    %88 = vector.broadcast %cst_55 : f32 to vector<40x512xf32>
    %89 = arith.mulf %88, %87 : vector<40x512xf32>
    %90 = arith.maximumf %87, %89 : vector<40x512xf32>
    %c0_56 = arith.constant 0 : index
    %c0_57 = arith.constant 0 : index
    %91 = vector.load %arg4[%c0_56, %c0_57] : memref<32x40xbf16, #tpu.memory_space<vmem>>, vector<32x40xbf16>
    %92 = arith.truncf %90 : vector<40x512xf32> to vector<40x512xbf16>
    %cst_58 = arith.constant dense<0.000000e+00> : vector<32x512xf32>
    %93 = tpu.matmul %91, %92, %cst_58 {dimension_numbers = #tpu.dot_dimension_numbers<[1], [0], [0], [1], [0, 0, 1, 1], [], []>} : vector<32x40xbf16>, vector<40x512xbf16>, vector<32x512xf32> -> vector<32x512xf32>
    %cst_59 = arith.constant 2.000000e-01 : f32
    %94 = vector.broadcast %cst_59 : f32 to vector<32x512xf32>
    %95 = arith.mulf %94, %93 : vector<32x512xf32>
    %96 = arith.maximumf %93, %95 : vector<32x512xf32>
    %97 = arith.mulf %96, %2 : vector<32x512xf32>
    %cst_60 = arith.constant dense<0.000000e+00> : vector<512xf32>
    %98 = vector.multi_reduction <add>, %97, %cst_60 [0] : vector<32x512xf32> to vector<512xf32>
    %99 = vector.shape_cast %98 : vector<512xf32> to vector<1x512xf32>
    %c4_61 = arith.constant 4 : index
    %c0_62 = arith.constant 0 : index
    %100 = vector.load %arg8[%c4_61, %c0_62] : memref<8x512xf32, #tpu.memory_space<vmem>>, vector<1x512xf32>
    tpu.vector_store %arg8[%c4_61, %c0_62], %99 {strides = array<i32>} : memref<8x512xf32, #tpu.memory_space<vmem>>, vector<1x512xf32>,
    %c5 = arith.constant 5 : index
    %c0_63 = arith.constant 0 : index
    %c0_64 = arith.constant 0 : index
    %101 = vector.load %arg3[%c5, %c0_63, %c0_64] : memref<8x40x40xbf16, #tpu.memory_space<vmem>>, vector<1x40x40xbf16>
    %102 = vector.shape_cast %101 : vector<1x40x40xbf16> to vector<40x40xbf16>
    %cst_65 = arith.constant dense<0.000000e+00> : vector<40x512xf32>
    %103 = tpu.matmul %102, %20, %cst_65 {dimension_numbers = #tpu.dot_dimension_numbers<[1], [0], [0], [1], [0, 0, 1, 1], [], []>} : vector<40x40xbf16>, vector<40x512xbf16>, vector<40x512xf32> -> vector<40x512xf32>
    %cst_66 = arith.constant 2.000000e-01 : f32
    %104 = vector.broadcast %cst_66 : f32 to vector<40x512xf32>
    %105 = arith.mulf %104, %103 : vector<40x512xf32>
    %106 = arith.maximumf %103, %105 : vector<40x512xf32>
    %c0_67 = arith.constant 0 : index
    %c0_68 = arith.constant 0 : index
    %107 = vector.load %arg4[%c0_67, %c0_68] : memref<32x40xbf16, #tpu.memory_space<vmem>>, vector<32x40xbf16>
    %108 = arith.truncf %106 : vector<40x512xf32> to vector<40x512xbf16>
    %cst_69 = arith.constant dense<0.000000e+00> : vector<32x512xf32>
    %109 = tpu.matmul %107, %108, %cst_69 {dimension_numbers = #tpu.dot_dimension_numbers<[1], [0], [0], [1], [0, 0, 1, 1], [], []>} : vector<32x40xbf16>, vector<40x512xbf16>, vector<32x512xf32> -> vector<32x512xf32>
    %cst_70 = arith.constant 2.000000e-01 : f32
    %110 = vector.broadcast %cst_70 : f32 to vector<32x512xf32>
    %111 = arith.mulf %110, %109 : vector<32x512xf32>
    %112 = arith.maximumf %109, %111 : vector<32x512xf32>
    %113 = arith.mulf %112, %2 : vector<32x512xf32>
    %cst_71 = arith.constant dense<0.000000e+00> : vector<512xf32>
    %114 = vector.multi_reduction <add>, %113, %cst_71 [0] : vector<32x512xf32> to vector<512xf32>
    %115 = vector.shape_cast %114 : vector<512xf32> to vector<1x512xf32>
    %c5_72 = arith.constant 5 : index
    %c0_73 = arith.constant 0 : index
    %116 = vector.load %arg8[%c5_72, %c0_73] : memref<8x512xf32, #tpu.memory_space<vmem>>, vector<1x512xf32>
    tpu.vector_store %arg8[%c5_72, %c0_73], %115 {strides = array<i32>} : memref<8x512xf32, #tpu.memory_space<vmem>>, vector<1x512xf32>,
    %c6 = arith.constant 6 : index
    %c0_74 = arith.constant 0 : index
    %c0_75 = arith.constant 0 : index
    %117 = vector.load %arg3[%c6, %c0_74, %c0_75] : memref<8x40x40xbf16, #tpu.memory_space<vmem>>, vector<1x40x40xbf16>
    %118 = vector.shape_cast %117 : vector<1x40x40xbf16> to vector<40x40xbf16>
    %cst_76 = arith.constant dense<0.000000e+00> : vector<40x512xf32>
    %119 = tpu.matmul %118, %20, %cst_76 {dimension_numbers = #tpu.dot_dimension_numbers<[1], [0], [0], [1], [0, 0, 1, 1], [], []>} : vector<40x40xbf16>, vector<40x512xbf16>, vector<40x512xf32> -> vector<40x512xf32>
    %cst_77 = arith.constant 2.000000e-01 : f32
    %120 = vector.broadcast %cst_77 : f32 to vector<40x512xf32>
    %121 = arith.mulf %120, %119 : vector<40x512xf32>
    %122 = arith.maximumf %119, %121 : vector<40x512xf32>
    %c0_78 = arith.constant 0 : index
    %c0_79 = arith.constant 0 : index
    %123 = vector.load %arg4[%c0_78, %c0_79] : memref<32x40xbf16, #tpu.memory_space<vmem>>, vector<32x40xbf16>
    %124 = arith.truncf %122 : vector<40x512xf32> to vector<40x512xbf16>
    %cst_80 = arith.constant dense<0.000000e+00> : vector<32x512xf32>
    %125 = tpu.matmul %123, %124, %cst_80 {dimension_numbers = #tpu.dot_dimension_numbers<[1], [0], [0], [1], [0, 0, 1, 1], [], []>} : vector<32x40xbf16>, vector<40x512xbf16>, vector<32x512xf32> -> vector<32x512xf32>
    %cst_81 = arith.constant 2.000000e-01 : f32
    %126 = vector.broadcast %cst_81 : f32 to vector<32x512xf32>
    %127 = arith.mulf %126, %125 : vector<32x512xf32>
    %128 = arith.maximumf %125, %127 : vector<32x512xf32>
    %129 = arith.mulf %128, %2 : vector<32x512xf32>
    %cst_82 = arith.constant dense<0.000000e+00> : vector<512xf32>
    %130 = vector.multi_reduction <add>, %129, %cst_82 [0] : vector<32x512xf32> to vector<512xf32>
    %131 = vector.shape_cast %130 : vector<512xf32> to vector<1x512xf32>
    %c6_83 = arith.constant 6 : index
    %c0_84 = arith.constant 0 : index
    %132 = vector.load %arg8[%c6_83, %c0_84] : memref<8x512xf32, #tpu.memory_space<vmem>>, vector<1x512xf32>
    tpu.vector_store %arg8[%c6_83, %c0_84], %131 {strides = array<i32>} : memref<8x512xf32, #tpu.memory_space<vmem>>, vector<1x512xf32>,
    %c7 = arith.constant 7 : index
    %c0_85 = arith.constant 0 : index
    %c0_86 = arith.constant 0 : index
    %133 = vector.load %arg3[%c7, %c0_85, %c0_86] : memref<8x40x40xbf16, #tpu.memory_space<vmem>>, vector<1x40x40xbf16>
    %134 = vector.shape_cast %133 : vector<1x40x40xbf16> to vector<40x40xbf16>
    %cst_87 = arith.constant dense<0.000000e+00> : vector<40x512xf32>
    %135 = tpu.matmul %134, %20, %cst_87 {dimension_numbers = #tpu.dot_dimension_numbers<[1], [0], [0], [1], [0, 0, 1, 1], [], []>} : vector<40x40xbf16>, vector<40x512xbf16>, vector<40x512xf32> -> vector<40x512xf32>
    %cst_88 = arith.constant 2.000000e-01 : f32
    %136 = vector.broadcast %cst_88 : f32 to vector<40x512xf32>
    %137 = arith.mulf %136, %135 : vector<40x512xf32>
    %138 = arith.maximumf %135, %137 : vector<40x512xf32>
    %c0_89 = arith.constant 0 : index
    %c0_90 = arith.constant 0 : index
    %139 = vector.load %arg4[%c0_89, %c0_90] : memref<32x40xbf16, #tpu.memory_space<vmem>>, vector<32x40xbf16>
    %140 = arith.truncf %138 : vector<40x512xf32> to vector<40x512xbf16>
    %cst_91 = arith.constant dense<0.000000e+00> : vector<32x512xf32>
    %141 = tpu.matmul %139, %140, %cst_91 {dimension_numbers = #tpu.dot_dimension_numbers<[1], [0], [0], [1], [0, 0, 1, 1], [], []>} : vector<32x40xbf16>, vector<40x512xbf16>, vector<32x512xf32> -> vector<32x512xf32>
    %cst_92 = arith.constant 2.000000e-01 : f32
    %142 = vector.broadcast %cst_92 : f32 to vector<32x512xf32>
    %143 = arith.mulf %142, %141 : vector<32x512xf32>
    %144 = arith.maximumf %141, %143 : vector<32x512xf32>
    %145 = arith.mulf %144, %2 : vector<32x512xf32>
    %cst_93 = arith.constant dense<0.000000e+00> : vector<512xf32>
    %146 = vector.multi_reduction <add>, %145, %cst_93 [0] : vector<32x512xf32> to vector<512xf32>
    %147 = vector.shape_cast %146 : vector<512xf32> to vector<1x512xf32>
    %c7_94 = arith.constant 7 : index
    %c0_95 = arith.constant 0 : index
    %148 = vector.load %arg8[%c7_94, %c0_95] : memref<8x512xf32, #tpu.memory_space<vmem>>, vector<1x512xf32>
    tpu.vector_store %arg8[%c7_94, %c0_95], %147 {strides = array<i32>} : memref<8x512xf32, #tpu.memory_space<vmem>>, vector<1x512xf32>,
    %c0_96 = arith.constant 0 : index
    %c0_97 = arith.constant 0 : index
    %149 = vector.load %arg8[%c0_96, %c0_97] : memref<8x512xf32, #tpu.memory_space<vmem>>, vector<8x512xf32>
    %150 = vector.broadcast %3 : vector<1x1xf32> to vector<8x512xf32>
    %151 = arith.addf %149, %150 : vector<8x512xf32>
    %cst_98 = arith.constant 0.000000e+00 : f32
    %152 = vector.broadcast %cst_98 : f32 to vector<8x512xf32>
    %153 = arith.subf %152, %151 : vector<8x512xf32>
    %154 = math.exp %153 : vector<8x512xf32>
    %cst_99 = arith.constant 1.000000e+00 : f32
    %155 = vector.broadcast %cst_99 : f32 to vector<8x512xf32>
    %156 = arith.addf %155, %154 : vector<8x512xf32>
    %157 = tpu.reciprocal %156 {approx = true} : vector<8x512xf32> -> vector<8x512xf32>
    %c0_100 = arith.constant 0 : index
    %158 = arith.index_cast %6 : i32 to index
    %159 = vector.load %arg7[%c0_100, %158] : memref<8x512xf32, #tpu.memory_space<vmem>>, vector<8x512xf32>
    tpu.vector_store %arg7[%c0_100, %158], %157 {strides = array<i32>} : memref<8x512xf32, #tpu.memory_space<vmem>>, vector<8x512xf32>,
    %c1_i32 = arith.constant 1 : i32
    return
  }
  func.func @transform_0(%arg0: i32) -> (i32, i32) {
    %c0_i32 = arith.constant 0 : i32
    %c0_i32_0 = arith.constant 0 : i32
    return %c0_i32, %arg0 : i32, i32
  }
  func.func @transform_1(%arg0: i32) -> (i32, i32) {
    %c0_i32 = arith.constant 0 : i32
    %c0_i32_0 = arith.constant 0 : i32
    return %c0_i32, %arg0 : i32, i32
  }
  func.func @transform_2(%arg0: i32) -> (i32, i32, i32) {
    %c0_i32 = arith.constant 0 : i32
    %c0_i32_0 = arith.constant 0 : i32
    %c0_i32_1 = arith.constant 0 : i32
    %c0_i32_2 = arith.constant 0 : i32
    return %c0_i32, %c0_i32_0, %c0_i32_1 : i32, i32, i32
  }
  func.func @transform_3(%arg0: i32) -> (i32, i32) {
    %c0_i32 = arith.constant 0 : i32
    %c0_i32_0 = arith.constant 0 : i32
    %c0_i32_1 = arith.constant 0 : i32
    return %c0_i32, %c0_i32_0 : i32, i32
  }
  func.func @transform_4(%arg0: i32) -> (i32, i32) {
    %c0_i32 = arith.constant 0 : i32
    %c0_i32_0 = arith.constant 0 : i32
    %c0_i32_1 = arith.constant 0 : i32
    return %c0_i32, %c0_i32_0 : i32, i32
  }
  func.func @transform_5(%arg0: i32) -> (i32, i32) {
    %c0_i32 = arith.constant 0 : i32
    %c0_i32_0 = arith.constant 0 : i32
    %c0_i32_1 = arith.constant 0 : i32
    return %c0_i32, %c0_i32_0 : i32, i32
  }
  func.func @transform_6(%arg0: i32) -> (i32, i32) {
    %c0_i32 = arith.constant 0 : i32
    %c0_i32_0 = arith.constant 0 : i32
    return %c0_i32, %arg0 : i32, i32
  }
}

</mosaic_0001>

<llo_original>
// kernel: tpu_custom_call.1
$region0: #{tpu_custom_call.1}
  #allocation0 [shape = 'u32[]', space=smem, size = 0x4, offset = 0x4, fixed_abs, tag = 'smem constant byte address 0x4 - core index']
  #allocation1 [shape = 'u32[144,128]{1,0:T(1,128)}', space=vmem, size = 0x12000, scoped, tag = 'internal scratch']
  #allocation2 [shape = 'f32[8,512]{1,0:T(8,128)}', space=vmem, size = 0x4000, scoped, tag = 'scratch operand']
  #allocation3 [shape = 'f32[1,1]{1,0:T(1,128)S(1)}', space=vmem, size = 0x200, scoped, tag = 'scoped memory for tpu_custom_call.1']
  %s0 = inlined_call_operand.vmem [shape: f32[8,512], index: 0, kind: input, shape index: {}]
  %s1 = inlined_call_operand.hbm [shape: f32[8,512], index: 1, kind: input, shape index: {}]
  %s2 = inlined_call_operand.hbm [shape: bf16[8,40,40], index: 2, kind: input, shape index: {}]
  %s3 = inlined_call_operand.hbm [shape: bf16[32,40], index: 3, kind: input, shape index: {}]
  %s4 = inlined_call_operand.vmem [shape: f32[32,1], index: 4, kind: input, shape index: {}]
  %s5 = inlined_call_operand.<no memory space> [shape: f32[1,1], index: 5, kind: input, shape index: {}]
  %s6 = inlined_call_operand.hbm [shape: f32[8,512], index: 6, kind: output, shape index: {}]
  %s7 = sld [smem:[#allocation0]]
  $region46: #{tpu_custom_call.1} parent=0
    _
  %s9 = ssub.s32 1, %s7
  %s10 = scalar_select 0, %s9, %s7
  %v11 = vstv %s5
  %12 = vst [vmem:[#allocation3] sm:$0x1] %v11
  $region1: #{tpu_custom_call.1} parent=0
    #allocation4 [shape = 'u8[16384]{0}', space=vmem, size = 0x4000, scoped, tag = 'input window, operand 1, single buffered']
    #allocation5 [shape = 's32[1]{0}', space=sflag, size = 0x4, scoped, tag = 'scoped memory for tpu_custom_call.1']
    #allocation6 [shape = 's32[1]{0}', space=sflag, size = 0x4, scoped, tag = 'scoped memory for tpu_custom_call.1']
    #allocation7 [shape = 'u8[81920]{0}', space=vmem, size = 0x14000, scoped, tag = 'input window, operand 2, single buffered']
    #allocation8 [shape = 's32[1]{0}', space=sflag, size = 0x4, scoped, tag = 'scoped memory for tpu_custom_call.1']
    #allocation9 [shape = 'u8[8192]{0}', space=vmem, size = 0x2000, scoped, tag = 'input window, operand 3, single buffered']
    #allocation10 [shape = 'u8[16384]{0}', space=vmem, size = 0x4000, scoped, tag = 'output window, operand 0, single buffered']
    %13 = vsyncpa [#allocation5], 0
    %14 = vsyncpa [#allocation8], 0
    %15 = vsyncpa [#allocation6], 0
    // Predicated region
    $region2: #{tpu_custom_call.1} parent=1 // pred_check
      _
    $region3: #{tpu_custom_call.1} parent=1 // pred_check_branch
      %17 = sbr.rel (0) target = $region5
    $region4: #{tpu_custom_call.1} parent=1 // pred_region
      _
    $region5: #{tpu_custom_call.1} parent=1 // pred_fallthru
      _
    // Predicated region
    $region6: #{tpu_custom_call.1} parent=1 // pred_check
      _
    $region7: #{tpu_custom_call.1} parent=1 // pred_check_branch
      %19 = sbr.rel (0) target = $region9
    $region8: #{tpu_custom_call.1} parent=1 // pred_region
      %s21 = ssub.s32 512, 512
      %22 = vsyncadd [#allocation5], %s21
      %s24 = sshll.u32 [#allocation4], 4
      %s25 = int_to_ptr.vmem [resolvable:$true] %s24
      %27 = dma.hbm_to_vmem [thread:$0]  %s1, 512, %s25, [#allocation5]
    $region9: #{tpu_custom_call.1} parent=1 // pred_fallthru
      _
    // Predicated region
    $region10: #{tpu_custom_call.1} parent=1 // pred_check
      _
    $region11: #{tpu_custom_call.1} parent=1 // pred_check_branch
      %29 = sbr.rel (0) target = $region13
    $region12: #{tpu_custom_call.1} parent=1 // pred_region
      %s31 = ssub.s32 2560, 2560
      %32 = vsyncadd [#allocation8], %s31
      %s33 = sshll.u32 [#allocation7], 4
      %s34 = int_to_ptr.vmem [resolvable:$true] %s33
      %39 = dma.hbm_to_vmem [thread:$0]  %s2, 2560, %s34, [#allocation8], 64, 64, 4
    $region13: #{tpu_custom_call.1} parent=1 // pred_fallthru
      _
    // Predicated region
    $region14: #{tpu_custom_call.1} parent=1 // pred_check
      _
    $region15: #{tpu_custom_call.1} parent=1 // pred_check_branch
      %41 = sbr.rel (0) target = $region17
    $region16: #{tpu_custom_call.1} parent=1 // pred_region
      %s43 = ssub.s32 256, 256
      %44 = vsyncadd [#allocation8], %s43
      %s45 = sshll.u32 [#allocation9], 4
      %s46 = int_to_ptr.vmem [resolvable:$true] %s45
      %51 = dma.hbm_to_vmem [thread:$0]  %s3, 256, %s46, [#allocation8], 64, 64, 4
    $region17: #{tpu_custom_call.1} parent=1 // pred_fallthru
      _
    // Predicated region
    $region18: #{tpu_custom_call.1} parent=1 // pred_check
      _
    $region19: #{tpu_custom_call.1} parent=1 // pred_check_branch
      %53 = sbr.rel (0) target = $region21
    $region20: #{tpu_custom_call.1} parent=1 // pred_region
      _
    $region21: #{tpu_custom_call.1} parent=1 // pred_fallthru
      _
    // Predicated region
    $region22: #{tpu_custom_call.1} parent=1 // pred_check
      _
    $region23: #{tpu_custom_call.1} parent=1 // pred_check_branch
      %55 = sbr.rel (0) target = $region25
    $region24: #{tpu_custom_call.1} parent=1 // pred_region
      _
    $region25: #{tpu_custom_call.1} parent=1 // pred_fallthru
      _
    // Predicated region
    $region26: #{tpu_custom_call.1} parent=1 // pred_check
      _
    $region27: #{tpu_custom_call.1} parent=1 // pred_check_branch
      %57 = sbr.rel (0) target = $region29
    $region28: #{tpu_custom_call.1} parent=1 // pred_region
      %58 = dma.done [#allocation5], 512
    $region29: #{tpu_custom_call.1} parent=1 // pred_fallthru
      _
    // Predicated region
    $region30: #{tpu_custom_call.1} parent=1 // pred_check
      _
    $region31: #{tpu_custom_call.1} parent=1 // pred_check_branch
      %60 = sbr.rel (0) target = $region33
    $region32: #{tpu_custom_call.1} parent=1 // pred_region
      %61 = dma.done [#allocation8], 2560
    $region33: #{tpu_custom_call.1} parent=1 // pred_fallthru
      _
    // Predicated region
    $region34: #{tpu_custom_call.1} parent=1 // pred_check
      _
    $region35: #{tpu_custom_call.1} parent=1 // pred_check_branch
      %63 = sbr.rel (0) target = $region37
    $region36: #{tpu_custom_call.1} parent=1 // pred_region
      %64 = dma.done [#allocation8], 256
    $region37: #{tpu_custom_call.1} parent=1 // pred_fallthru
      _
    %v66 = vld [vmem:[%s4] sm:$0xff]
    %v67 = vld [vmem:[%s4 + $0x8] sm:$0xff]
    %v68 = vld [vmem:[%s4 + $0x10] sm:$0xff]
    %v69 = vld [vmem:[%s4 + $0x18] sm:$0xff]
    %71 = vset.pattern.permute.xlu0 0
    %72 = vperm.xlu0 %71, %v66
    %v73 = vpop.permute.xlu0 %72
    %76 = vset.pattern.permute.xlu0 0
    %77 = vperm.xlu0 %76, %v67
    %v78 = vpop.permute.xlu0 %77
    %81 = vset.pattern.permute.xlu0 0
    %82 = vperm.xlu0 %81, %v68
    %v83 = vpop.permute.xlu0 %82
    %86 = vset.pattern.permute.xlu0 0
    %87 = vperm.xlu0 %86, %v69
    %v88 = vpop.permute.xlu0 %87
    %v90 = vld [vmem:[#allocation3] sm:$0x1]
    %v91 = vld [vmem:[%s0] sm:$0xff]
    %v92 = vld [vmem:[%s0 + $0x8] sm:$0xff]
    %v93 = vld [vmem:[%s0 + $0x10] sm:$0xff]
    %v94 = vld [vmem:[%s0 + $0x18] sm:$0xff]
    %v95 = vld [vmem:[#allocation4] sm:$0xff]
    %v96 = vld [vmem:[#allocation4 + $0x8] sm:$0xff]
    %v97 = vld [vmem:[#allocation4 + $0x10] sm:$0xff]
    %v98 = vld [vmem:[#allocation4 + $0x18] sm:$0xff]
    %v99 = vadd.f32 %v95, 0.1
    %v100 = vadd.f32 %v96, 0.1
    %v101 = vadd.f32 %v97, 0.1
    %v102 = vadd.f32 %v98, 0.1
    %v103 = vrcp.pop %v99
    %v104 = vrcp.pop %v100
    %v105 = vrcp.pop %v101
    %v106 = vrcp.pop %v102
    %v107 = vmul.f32 %v91, %v103
    %v108 = vmul.f32 %v92, %v104
    %v109 = vmul.f32 %v93, %v105
    %v110 = vmul.f32 %v94, %v106
    %v111 = vadd.f32 %v91, 0.1
    %v112 = vadd.f32 %v92, 0.1
    %v113 = vadd.f32 %v93, 0.1
    %v114 = vadd.f32 %v94, 0.1
    %v115 = vrcp.pop %v111
    %v116 = vrcp.pop %v112
    %v117 = vrcp.pop %v113
    %v118 = vrcp.pop %v114
    %v119 = vmul.f32 %v95, %v115
    %v120 = vmul.f32 %v96, %v116
    %v121 = vmul.f32 %v97, %v117
    %v122 = vmul.f32 %v98, %v118
    %v123 = vpack.c.bf16 %v95, %v91
    %v124 = vpack.c.bf16 %v96, %v92
    %v125 = vpack.c.bf16 %v97, %v93
    %v126 = vpack.c.bf16 %v98, %v94
    %v127 = vpack.c.bf16 %v119, %v107
    %v128 = vpack.c.bf16 %v120, %v108
    %v129 = vpack.c.bf16 %v121, %v109
    %v130 = vpack.c.bf16 %v122, %v110
    %v131 = vpack.c.bf16 1.0, 1.0
    %v132 = vld [vmem:[#allocation7] sm:$0xf]
    %v133 = vld [vmem:[#allocation7 + $0x4] sm:$0xf]
    %v134 = vld [vmem:[#allocation7 + $0x8] sm:$0xf]
    %v135 = vld [vmem:[#allocation7 + $0xc] sm:$0xf]
    %v136 = vld [vmem:[#allocation7 + $0x10] sm:$0xf]
    %v142 = vunpack.c.l.b16 %v132
    %v143 = vunpack.c.l.b16 %v133
    %v144 = vunpack.c.l.b16 %v134
    %v145 = vunpack.c.l.b16 %v135
    %v146 = vunpack.c.l.b16 %v136
    %v147 = vpack.c.b16 %v143, %v142
    %v148 = vpack.c.b16 %v145, %v144
    %v149 = vpack.c.b16 %v146, %v146
    %vm150 = vcmask 326656
    %v152 = vsel %vm150, %v147, 0
    %v155 = vsel %vm150, %v148, 0
    %v158 = vsel %vm150, %v149, 0
    %vm160 = vcmask 1043456
    %v162 = vsel %vm160, %v131, 0
    %164 = vmatprep.subr.bf16.mxu0 0
    %165 = vmatpush1.bf16.msra.mxu0 0
    %166 = vmatprep.subr.bf16.mxu0 0
    %167 = vmatpush1.bf16.msra.mxu0 0
    %168 = vmatprep.subr.bf16.mxu0 0
    %169 = vmatpush1.bf16.msra.mxu0 0
    %170 = vmatprep.subr.bf16.mxu0 0
    %171 = vmatpush1.bf16.msra.mxu0 0
    %172 = vmatprep.subr.bf16.mxu0 0
    %173 = vmatpush1.bf16.msra.mxu0 0
    %174 = vmatprep.subr.bf16.mxu0 %v162
    %175 = vmatpush1.bf16.msra.mxu0 %v162
    %176 = vmatprep.subr.bf16.mxu0 %v128
    %177 = vmatpush1.bf16.msra.mxu0 %v127
    %178 = vmatprep.subr.bf16.mxu0 %v124
    %179 = vmatpush1.bf16.msra.mxu0 %v123
    %180 = vmatprep.subr.bf16.mxu0 0
    %181 = vmatpush2.bf16.msra.mxu0 0
    %182 = vmatprep.subr.bf16.mxu0 0
    %183 = vmatpush2.bf16.msra.mxu0 0
    %184 = vmatprep.subr.bf16.mxu0 0
    %185 = vmatpush2.bf16.msra.mxu0 0
    %186 = vmatprep.subr.bf16.mxu0 0
    %187 = vmatpush2.bf16.msra.mxu0 0
    %188 = vmatprep.subr.bf16.mxu0 0
    %189 = vmatpush2.bf16.msra.mxu0 0
    %190 = vmatprep.subr.bf16.mxu0 0
    %191 = vmatpush2.bf16.msra.mxu0 0
    %192 = vmatprep.subr.bf16.mxu0 0
    %193 = vmatpush2.bf16.msra.mxu0 0
    %194 = vmatprep.subr.bf16.mxu0 0
    %195 = vmatpush2.bf16.msra.mxu0 0
    %196 = vmatprep.mubr.bf16.mxu0 0
    %197 = vmatmul.mubr.bf16.gmra.mxu0 %v152
    %v198 = vpop.f32.mrf.mxu0
    %v199 = vadd.f32 0.0, %v198
    %v200 = vpop.f32.mrf.mxu0
    %v201 = vadd.f32 0.0, %v200
    %v202 = vpop.f32.mrf.mxu0
    %v203 = vadd.f32 0.0, %v202
    %v204 = vpop.f32.mrf.mxu0
    %v205 = vadd.f32 0.0, %v204
    %206 = vmatprep.mubr.bf16.mxu0 0
    %207 = vmatmul.mubr.bf16.gmra.mxu0 %v155
    %v208 = vpop.f32.mrf.mxu0
    %v209 = vadd.f32 0.0, %v208
    %v210 = vpop.f32.mrf.mxu0
    %v211 = vadd.f32 0.0, %v210
    %v212 = vpop.f32.mrf.mxu0
    %v213 = vadd.f32 0.0, %v212
    %v214 = vpop.f32.mrf.mxu0
    %v215 = vadd.f32 0.0, %v214
    %216 = vmatprep.mubr.bf16.mxu0 0
    %217 = vmatmul.mubr.bf16.gmra.mxu0 %v158
    %v218 = vpop.f32.mrf.mxu0
    %v219 = vadd.f32 0.0, %v218
    %v220 = vpop.f32.mrf.mxu0
    %v221 = vadd.f32 0.0, %v220
    %v222 = vpop.f32.mrf.mxu0
    %v223 = vpop.f32.mrf.mxu0
    %224 = vdwg.mxu0
    %225 = vmatprep.subr.bf16.mxu0 0
    %226 = vmatpush1.bf16.msra.mxu0 0
    %227 = vmatprep.subr.bf16.mxu0 0
    %228 = vmatpush1.bf16.msra.mxu0 0
    %229 = vmatprep.subr.bf16.mxu0 0
    %230 = vmatpush1.bf16.msra.mxu0 0
    %231 = vmatprep.subr.bf16.mxu0 0
    %232 = vmatpush1.bf16.msra.mxu0 0
    %233 = vmatprep.subr.bf16.mxu0 0
    %234 = vmatpush1.bf16.msra.mxu0 0
    %235 = vmatprep.subr.bf16.mxu0 %v162
    %236 = vmatpush1.bf16.msra.mxu0 %v162
    %237 = vmatprep.subr.bf16.mxu0 %v130
    %238 = vmatpush1.bf16.msra.mxu0 %v129
    %239 = vmatprep.subr.bf16.mxu0 %v126
    %240 = vmatpush1.bf16.msra.mxu0 %v125
    %241 = vmatprep.subr.bf16.mxu0 0
    %242 = vmatpush2.bf16.msra.mxu0 0
    %243 = vmatprep.subr.bf16.mxu0 0
    %244 = vmatpush2.bf16.msra.mxu0 0
    %245 = vmatprep.subr.bf16.mxu0 0
    %246 = vmatpush2.bf16.msra.mxu0 0
    %247 = vmatprep.subr.bf16.mxu0 0
    %248 = vmatpush2.bf16.msra.mxu0 0
    %249 = vmatprep.subr.bf16.mxu0 0
    %250 = vmatpush2.bf16.msra.mxu0 0
    %251 = vmatprep.subr.bf16.mxu0 0
    %252 = vmatpush2.bf16.msra.mxu0 0
    %253 = vmatprep.subr.bf16.mxu0 0
    %254 = vmatpush2.bf16.msra.mxu0 0
    %255 = vmatprep.subr.bf16.mxu0 0
    %256 = vmatpush2.bf16.msra.mxu0 0
    %257 = vmatprep.mubr.bf16.mxu0 0
    %258 = vmatmul.mubr.bf16.gmra.mxu0 %v152
    %v259 = vpop.f32.mrf.mxu0
    %v260 = vadd.f32 0.0, %v259
    %v261 = vpop.f32.mrf.mxu0
    %v262 = vadd.f32 0.0, %v261
    %v263 = vpop.f32.mrf.mxu0
    %v264 = vadd.f32 0.0, %v263
    %v265 = vpop.f32.mrf.mxu0
    %v266 = vadd.f32 0.0, %v265
    %267 = vmatprep.mubr.bf16.mxu0 0
    %268 = vmatmul.mubr.bf16.gmra.mxu0 %v155
    %v269 = vpop.f32.mrf.mxu0
    %v270 = vadd.f32 0.0, %v269
    %v271 = vpop.f32.mrf.mxu0
    %v272 = vadd.f32 0.0, %v271
    %v273 = vpop.f32.mrf.mxu0
    %v274 = vadd.f32 0.0, %v273
    %v275 = vpop.f32.mrf.mxu0
    %v276 = vadd.f32 0.0, %v275
    %277 = vmatprep.mubr.bf16.mxu0 0
    %278 = vmatmul.mubr.bf16.gmra.mxu0 %v158
    %v279 = vpop.f32.mrf.mxu0
    %v280 = vadd.f32 0.0, %v279
    %v281 = vpop.f32.mrf.mxu0
    %v282 = vadd.f32 0.0, %v281
    %v283 = vpop.f32.mrf.mxu0
    %v284 = vpop.f32.mrf.mxu0
    %285 = vdwg.mxu0
    %v286 = vmul.f32 %v199, 0.2
    %v287 = vmul.f32 %v201, 0.2
    %v288 = vmul.f32 %v260, 0.2
    %v289 = vmul.f32 %v262, 0.2
    %v290 = vmul.f32 %v203, 0.2
    %v291 = vmul.f32 %v205, 0.2
    %v292 = vmul.f32 %v264, 0.2
    %v293 = vmul.f32 %v266, 0.2
    %v294 = vmul.f32 %v209, 0.2
    %v295 = vmul.f32 %v211, 0.2
    %v296 = vmul.f32 %v270, 0.2
    %v297 = vmul.f32 %v272, 0.2
    %v298 = vmul.f32 %v213, 0.2
    %v299 = vmul.f32 %v215, 0.2
    %v300 = vmul.f32 %v274, 0.2
    %v301 = vmul.f32 %v276, 0.2
    %v302 = vmul.f32 %v219, 0.2
    %v303 = vmul.f32 %v221, 0.2
    %v304 = vmul.f32 %v280, 0.2
    %v305 = vmul.f32 %v282, 0.2
    %v306 = vmax.f32 %v199, %v286
    %v307 = vmax.f32 %v201, %v287
    %v308 = vmax.f32 %v260, %v288
    %v309 = vmax.f32 %v262, %v289
    %v310 = vmax.f32 %v203, %v290
    %v311 = vmax.f32 %v205, %v291
    %v312 = vmax.f32 %v264, %v292
    %v313 = vmax.f32 %v266, %v293
    %v314 = vmax.f32 %v209, %v294
    %v315 = vmax.f32 %v211, %v295
    %v316 = vmax.f32 %v270, %v296
    %v317 = vmax.f32 %v272, %v297
    %v318 = vmax.f32 %v213, %v298
    %v319 = vmax.f32 %v215, %v299
    %v320 = vmax.f32 %v274, %v300
    %v321 = vmax.f32 %v276, %v301
    %v322 = vmax.f32 %v219, %v302
    %v323 = vmax.f32 %v221, %v303
    %v324 = vmax.f32 %v280, %v304
    %v325 = vmax.f32 %v282, %v305
    %v326 = vld [vmem:[#allocation9] sm:$0xf]
    %v327 = vld [vmem:[#allocation9 + $0x4] sm:$0xf]
    %v328 = vld [vmem:[#allocation9 + $0x8] sm:$0xf]
    %v329 = vld [vmem:[#allocation9 + $0xc] sm:$0xf]
    %v330 = vpack.c.bf16 %v310, %v306
    %v331 = vpack.c.bf16 %v311, %v307
    %v332 = vpack.c.bf16 %v312, %v308
    %v333 = vpack.c.bf16 %v313, %v309
    %v334 = vpack.c.bf16 %v318, %v314
    %v335 = vpack.c.bf16 %v319, %v315
    %v336 = vpack.c.bf16 %v320, %v316
    %v337 = vpack.c.bf16 %v321, %v317
    %v338 = vpack.c.bf16 %v322, %v322
    %v339 = vpack.c.bf16 %v323, %v323
    %v340 = vpack.c.bf16 %v324, %v324
    %v341 = vpack.c.bf16 %v325, %v325
    %v346 = vunpack.c.l.b16 %v326
    %v347 = vunpack.c.l.b16 %v327
    %v348 = vunpack.c.l.b16 %v328
    %v349 = vunpack.c.l.b16 %v329
    %v350 = vpack.c.b16 %v347, %v346
    %v351 = vpack.c.b16 %v349, %v348
    %v353 = vsel %vm150, %v350, 0
    %v356 = vsel %vm150, %v351, 0
    %v359 = vsel %vm160, %v338, 0
    %v362 = vsel %vm160, %v339, 0
    %v365 = vsel %vm160, %v340, 0
    %v368 = vsel %vm160, %v341, 0
    %370 = vmatprep.subr.bf16.mxu0 0
    %371 = vmatpush1.bf16.msra.mxu0 0
    %372 = vmatprep.subr.bf16.mxu0 0
    %373 = vmatpush1.bf16.msra.mxu0 0
    %374 = vmatprep.subr.bf16.mxu0 0
    %375 = vmatpush1.bf16.msra.mxu0 0
    %376 = vmatprep.subr.bf16.mxu0 0
    %377 = vmatpush1.bf16.msra.mxu0 0
    %378 = vmatprep.subr.bf16.mxu0 0
    %379 = vmatpush1.bf16.msra.mxu0 0
    %380 = vmatprep.subr.bf16.mxu0 %v362
    %381 = vmatpush1.bf16.msra.mxu0 %v359
    %382 = vmatprep.subr.bf16.mxu0 %v335
    %383 = vmatpush1.bf16.msra.mxu0 %v334
    %384 = vmatprep.subr.bf16.mxu0 %v331
    %385 = vmatpush1.bf16.msra.mxu0 %v330
    %386 = vmatprep.subr.bf16.mxu0 0
    %387 = vmatpush2.bf16.msra.mxu0 0
    %388 = vmatprep.subr.bf16.mxu0 0
    %389 = vmatpush2.bf16.msra.mxu0 0
    %390 = vmatprep.subr.bf16.mxu0 0
    %391 = vmatpush2.bf16.msra.mxu0 0
    %392 = vmatprep.subr.bf16.mxu0 0
    %393 = vmatpush2.bf16.msra.mxu0 0
    %394 = vmatprep.subr.bf16.mxu0 0
    %395 = vmatpush2.bf16.msra.mxu0 0
    %396 = vmatprep.subr.bf16.mxu0 0
    %397 = vmatpush2.bf16.msra.mxu0 0
    %398 = vmatprep.subr.bf16.mxu0 0
    %399 = vmatpush2.bf16.msra.mxu0 0
    %400 = vmatprep.subr.bf16.mxu0 0
    %401 = vmatpush2.bf16.msra.mxu0 0
    %402 = vmatprep.mubr.bf16.mxu0 0
    %403 = vmatmul.mubr.bf16.gmra.mxu0 %v353
    %v404 = vpop.f32.mrf.mxu0
    %v405 = vadd.f32 0.0, %v404
    %v406 = vpop.f32.mrf.mxu0
    %v407 = vadd.f32 0.0, %v406
    %v408 = vpop.f32.mrf.mxu0
    %v409 = vadd.f32 0.0, %v408
    %v410 = vpop.f32.mrf.mxu0
    %v411 = vadd.f32 0.0, %v410
    %412 = vmatprep.mubr.bf16.mxu0 0
    %413 = vmatmul.mubr.bf16.gmra.mxu0 %v356
    %v414 = vpop.f32.mrf.mxu0
    %v415 = vadd.f32 0.0, %v414
    %v416 = vpop.f32.mrf.mxu0
    %v417 = vadd.f32 0.0, %v416
    %v418 = vpop.f32.mrf.mxu0
    %v419 = vadd.f32 0.0, %v418
    %v420 = vpop.f32.mrf.mxu0
    %v421 = vadd.f32 0.0, %v420
    %422 = vdwg.mxu0
    %423 = vmatprep.subr.bf16.mxu0 0
    %424 = vmatpush1.bf16.msra.mxu0 0
    %425 = vmatprep.subr.bf16.mxu0 0
    %426 = vmatpush1.bf16.msra.mxu0 0
    %427 = vmatprep.subr.bf16.mxu0 0
    %428 = vmatpush1.bf16.msra.mxu0 0
    %429 = vmatprep.subr.bf16.mxu0 0
    %430 = vmatpush1.bf16.msra.mxu0 0
    %431 = vmatprep.subr.bf16.mxu0 0
    %432 = vmatpush1.bf16.msra.mxu0 0
    %433 = vmatprep.subr.bf16.mxu0 %v368
    %434 = vmatpush1.bf16.msra.mxu0 %v365
    %435 = vmatprep.subr.bf16.mxu0 %v337
    %436 = vmatpush1.bf16.msra.mxu0 %v336
    %437 = vmatprep.subr.bf16.mxu0 %v333
    %438 = vmatpush1.bf16.msra.mxu0 %v332
    %439 = vmatprep.subr.bf16.mxu0 0
    %440 = vmatpush2.bf16.msra.mxu0 0
    %441 = vmatprep.subr.bf16.mxu0 0
    %442 = vmatpush2.bf16.msra.mxu0 0
    %443 = vmatprep.subr.bf16.mxu0 0
    %444 = vmatpush2.bf16.msra.mxu0 0
    %445 = vmatprep.subr.bf16.mxu0 0
    %446 = vmatpush2.bf16.msra.mxu0 0
    %447 = vmatprep.subr.bf16.mxu0 0
    %448 = vmatpush2.bf16.msra.mxu0 0
    %449 = vmatprep.subr.bf16.mxu0 0
    %450 = vmatpush2.bf16.msra.mxu0 0
    %451 = vmatprep.subr.bf16.mxu0 0
    %452 = vmatpush2.bf16.msra.mxu0 0
    %453 = vmatprep.subr.bf16.mxu0 0
    %454 = vmatpush2.bf16.msra.mxu0 0
    %455 = vmatprep.mubr.bf16.mxu0 0
    %456 = vmatmul.mubr.bf16.gmra.mxu0 %v353
    %v457 = vpop.f32.mrf.mxu0
    %v458 = vadd.f32 0.0, %v457
    %v459 = vpop.f32.mrf.mxu0
    %v460 = vadd.f32 0.0, %v459
    %v461 = vpop.f32.mrf.mxu0
    %v462 = vadd.f32 0.0, %v461
    %v463 = vpop.f32.mrf.mxu0
    %v464 = vadd.f32 0.0, %v463
    %465 = vmatprep.mubr.bf16.mxu0 0
    %466 = vmatmul.mubr.bf16.gmra.mxu0 %v356
    %v467 = vpop.f32.mrf.mxu0
    %v468 = vadd.f32 0.0, %v467
    %v469 = vpop.f32.mrf.mxu0
    %v470 = vadd.f32 0.0, %v469
    %v471 = vpop.f32.mrf.mxu0
    %v472 = vadd.f32 0.0, %v471
    %v473 = vpop.f32.mrf.mxu0
    %v474 = vadd.f32 0.0, %v473
    %475 = vdwg.mxu0
    %v476 = vmul.f32 %v405, 0.2
    %v477 = vmul.f32 %v407, 0.2
    %v478 = vmul.f32 %v458, 0.2
    %v479 = vmul.f32 %v460, 0.2
    %v480 = vmul.f32 %v409, 0.2
    %v481 = vmul.f32 %v411, 0.2
    %v482 = vmul.f32 %v462, 0.2
    %v483 = vmul.f32 %v464, 0.2
    %v484 = vmul.f32 %v415, 0.2
    %v485 = vmul.f32 %v417, 0.2
    %v486 = vmul.f32 %v468, 0.2
    %v487 = vmul.f32 %v470, 0.2
    %v488 = vmul.f32 %v419, 0.2
    %v489 = vmul.f32 %v421, 0.2
    %v490 = vmul.f32 %v472, 0.2
    %v491 = vmul.f32 %v474, 0.2
    %v492 = vmax.f32 %v405, %v476
    %v493 = vmax.f32 %v407, %v477
    %v494 = vmax.f32 %v458, %v478
    %v495 = vmax.f32 %v460, %v479
    %v496 = vmax.f32 %v409, %v480
    %v497 = vmax.f32 %v411, %v481
    %v498 = vmax.f32 %v462, %v482
    %v499 = vmax.f32 %v464, %v483
    %v500 = vmax.f32 %v415, %v484
    %v501 = vmax.f32 %v417, %v485
    %v502 = vmax.f32 %v468, %v486
    %v503 = vmax.f32 %v470, %v487
    %v504 = vmax.f32 %v419, %v488
    %v505 = vmax.f32 %v421, %v489
    %v506 = vmax.f32 %v472, %v490
    %v507 = vmax.f32 %v474, %v491
    %v508 = vmul.f32 %v492, %v73
    %v509 = vmul.f32 %v493, %v73
    %v510 = vmul.f32 %v494, %v73
    %v511 = vmul.f32 %v495, %v73
    %v512 = vmul.f32 %v496, %v78
    %v513 = vmul.f32 %v497, %v78
    %v514 = vmul.f32 %v498, %v78
    %v515 = vmul.f32 %v499, %v78
    %v516 = vmul.f32 %v500, %v83
    %v517 = vmul.f32 %v501, %v83
    %v518 = vmul.f32 %v502, %v83
    %v519 = vmul.f32 %v503, %v83
    %v520 = vmul.f32 %v504, %v88
    %v521 = vmul.f32 %v505, %v88
    %v522 = vmul.f32 %v506, %v88
    %v523 = vmul.f32 %v507, %v88
    %v524 = vadd.f32 %v508, %v512
    %v525 = vadd.f32 %v524, %v516
    %v526 = vadd.f32 %v525, %v520
    %v527 = vrot.slane %v526, 4
    %v528 = vadd.f32 %v526, %v527
    %v529 = vrot.slane %v528, 2
    %v530 = vadd.f32 %v528, %v529
    %v531 = vrot.slane %v530, 1
    %v532 = vadd.f32 %v530, %v531
    %v533 = vadd.f32 %v509, %v513
    %v534 = vadd.f32 %v533, %v517
    %v535 = vadd.f32 %v534, %v521
    %v536 = vrot.slane %v535, 4
    %v537 = vadd.f32 %v535, %v536
    %v538 = vrot.slane %v537, 2
    %v539 = vadd.f32 %v537, %v538
    %v540 = vrot.slane %v539, 1
    %v541 = vadd.f32 %v539, %v540
    %v542 = vadd.f32 %v510, %v514
    %v543 = vadd.f32 %v542, %v518
    %v544 = vadd.f32 %v543, %v522
    %v545 = vrot.slane %v544, 4
    %v546 = vadd.f32 %v544, %v545
    %v547 = vrot.slane %v546, 2
    %v548 = vadd.f32 %v546, %v547
    %v549 = vrot.slane %v548, 1
    %v550 = vadd.f32 %v548, %v549
    %v551 = vadd.f32 %v511, %v515
    %v552 = vadd.f32 %v551, %v519
    %v553 = vadd.f32 %v552, %v523
    %v554 = vrot.slane %v553, 4
    %v555 = vadd.f32 %v553, %v554
    %v556 = vrot.slane %v555, 2
    %v557 = vadd.f32 %v555, %v556
    %v558 = vrot.slane %v557, 1
    %v559 = vadd.f32 %v557, %v558
    %v564 = vcombine.low %v532, %v541
    %v565 = vcombine.low %v550, %v559
    %v567 = vunpack.c.l.s4 1966171168
    %v568 = vunpack.c.0.s8 %v567
    %v569 = vlaneseq
    %v570 = vshrl.u32 %v569, 7
    %v571 = vsub.s32 %v568, %v570
    %v572 = vrot.slane %v564, %v571
    %v574 = vunpack.c.l.s4 1966171168
    %v575 = vunpack.c.0.s8 %v574
    %v576 = vlaneseq
    %v577 = vshrl.u32 %v576, 7
    %v578 = vsub.s32 %v575, %v577
    %v579 = vrot.slane %v565, %v578
    %v580 = vcombine.low %v572, %v579
    %v582 = vunpack.c.l.s4 1966171168
    %v583 = vunpack.c.0.s8 %v582
    %v584 = vlaneseq
    %v585 = vshrl.u32 %v584, 7
    %v586 = vsub.s32 %v583, %v585
    %v587 = vrot.slane %v580, %v586
    %v589 = vlaneseq
    %vm590 = vcmp.ge.s32.totalorder %v589, 0
    %vm591 = vcmp.lt.s32.totalorder %v589, 512
    %vm592 = vmand %vm590, %vm591
    %593 = vst.msk [vmem:[#allocation2] ss:$8 sm:$0xf] %vm592, %v587
    %594 = vst.msk [vmem:[#allocation2] ss:$8 sm:$0x0] %vm592, %v587
    %s595 = scalar_lea.vmem [#allocation7], 20
    %v596 = vld [vmem:[%s595] sm:$0xf]
    %v597 = vld [vmem:[%s595 + $0x4] sm:$0xf]
    %v598 = vld [vmem:[%s595 + $0x8] sm:$0xf]
    %v599 = vld [vmem:[%s595 + $0xc] sm:$0xf]
    %v600 = vld [vmem:[%s595 + $0x10] sm:$0xf]
    %v606 = vunpack.c.l.b16 %v596
    %v607 = vunpack.c.l.b16 %v597
    %v608 = vunpack.c.l.b16 %v598
    %v609 = vunpack.c.l.b16 %v599
    %v610 = vunpack.c.l.b16 %v600
    %v611 = vpack.c.b16 %v607, %v606
    %v612 = vpack.c.b16 %v609, %v608
    %v613 = vpack.c.b16 %v610, %v610
    %v615 = vsel %vm150, %v611, 0
    %v618 = vsel %vm150, %v612, 0
    %v621 = vsel %vm150, %v613, 0
    %623 = vmatprep.subr.bf16.mxu0 0
    %624 = vmatpush1.bf16.msra.mxu0 0
    %625 = vmatprep.subr.bf16.mxu0 0
    %626 = vmatpush1.bf16.msra.mxu0 0
    %627 = vmatprep.subr.bf16.mxu0 0
    %628 = vmatpush1.bf16.msra.mxu0 0
    %629 = vmatprep.subr.bf16.mxu0 0
    %630 = vmatpush1.bf16.msra.mxu0 0
    %631 = vmatprep.subr.bf16.mxu0 0
    %632 = vmatpush1.bf16.msra.mxu0 0
    %633 = vmatprep.subr.bf16.mxu0 %v162
    %634 = vmatpush1.bf16.msra.mxu0 %v162
    %635 = vmatprep.subr.bf16.mxu0 %v128
    %636 = vmatpush1.bf16.msra.mxu0 %v127
    %637 = vmatprep.subr.bf16.mxu0 %v124
    %638 = vmatpush1.bf16.msra.mxu0 %v123
    %639 = vmatprep.subr.bf16.mxu0 0
    %640 = vmatpush2.bf16.msra.mxu0 0
    %641 = vmatprep.subr.bf16.mxu0 0
    %642 = vmatpush2.bf16.msra.mxu0 0
    %643 = vmatprep.subr.bf16.mxu0 0
    %644 = vmatpush2.bf16.msra.mxu0 0
    %645 = vmatprep.subr.bf16.mxu0 0
    %646 = vmatpush2.bf16.msra.mxu0 0
    %647 = vmatprep.subr.bf16.mxu0 0
    %648 = vmatpush2.bf16.msra.mxu0 0
    %649 = vmatprep.subr.bf16.mxu0 0
    %650 = vmatpush2.bf16.msra.mxu0 0
    %651 = vmatprep.subr.bf16.mxu0 0
    %652 = vmatpush2.bf16.msra.mxu0 0
    %653 = vmatprep.subr.bf16.mxu0 0
    %654 = vmatpush2.bf16.msra.mxu0 0
    %655 = vmatprep.mubr.bf16.mxu0 0
    %656 = vmatmul.mubr.bf16.gmra.mxu0 %v615
    %v657 = vpop.f32.mrf.mxu0
    %v658 = vadd.f32 0.0, %v657
    %v659 = vpop.f32.mrf.mxu0
    %v660 = vadd.f32 0.0, %v659
    %v661 = vpop.f32.mrf.mxu0
    %v662 = vadd.f32 0.0, %v661
    %v663 = vpop.f32.mrf.mxu0
    %v664 = vadd.f32 0.0, %v663
    %665 = vmatprep.mubr.bf16.mxu0 0
    %666 = vmatmul.mubr.bf16.gmra.mxu0 %v618
    %v667 = vpop.f32.mrf.mxu0
    %v668 = vadd.f32 0.0, %v667
    %v669 = vpop.f32.mrf.mxu0
    %v670 = vadd.f32 0.0, %v669
    %v671 = vpop.f32.mrf.mxu0
    %v672 = vadd.f32 0.0, %v671
    %v673 = vpop.f32.mrf.mxu0
    %v674 = vadd.f32 0.0, %v673
    %675 = vmatprep.mubr.bf16.mxu0 0
    %676 = vmatmul.mubr.bf16.gmra.mxu0 %v621
    %v677 = vpop.f32.mrf.mxu0
    %v678 = vadd.f32 0.0, %v677
    %v679 = vpop.f32.mrf.mxu0
    %v680 = vadd.f32 0.0, %v679
    %v681 = vpop.f32.mrf.mxu0
    %v682 = vpop.f32.mrf.mxu0
    %683 = vdwg.mxu0
    %684 = vmatprep.subr.bf16.mxu0 0
    %685 = vmatpush1.bf16.msra.mxu0 0
    %686 = vmatprep.subr.bf16.mxu0 0
    %687 = vmatpush1.bf16.msra.mxu0 0
    %688 = vmatprep.subr.bf16.mxu0 0
    %689 = vmatpush1.bf16.msra.mxu0 0
    %690 = vmatprep.subr.bf16.mxu0 0
    %691 = vmatpush1.bf16.msra.mxu0 0
    %692 = vmatprep.subr.bf16.mxu0 0
    %693 = vmatpush1.bf16.msra.mxu0 0
    %694 = vmatprep.subr.bf16.mxu0 %v162
    %695 = vmatpush1.bf16.msra.mxu0 %v162
    %696 = vmatprep.subr.bf16.mxu0 %v130
    %697 = vmatpush1.bf16.msra.mxu0 %v129
    %698 = vmatprep.subr.bf16.mxu0 %v126
    %699 = vmatpush1.bf16.msra.mxu0 %v125
    %700 = vmatprep.subr.bf16.mxu0 0
    %701 = vmatpush2.bf16.msra.mxu0 0
    %702 = vmatprep.subr.bf16.mxu0 0
    %703 = vmatpush2.bf16.msra.mxu0 0
    %704 = vmatprep.subr.bf16.mxu0 0
    %705 = vmatpush2.bf16.msra.mxu0 0
    %706 = vmatprep.subr.bf16.mxu0 0
    %707 = vmatpush2.bf16.msra.mxu0 0
    %708 = vmatprep.subr.bf16.mxu0 0
    %709 = vmatpush2.bf16.msra.mxu0 0
    %710 = vmatprep.subr.bf16.mxu0 0
    %711 = vmatpush2.bf16.msra.mxu0 0
    %712 = vmatprep.subr.bf16.mxu0 0
    %713 = vmatpush2.bf16.msra.mxu0 0
    %714 = vmatprep.subr.bf16.mxu0 0
    %715 = vmatpush2.bf16.msra.mxu0 0
    %716 = vmatprep.mubr.bf16.mxu0 0
    %717 = vmatmul.mubr.bf16.gmra.mxu0 %v615
    %v718 = vpop.f32.mrf.mxu0
    %v719 = vadd.f32 0.0, %v718
    %v720 = vpop.f32.mrf.mxu0
    %v721 = vadd.f32 0.0, %v720
    %v722 = vpop.f32.mrf.mxu0
    %v723 = vadd.f32 0.0, %v722
    %v724 = vpop.f32.mrf.mxu0
    %v725 = vadd.f32 0.0, %v724
    %726 = vmatprep.mubr.bf16.mxu0 0
    %727 = vmatmul.mubr.bf16.gmra.mxu0 %v618
    %v728 = vpop.f32.mrf.mxu0
    %v729 = vadd.f32 0.0, %v728
    %v730 = vpop.f32.mrf.mxu0
    %v731 = vadd.f32 0.0, %v730
    %v732 = vpop.f32.mrf.mxu0
    %v733 = vadd.f32 0.0, %v732
    %v734 = vpop.f32.mrf.mxu0
    %v735 = vadd.f32 0.0, %v734
    %736 = vmatprep.mubr.bf16.mxu0 0
    %737 = vmatmul.mubr.bf16.gmra.mxu0 %v621
    %v738 = vpop.f32.mrf.mxu0
    %v739 = vadd.f32 0.0, %v738
    %v740 = vpop.f32.mrf.mxu0
    %v741 = vadd.f32 0.0, %v740
    %v742 = vpop.f32.mrf.mxu0
    %v743 = vpop.f32.mrf.mxu0
    %744 = vdwg.mxu0
    %v745 = vmul.f32 %v658, 0.2
    %v746 = vmul.f32 %v660, 0.2
    %v747 = vmul.f32 %v719, 0.2
    %v748 = vmul.f32 %v721, 0.2
    %v749 = vmul.f32 %v662, 0.2
    %v750 = vmul.f32 %v664, 0.2
    %v751 = vmul.f32 %v723, 0.2
    %v752 = vmul.f32 %v725, 0.2
    %v753 = vmul.f32 %v668, 0.2
    %v754 = vmul.f32 %v670, 0.2
    %v755 = vmul.f32 %v729, 0.2
    %v756 = vmul.f32 %v731, 0.2
    %v757 = vmul.f32 %v672, 0.2
    %v758 = vmul.f32 %v674, 0.2
    %v759 = vmul.f32 %v733, 0.2
    %v760 = vmul.f32 %v735, 0.2
    %v761 = vmul.f32 %v678, 0.2
    %v762 = vmul.f32 %v680, 0.2
    %v763 = vmul.f32 %v739, 0.2
    %v764 = vmul.f32 %v741, 0.2
    %v765 = vmax.f32 %v658, %v745
    %v766 = vmax.f32 %v660, %v746
    %v767 = vmax.f32 %v719, %v747
    %v768 = vmax.f32 %v721, %v748
    %v769 = vmax.f32 %v662, %v749
    %v770 = vmax.f32 %v664, %v750
    %v771 = vmax.f32 %v723, %v751
    %v772 = vmax.f32 %v725, %v752
    %v773 = vmax.f32 %v668, %v753
    %v774 = vmax.f32 %v670, %v754
    %v775 = vmax.f32 %v729, %v755
    %v776 = vmax.f32 %v731, %v756
    %v777 = vmax.f32 %v672, %v757
    %v778 = vmax.f32 %v674, %v758
    %v779 = vmax.f32 %v733, %v759
    %v780 = vmax.f32 %v735, %v760
    %v781 = vmax.f32 %v678, %v761
    %v782 = vmax.f32 %v680, %v762
    %v783 = vmax.f32 %v739, %v763
    %v784 = vmax.f32 %v741, %v764
    %v785 = vld [vmem:[#allocation9] sm:$0xf]
    %v786 = vld [vmem:[#allocation9 + $0x4] sm:$0xf]
    %v787 = vld [vmem:[#allocation9 + $0x8] sm:$0xf]
    %v788 = vld [vmem:[#allocation9 + $0xc] sm:$0xf]
    %v789 = vpack.c.bf16 %v769, %v765
    %v790 = vpack.c.bf16 %v770, %v766
    %v791 = vpack.c.bf16 %v771, %v767
    %v792 = vpack.c.bf16 %v772, %v768
    %v793 = vpack.c.bf16 %v777, %v773
    %v794 = vpack.c.bf16 %v778, %v774
    %v795 = vpack.c.bf16 %v779, %v775
    %v796 = vpack.c.bf16 %v780, %v776
    %v797 = vpack.c.bf16 %v781, %v781
    %v798 = vpack.c.bf16 %v782, %v782
    %v799 = vpack.c.bf16 %v783, %v783
    %v800 = vpack.c.bf16 %v784, %v784
    %v805 = vunpack.c.l.b16 %v785
    %v806 = vunpack.c.l.b16 %v786
    %v807 = vunpack.c.l.b16 %v787
    %v808 = vunpack.c.l.b16 %v788
    %v809 = vpack.c.b16 %v806, %v805
    %v810 = vpack.c.b16 %v808, %v807
    %v812 = vsel %vm150, %v809, 0
    %v815 = vsel %vm150, %v810, 0
    %v818 = vsel %vm160, %v797, 0
    %v821 = vsel %vm160, %v798, 0
    %v824 = vsel %vm160, %v799, 0
    %v827 = vsel %vm160, %v800, 0
    %829 = vmatprep.subr.bf16.mxu0 0
    %830 = vmatpush1.bf16.msra.mxu0 0
    %831 = vmatprep.subr.bf16.mxu0 0
    %832 = vmatpush1.bf16.msra.mxu0 0
    %833 = vmatprep.subr.bf16.mxu0 0
    %834 = vmatpush1.bf16.msra.mxu0 0
    %835 = vmatprep.subr.bf16.mxu0 0
    %836 = vmatpush1.bf16.msra.mxu0 0
    %837 = vmatprep.subr.bf16.mxu0 0
    %838 = vmatpush1.bf16.msra.mxu0 0
    %839 = vmatprep.subr.bf16.mxu0 %v821
    %840 = vmatpush1.bf16.msra.mxu0 %v818
    %841 = vmatprep.subr.bf16.mxu0 %v794
    %842 = vmatpush1.bf16.msra.mxu0 %v793
    %843 = vmatprep.subr.bf16.mxu0 %v790
    %844 = vmatpush1.bf16.msra.mxu0 %v789
    %845 = vmatprep.subr.bf16.mxu0 0
    %846 = vmatpush2.bf16.msra.mxu0 0
    %847 = vmatprep.subr.bf16.mxu0 0
    %848 = vmatpush2.bf16.msra.mxu0 0
    %849 = vmatprep.subr.bf16.mxu0 0
    %850 = vmatpush2.bf16.msra.mxu0 0
    %851 = vmatprep.subr.bf16.mxu0 0
    %852 = vmatpush2.bf16.msra.mxu0 0
    %853 = vmatprep.subr.bf16.mxu0 0
    %854 = vmatpush2.bf16.msra.mxu0 0
    %855 = vmatprep.subr.bf16.mxu0 0
    %856 = vmatpush2.bf16.msra.mxu0 0
    %857 = vmatprep.subr.bf16.mxu0 0
    %858 = vmatpush2.bf16.msra.mxu0 0
    %859 = vmatprep.subr.bf16.mxu0 0
    %860 = vmatpush2.bf16.msra.mxu0 0
    %861 = vmatprep.mubr.bf16.mxu0 0
    %862 = vmatmul.mubr.bf16.gmra.mxu0 %v812
    %v863 = vpop.f32.mrf.mxu0
    %v864 = vadd.f32 0.0, %v863
    %v865 = vpop.f32.mrf.mxu0
    %v866 = vadd.f32 0.0, %v865
    %v867 = vpop.f32.mrf.mxu0
    %v868 = vadd.f32 0.0, %v867
    %v869 = vpop.f32.mrf.mxu0
    %v870 = vadd.f32 0.0, %v869
    %871 = vmatprep.mubr.bf16.mxu0 0
    %872 = vmatmul.mubr.bf16.gmra.mxu0 %v815
    %v873 = vpop.f32.mrf.mxu0
    %v874 = vadd.f32 0.0, %v873
    %v875 = vpop.f32.mrf.mxu0
    %v876 = vadd.f32 0.0, %v875
    %v877 = vpop.f32.mrf.mxu0
    %v878 = vadd.f32 0.0, %v877
    %v879 = vpop.f32.mrf.mxu0
    %v880 = vadd.f32 0.0, %v879
    %881 = vdwg.mxu0
    %882 = vmatprep.subr.bf16.mxu0 0
    %883 = vmatpush1.bf16.msra.mxu0 0
    %884 = vmatprep.subr.bf16.mxu0 0
    %885 = vmatpush1.bf16.msra.mxu0 0
    %886 = vmatprep.subr.bf16.mxu0 0
    %887 = vmatpush1.bf16.msra.mxu0 0
    %888 = vmatprep.subr.bf16.mxu0 0
    %889 = vmatpush1.bf16.msra.mxu0 0
    %890 = vmatprep.subr.bf16.mxu0 0
    %891 = vmatpush1.bf16.msra.mxu0 0
    %892 = vmatprep.subr.bf16.mxu0 %v827
    %893 = vmatpush1.bf16.msra.mxu0 %v824
    %894 = vmatprep.subr.bf16.mxu0 %v796
    %895 = vmatpush1.bf16.msra.mxu0 %v795
    %896 = vmatprep.subr.bf16.mxu0 %v792
    %897 = vmatpush1.bf16.msra.mxu0 %v791
    %898 = vmatprep.subr.bf16.mxu0 0
    %899 = vmatpush2.bf16.msra.mxu0 0
    %900 = vmatprep.subr.bf16.mxu0 0
    %901 = vmatpush2.bf16.msra.mxu0 0
    %902 = vmatprep.subr.bf16.mxu0 0
    %903 = vmatpush2.bf16.msra.mxu0 0
    %904 = vmatprep.subr.bf16.mxu0 0
    %905 = vmatpush2.bf16.msra.mxu0 0
    %906 = vmatprep.subr.bf16.mxu0 0
    %907 = vmatpush2.bf16.msra.mxu0 0
    %908 = vmatprep.subr.bf16.mxu0 0
    %909 = vmatpush2.bf16.msra.mxu0 0
    %910 = vmatprep.subr.bf16.mxu0 0
    %911 = vmatpush2.bf16.msra.mxu0 0
    %912 = vmatprep.subr.bf16.mxu0 0
    %913 = vmatpush2.bf16.msra.mxu0 0
    %914 = vmatprep.mubr.bf16.mxu0 0
    %915 = vmatmul.mubr.bf16.gmra.mxu0 %v812
    %v916 = vpop.f32.mrf.mxu0
    %v917 = vadd.f32 0.0, %v916
    %v918 = vpop.f32.mrf.mxu0
    %v919 = vadd.f32 0.0, %v918
    %v920 = vpop.f32.mrf.mxu0
    %v921 = vadd.f32 0.0, %v920
    %v922 = vpop.f32.mrf.mxu0
    %v923 = vadd.f32 0.0, %v922
    %924 = vmatprep.mubr.bf16.mxu0 0
    %925 = vmatmul.mubr.bf16.gmra.mxu0 %v815
    %v926 = vpop.f32.mrf.mxu0
    %v927 = vadd.f32 0.0, %v926
    %v928 = vpop.f32.mrf.mxu0
    %v929 = vadd.f32 0.0, %v928
    %v930 = vpop.f32.mrf.mxu0
    %v931 = vadd.f32 0.0, %v930
    %v932 = vpop.f32.mrf.mxu0
    %v933 = vadd.f32 0.0, %v932
    %934 = vdwg.mxu0
    %v935 = vmul.f32 %v864, 0.2
    %v936 = vmul.f32 %v866, 0.2
    %v937 = vmul.f32 %v917, 0.2
    %v938 = vmul.f32 %v919, 0.2
    %v939 = vmul.f32 %v868, 0.2
    %v940 = vmul.f32 %v870, 0.2
    %v941 = vmul.f32 %v921, 0.2
    %v942 = vmul.f32 %v923, 0.2
    %v943 = vmul.f32 %v874, 0.2
    %v944 = vmul.f32 %v876, 0.2
    %v945 = vmul.f32 %v927, 0.2
    %v946 = vmul.f32 %v929, 0.2
    %v947 = vmul.f32 %v878, 0.2
    %v948 = vmul.f32 %v880, 0.2
    %v949 = vmul.f32 %v931, 0.2
    %v950 = vmul.f32 %v933, 0.2
    %v951 = vmax.f32 %v864, %v935
    %v952 = vmax.f32 %v866, %v936
    %v953 = vmax.f32 %v917, %v937
    %v954 = vmax.f32 %v919, %v938
    %v955 = vmax.f32 %v868, %v939
    %v956 = vmax.f32 %v870, %v940
    %v957 = vmax.f32 %v921, %v941
    %v958 = vmax.f32 %v923, %v942
    %v959 = vmax.f32 %v874, %v943
    %v960 = vmax.f32 %v876, %v944
    %v961 = vmax.f32 %v927, %v945
    %v962 = vmax.f32 %v929, %v946
    %v963 = vmax.f32 %v878, %v947
    %v964 = vmax.f32 %v880, %v948
    %v965 = vmax.f32 %v931, %v949
    %v966 = vmax.f32 %v933, %v950
    %v967 = vmul.f32 %v951, %v73
    %v968 = vmul.f32 %v952, %v73
    %v969 = vmul.f32 %v953, %v73
    %v970 = vmul.f32 %v954, %v73
    %v971 = vmul.f32 %v955, %v78
    %v972 = vmul.f32 %v956, %v78
    %v973 = vmul.f32 %v957, %v78
    %v974 = vmul.f32 %v958, %v78
    %v975 = vmul.f32 %v959, %v83
    %v976 = vmul.f32 %v960, %v83
    %v977 = vmul.f32 %v961, %v83
    %v978 = vmul.f32 %v962, %v83
    %v979 = vmul.f32 %v963, %v88
    %v980 = vmul.f32 %v964, %v88
    %v981 = vmul.f32 %v965, %v88
    %v982 = vmul.f32 %v966, %v88
    %v983 = vadd.f32 %v967, %v971
    %v984 = vadd.f32 %v983, %v975
    %v985 = vadd.f32 %v984, %v979
    %v986 = vrot.slane %v985, 4
    %v987 = vadd.f32 %v985, %v986
    %v988 = vrot.slane %v987, 2
    %v989 = vadd.f32 %v987, %v988
    %v990 = vrot.slane %v989, 1
    %v991 = vadd.f32 %v989, %v990
    %v992 = vadd.f32 %v968, %v972
    %v993 = vadd.f32 %v992, %v976
    %v994 = vadd.f32 %v993, %v980
    %v995 = vrot.slane %v994, 4
    %v996 = vadd.f32 %v994, %v995
    %v997 = vrot.slane %v996, 2
    %v998 = vadd.f32 %v996, %v997
    %v999 = vrot.slane %v998, 1
    %v1000 = vadd.f32 %v998, %v999
    %v1001 = vadd.f32 %v969, %v973
    %v1002 = vadd.f32 %v1001, %v977
    %v1003 = vadd.f32 %v1002, %v981
    %v1004 = vrot.slane %v1003, 4
    %v1005 = vadd.f32 %v1003, %v1004
    %v1006 = vrot.slane %v1005, 2
    %v1007 = vadd.f32 %v1005, %v1006
    %v1008 = vrot.slane %v1007, 1
    %v1009 = vadd.f32 %v1007, %v1008
    %v1010 = vadd.f32 %v970, %v974
    %v1011 = vadd.f32 %v1010, %v978
    %v1012 = vadd.f32 %v1011, %v982
    %v1013 = vrot.slane %v1012, 4
    %v1014 = vadd.f32 %v1012, %v1013
    %v1015 = vrot.slane %v1014, 2
    %v1016 = vadd.f32 %v1014, %v1015
    %v1017 = vrot.slane %v1016, 1
    %v1018 = vadd.f32 %v1016, %v1017
    %v1023 = vcombine.low %v991, %v1000
    %v1024 = vcombine.low %v1009, %v1018
    %v1026 = vunpack.c.l.s4 1966171168
    %v1027 = vunpack.c.0.s8 %v1026
    %v1028 = vlaneseq
    %v1029 = vshrl.u32 %v1028, 7
    %v1030 = vsub.s32 %v1027, %v1029
    %v1031 = vrot.slane %v1023, %v1030
    %v1033 = vunpack.c.l.s4 1966171168
    %v1034 = vunpack.c.0.s8 %v1033
    %v1035 = vlaneseq
    %v1036 = vshrl.u32 %v1035, 7
    %v1037 = vsub.s32 %v1034, %v1036
    %v1038 = vrot.slane %v1024, %v1037
    %v1039 = vcombine.low %v1031, %v1038
    %v1041 = vunpack.c.l.s4 1966171168
    %v1042 = vunpack.c.0.s8 %v1041
    %v1043 = vlaneseq
    %v1044 = vshrl.u32 %v1043, 7
    %v1045 = vsub.s32 %v1042, %v1044
    %v1046 = vrot.slane %v1039, %v1045
    %s1048 = scalar_lea.vmem [#allocation2], 1
    %1049 = vst.msk [vmem:[%s1048] ss:$8 sm:$0xf] %vm592, %v1046
    %1050 = vst.msk [vmem:[%s1048] ss:$8 sm:$0x0] %vm592, %v1046
    %s1051 = scalar_lea.vmem [#allocation7], 40
    %v1052 = vld [vmem:[%s1051] sm:$0xf]
    %v1053 = vld [vmem:[%s1051 + $0x4] sm:$0xf]
    %v1054 = vld [vmem:[%s1051 + $0x8] sm:$0xf]
    %v1055 = vld [vmem:[%s1051 + $0xc] sm:$0xf]
    %v1056 = vld [vmem:[%s1051 + $0x10] sm:$0xf]
    %v1062 = vunpack.c.l.b16 %v1052
    %v1063 = vunpack.c.l.b16 %v1053
    %v1064 = vunpack.c.l.b16 %v1054
    %v1065 = vunpack.c.l.b16 %v1055
    %v1066 = vunpack.c.l.b16 %v1056
    %v1067 = vpack.c.b16 %v1063, %v1062
    %v1068 = vpack.c.b16 %v1065, %v1064
    %v1069 = vpack.c.b16 %v1066, %v1066
    %v1071 = vsel %vm150, %v1067, 0
    %v1074 = vsel %vm150, %v1068, 0
    %v1077 = vsel %vm150, %v1069, 0
    %1079 = vmatprep.subr.bf16.mxu0 0
    %1080 = vmatpush1.bf16.msra.mxu0 0
    %1081 = vmatprep.subr.bf16.mxu0 0
    %1082 = vmatpush1.bf16.msra.mxu0 0
    %1083 = vmatprep.subr.bf16.mxu0 0
    %1084 = vmatpush1.bf16.msra.mxu0 0
    %1085 = vmatprep.subr.bf16.mxu0 0
    %1086 = vmatpush1.bf16.msra.mxu0 0
    %1087 = vmatprep.subr.bf16.mxu0 0
    %1088 = vmatpush1.bf16.msra.mxu0 0
    %1089 = vmatprep.subr.bf16.mxu0 %v162
    %1090 = vmatpush1.bf16.msra.mxu0 %v162
    %1091 = vmatprep.subr.bf16.mxu0 %v128
    %1092 = vmatpush1.bf16.msra.mxu0 %v127
    %1093 = vmatprep.subr.bf16.mxu0 %v124
    %1094 = vmatpush1.bf16.msra.mxu0 %v123
    %1095 = vmatprep.subr.bf16.mxu0 0
    %1096 = vmatpush2.bf16.msra.mxu0 0
    %1097 = vmatprep.subr.bf16.mxu0 0
    %1098 = vmatpush2.bf16.msra.mxu0 0
    %1099 = vmatprep.subr.bf16.mxu0 0
    %1100 = vmatpush2.bf16.msra.mxu0 0
    %1101 = vmatprep.subr.bf16.mxu0 0
    %1102 = vmatpush2.bf16.msra.mxu0 0
    %1103 = vmatprep.subr.bf16.mxu0 0
    %1104 = vmatpush2.bf16.msra.mxu0 0
    %1105 = vmatprep.subr.bf16.mxu0 0
    %1106 = vmatpush2.bf16.msra.mxu0 0
    %1107 = vmatprep.subr.bf16.mxu0 0
    %1108 = vmatpush2.bf16.msra.mxu0 0
    %1109 = vmatprep.subr.bf16.mxu0 0
    %1110 = vmatpush2.bf16.msra.mxu0 0
    %1111 = vmatprep.mubr.bf16.mxu0 0
    %1112 = vmatmul.mubr.bf16.gmra.mxu0 %v1071
    %v1113 = vpop.f32.mrf.mxu0
    %v1114 = vadd.f32 0.0, %v1113
    %v1115 = vpop.f32.mrf.mxu0
    %v1116 = vadd.f32 0.0, %v1115
    %v1117 = vpop.f32.mrf.mxu0
    %v1118 = vadd.f32 0.0, %v1117
    %v1119 = vpop.f32.mrf.mxu0
    %v1120 = vadd.f32 0.0, %v1119
    %1121 = vmatprep.mubr.bf16.mxu0 0
    %1122 = vmatmul.mubr.bf16.gmra.mxu0 %v1074
    %v1123 = vpop.f32.mrf.mxu0
    %v1124 = vadd.f32 0.0, %v1123
    %v1125 = vpop.f32.mrf.mxu0
    %v1126 = vadd.f32 0.0, %v1125
    %v1127 = vpop.f32.mrf.mxu0
    %v1128 = vadd.f32 0.0, %v1127
    %v1129 = vpop.f32.mrf.mxu0
    %v1130 = vadd.f32 0.0, %v1129
    %1131 = vmatprep.mubr.bf16.mxu0 0
    %1132 = vmatmul.mubr.bf16.gmra.mxu0 %v1077
    %v1133 = vpop.f32.mrf.mxu0
    %v1134 = vadd.f32 0.0, %v1133
    %v1135 = vpop.f32.mrf.mxu0
    %v1136 = vadd.f32 0.0, %v1135
    %v1137 = vpop.f32.mrf.mxu0
    %v1138 = vpop.f32.mrf.mxu0
    %1139 = vdwg.mxu0
    %1140 = vmatprep.subr.bf16.mxu0 0
    %1141 = vmatpush1.bf16.msra.mxu0 0
    %1142 = vmatprep.subr.bf16.mxu0 0
    %1143 = vmatpush1.bf16.msra.mxu0 0
    %1144 = vmatprep.subr.bf16.mxu0 0
    %1145 = vmatpush1.bf16.msra.mxu0 0
    %1146 = vmatprep.subr.bf16.mxu0 0
    %1147 = vmatpush1.bf16.msra.mxu0 0
    %1148 = vmatprep.subr.bf16.mxu0 0
    %1149 = vmatpush1.bf16.msra.mxu0 0
    %1150 = vmatprep.subr.bf16.mxu0 %v162
    %1151 = vmatpush1.bf16.msra.mxu0 %v162
    %1152 = vmatprep.subr.bf16.mxu0 %v130
    %1153 = vmatpush1.bf16.msra.mxu0 %v129
    %1154 = vmatprep.subr.bf16.mxu0 %v126
    %1155 = vmatpush1.bf16.msra.mxu0 %v125
    %1156 = vmatprep.subr.bf16.mxu0 0
    %1157 = vmatpush2.bf16.msra.mxu0 0
    %1158 = vmatprep.subr.bf16.mxu0 0
    %1159 = vmatpush2.bf16.msra.mxu0 0
    %1160 = vmatprep.subr.bf16.mxu0 0
    %1161 = vmatpush2.bf16.msra.mxu0 0
    %1162 = vmatprep.subr.bf16.mxu0 0
    %1163 = vmatpush2.bf16.msra.mxu0 0
    %1164 = vmatprep.subr.bf16.mxu0 0
    %1165 = vmatpush2.bf16.msra.mxu0 0
    %1166 = vmatprep.subr.bf16.mxu0 0
    %1167 = vmatpush2.bf16.msra.mxu0 0
    %1168 = vmatprep.subr.bf16.mxu0 0
    %1169 = vmatpush2.bf16.msra.mxu0 0
    %1170 = vmatprep.subr.bf16.mxu0 0
    %1171 = vmatpush2.bf16.msra.mxu0 0
    %1172 = vmatprep.mubr.bf16.mxu0 0
    %1173 = vmatmul.mubr.bf16.gmra.mxu0 %v1071
    %v1174 = vpop.f32.mrf.mxu0
    %v1175 = vadd.f32 0.0, %v1174
    %v1176 = vpop.f32.mrf.mxu0
    %v1177 = vadd.f32 0.0, %v1176
    %v1178 = vpop.f32.mrf.mxu0
    %v1179 = vadd.f32 0.0, %v1178
    %v1180 = vpop.f32.mrf.mxu0
    %v1181 = vadd.f32 0.0, %v1180
    %1182 = vmatprep.mubr.bf16.mxu0 0
    %1183 = vmatmul.mubr.bf16.gmra.mxu0 %v1074
    %v1184 = vpop.f32.mrf.mxu0
    %v1185 = vadd.f32 0.0, %v1184
    %v1186 = vpop.f32.mrf.mxu0
    %v1187 = vadd.f32 0.0, %v1186
    %v1188 = vpop.f32.mrf.mxu0
    %v1189 = vadd.f32 0.0, %v1188
    %v1190 = vpop.f32.mrf.mxu0
    %v1191 = vadd.f32 0.0, %v1190
    %1192 = vmatprep.mubr.bf16.mxu0 0
    %1193 = vmatmul.mubr.bf16.gmra.mxu0 %v1077
    %v1194 = vpop.f32.mrf.mxu0
    %v1195 = vadd.f32 0.0, %v1194
    %v1196 = vpop.f32.mrf.mxu0
    %v1197 = vadd.f32 0.0, %v1196
    %v1198 = vpop.f32.mrf.mxu0
    %v1199 = vpop.f32.mrf.mxu0
    %1200 = vdwg.mxu0
    %v1201 = vmul.f32 %v1114, 0.2
    %v1202 = vmul.f32 %v1116, 0.2
    %v1203 = vmul.f32 %v1175, 0.2
    %v1204 = vmul.f32 %v1177, 0.2
    %v1205 = vmul.f32 %v1118, 0.2
    %v1206 = vmul.f32 %v1120, 0.2
    %v1207 = vmul.f32 %v1179, 0.2
    %v1208 = vmul.f32 %v1181, 0.2
    %v1209 = vmul.f32 %v1124, 0.2
    %v1210 = vmul.f32 %v1126, 0.2
    %v1211 = vmul.f32 %v1185, 0.2
    %v1212 = vmul.f32 %v1187, 0.2
    %v1213 = vmul.f32 %v1128, 0.2
    %v1214 = vmul.f32 %v1130, 0.2
    %v1215 = vmul.f32 %v1189, 0.2
    %v1216 = vmul.f32 %v1191, 0.2
    %v1217 = vmul.f32 %v1134, 0.2
    %v1218 = vmul.f32 %v1136, 0.2
    %v1219 = vmul.f32 %v1195, 0.2
    %v1220 = vmul.f32 %v1197, 0.2
    %v1221 = vmax.f32 %v1114, %v1201
    %v1222 = vmax.f32 %v1116, %v1202
    %v1223 = vmax.f32 %v1175, %v1203
    %v1224 = vmax.f32 %v1177, %v1204
    %v1225 = vmax.f32 %v1118, %v1205
    %v1226 = vmax.f32 %v1120, %v1206
    %v1227 = vmax.f32 %v1179, %v1207
    %v1228 = vmax.f32 %v1181, %v1208
    %v1229 = vmax.f32 %v1124, %v1209
    %v1230 = vmax.f32 %v1126, %v1210
    %v1231 = vmax.f32 %v1185, %v1211
    %v1232 = vmax.f32 %v1187, %v1212
    %v1233 = vmax.f32 %v1128, %v1213
    %v1234 = vmax.f32 %v1130, %v1214
    %v1235 = vmax.f32 %v1189, %v1215
    %v1236 = vmax.f32 %v1191, %v1216
    %v1237 = vmax.f32 %v1134, %v1217
    %v1238 = vmax.f32 %v1136, %v1218
    %v1239 = vmax.f32 %v1195, %v1219
    %v1240 = vmax.f32 %v1197, %v1220
    %v1241 = vld [vmem:[#allocation9] sm:$0xf]
    %v1242 = vld [vmem:[#allocation9 + $0x4] sm:$0xf]
    %v1243 = vld [vmem:[#allocation9 + $0x8] sm:$0xf]
    %v1244 = vld [vmem:[#allocation9 + $0xc] sm:$0xf]
    %v1245 = vpack.c.bf16 %v1225, %v1221
    %v1246 = vpack.c.bf16 %v1226, %v1222
    %v1247 = vpack.c.bf16 %v1227, %v1223
    %v1248 = vpack.c.bf16 %v1228, %v1224
    %v1249 = vpack.c.bf16 %v1233, %v1229
    %v1250 = vpack.c.bf16 %v1234, %v1230
    %v1251 = vpack.c.bf16 %v1235, %v1231
    %v1252 = vpack.c.bf16 %v1236, %v1232
    %v1253 = vpack.c.bf16 %v1237, %v1237
    %v1254 = vpack.c.bf16 %v1238, %v1238
    %v1255 = vpack.c.bf16 %v1239, %v1239
    %v1256 = vpack.c.bf16 %v1240, %v1240
    %v1261 = vunpack.c.l.b16 %v1241
    %v1262 = vunpack.c.l.b16 %v1242
    %v1263 = vunpack.c.l.b16 %v1243
    %v1264 = vunpack.c.l.b16 %v1244
    %v1265 = vpack.c.b16 %v1262, %v1261
    %v1266 = vpack.c.b16 %v1264, %v1263
    %v1268 = vsel %vm150, %v1265, 0
    %v1271 = vsel %vm150, %v1266, 0
    %v1274 = vsel %vm160, %v1253, 0
    %v1277 = vsel %vm160, %v1254, 0
    %v1280 = vsel %vm160, %v1255, 0
    %v1283 = vsel %vm160, %v1256, 0
    %1285 = vmatprep.subr.bf16.mxu0 0
    %1286 = vmatpush1.bf16.msra.mxu0 0
    %1287 = vmatprep.subr.bf16.mxu0 0
    %1288 = vmatpush1.bf16.msra.mxu0 0
    %1289 = vmatprep.subr.bf16.mxu0 0
    %1290 = vmatpush1.bf16.msra.mxu0 0
    %1291 = vmatprep.subr.bf16.mxu0 0
    %1292 = vmatpush1.bf16.msra.mxu0 0
    %1293 = vmatprep.subr.bf16.mxu0 0
    %1294 = vmatpush1.bf16.msra.mxu0 0
    %1295 = vmatprep.subr.bf16.mxu0 %v1277
    %1296 = vmatpush1.bf16.msra.mxu0 %v1274
    %1297 = vmatprep.subr.bf16.mxu0 %v1250
    %1298 = vmatpush1.bf16.msra.mxu0 %v1249
    %1299 = vmatprep.subr.bf16.mxu0 %v1246
    %1300 = vmatpush1.bf16.msra.mxu0 %v1245
    %1301 = vmatprep.subr.bf16.mxu0 0
    %1302 = vmatpush2.bf16.msra.mxu0 0
    %1303 = vmatprep.subr.bf16.mxu0 0
    %1304 = vmatpush2.bf16.msra.mxu0 0
    %1305 = vmatprep.subr.bf16.mxu0 0
    %1306 = vmatpush2.bf16.msra.mxu0 0
    %1307 = vmatprep.subr.bf16.mxu0 0
    %1308 = vmatpush2.bf16.msra.mxu0 0
    %1309 = vmatprep.subr.bf16.mxu0 0
    %1310 = vmatpush2.bf16.msra.mxu0 0
    %1311 = vmatprep.subr.bf16.mxu0 0
    %1312 = vmatpush2.bf16.msra.mxu0 0
    %1313 = vmatprep.subr.bf16.mxu0 0
    %1314 = vmatpush2.bf16.msra.mxu0 0
    %1315 = vmatprep.subr.bf16.mxu0 0
    %1316 = vmatpush2.bf16.msra.mxu0 0
    %1317 = vmatprep.mubr.bf16.mxu0 0
    %1318 = vmatmul.mubr.bf16.gmra.mxu0 %v1268
    %v1319 = vpop.f32.mrf.mxu0
    %v1320 = vadd.f32 0.0, %v1319
    %v1321 = vpop.f32.mrf.mxu0
    %v1322 = vadd.f32 0.0, %v1321
    %v1323 = vpop.f32.mrf.mxu0
    %v1324 = vadd.f32 0.0, %v1323
    %v1325 = vpop.f32.mrf.mxu0
    %v1326 = vadd.f32 0.0, %v1325
    %1327 = vmatprep.mubr.bf16.mxu0 0
    %1328 = vmatmul.mubr.bf16.gmra.mxu0 %v1271
    %v1329 = vpop.f32.mrf.mxu0
    %v1330 = vadd.f32 0.0, %v1329
    %v1331 = vpop.f32.mrf.mxu0
    %v1332 = vadd.f32 0.0, %v1331
    %v1333 = vpop.f32.mrf.mxu0
    %v1334 = vadd.f32 0.0, %v1333
    %v1335 = vpop.f32.mrf.mxu0
    %v1336 = vadd.f32 0.0, %v1335
    %1337 = vdwg.mxu0
    %1338 = vmatprep.subr.bf16.mxu0 0
    %1339 = vmatpush1.bf16.msra.mxu0 0
    %1340 = vmatprep.subr.bf16.mxu0 0
    %1341 = vmatpush1.bf16.msra.mxu0 0
    %1342 = vmatprep.subr.bf16.mxu0 0
    %1343 = vmatpush1.bf16.msra.mxu0 0
    %1344 = vmatprep.subr.bf16.mxu0 0
    %1345 = vmatpush1.bf16.msra.mxu0 0
    %1346 = vmatprep.subr.bf16.mxu0 0
    %1347 = vmatpush1.bf16.msra.mxu0 0
    %1348 = vmatprep.subr.bf16.mxu0 %v1283
    %1349 = vmatpush1.bf16.msra.mxu0 %v1280
    %1350 = vmatprep.subr.bf16.mxu0 %v1252
    %1351 = vmatpush1.bf16.msra.mxu0 %v1251
    %1352 = vmatprep.subr.bf16.mxu0 %v1248
    %1353 = vmatpush1.bf16.msra.mxu0 %v1247
    %1354 = vmatprep.subr.bf16.mxu0 0
    %1355 = vmatpush2.bf16.msra.mxu0 0
    %1356 = vmatprep.subr.bf16.mxu0 0
    %1357 = vmatpush2.bf16.msra.mxu0 0
    %1358 = vmatprep.subr.bf16.mxu0 0
    %1359 = vmatpush2.bf16.msra.mxu0 0
    %1360 = vmatprep.subr.bf16.mxu0 0
    %1361 = vmatpush2.bf16.msra.mxu0 0
    %1362 = vmatprep.subr.bf16.mxu0 0
    %1363 = vmatpush2.bf16.msra.mxu0 0
    %1364 = vmatprep.subr.bf16.mxu0 0
    %1365 = vmatpush2.bf16.msra.mxu0 0
    %1366 = vmatprep.subr.bf16.mxu0 0
    %1367 = vmatpush2.bf16.msra.mxu0 0
    %1368 = vmatprep.subr.bf16.mxu0 0
    %1369 = vmatpush2.bf16.msra.mxu0 0
    %1370 = vmatprep.mubr.bf16.mxu0 0
    %1371 = vmatmul.mubr.bf16.gmra.mxu0 %v1268
    %v1372 = vpop.f32.mrf.mxu0
    %v1373 = vadd.f32 0.0, %v1372
    %v1374 = vpop.f32.mrf.mxu0
    %v1375 = vadd.f32 0.0, %v1374
    %v1376 = vpop.f32.mrf.mxu0
    %v1377 = vadd.f32 0.0, %v1376
    %v1378 = vpop.f32.mrf.mxu0
    %v1379 = vadd.f32 0.0, %v1378
    %1380 = vmatprep.mubr.bf16.mxu0 0
    %1381 = vmatmul.mubr.bf16.gmra.mxu0 %v1271
    %v1382 = vpop.f32.mrf.mxu0
    %v1383 = vadd.f32 0.0, %v1382
    %v1384 = vpop.f32.mrf.mxu0
    %v1385 = vadd.f32 0.0, %v1384
    %v1386 = vpop.f32.mrf.mxu0
    %v1387 = vadd.f32 0.0, %v1386
    %v1388 = vpop.f32.mrf.mxu0
    %v1389 = vadd.f32 0.0, %v1388
    %1390 = vdwg.mxu0
    %v1391 = vmul.f32 %v1320, 0.2
    %v1392 = vmul.f32 %v1322, 0.2
    %v1393 = vmul.f32 %v1373, 0.2
    %v1394 = vmul.f32 %v1375, 0.2
    %v1395 = vmul.f32 %v1324, 0.2
    %v1396 = vmul.f32 %v1326, 0.2
    %v1397 = vmul.f32 %v1377, 0.2
    %v1398 = vmul.f32 %v1379, 0.2
    %v1399 = vmul.f32 %v1330, 0.2
    %v1400 = vmul.f32 %v1332, 0.2
    %v1401 = vmul.f32 %v1383, 0.2
    %v1402 = vmul.f32 %v1385, 0.2
    %v1403 = vmul.f32 %v1334, 0.2
    %v1404 = vmul.f32 %v1336, 0.2
    %v1405 = vmul.f32 %v1387, 0.2
    %v1406 = vmul.f32 %v1389, 0.2
    %v1407 = vmax.f32 %v1320, %v1391
    %v1408 = vmax.f32 %v1322, %v1392
    %v1409 = vmax.f32 %v1373, %v1393
    %v1410 = vmax.f32 %v1375, %v1394
    %v1411 = vmax.f32 %v1324, %v1395
    %v1412 = vmax.f32 %v1326, %v1396
    %v1413 = vmax.f32 %v1377, %v1397
    %v1414 = vmax.f32 %v1379, %v1398
    %v1415 = vmax.f32 %v1330, %v1399
    %v1416 = vmax.f32 %v1332, %v1400
    %v1417 = vmax.f32 %v1383, %v1401
    %v1418 = vmax.f32 %v1385, %v1402
    %v1419 = vmax.f32 %v1334, %v1403
    %v1420 = vmax.f32 %v1336, %v1404
    %v1421 = vmax.f32 %v1387, %v1405
    %v1422 = vmax.f32 %v1389, %v1406
    %v1423 = vmul.f32 %v1407, %v73
    %v1424 = vmul.f32 %v1408, %v73
    %v1425 = vmul.f32 %v1409, %v73
    %v1426 = vmul.f32 %v1410, %v73
    %v1427 = vmul.f32 %v1411, %v78
    %v1428 = vmul.f32 %v1412, %v78
    %v1429 = vmul.f32 %v1413, %v78
    %v1430 = vmul.f32 %v1414, %v78
    %v1431 = vmul.f32 %v1415, %v83
    %v1432 = vmul.f32 %v1416, %v83
    %v1433 = vmul.f32 %v1417, %v83
    %v1434 = vmul.f32 %v1418, %v83
    %v1435 = vmul.f32 %v1419, %v88
    %v1436 = vmul.f32 %v1420, %v88
    %v1437 = vmul.f32 %v1421, %v88
    %v1438 = vmul.f32 %v1422, %v88
    %v1439 = vadd.f32 %v1423, %v1427
    %v1440 = vadd.f32 %v1439, %v1431
    %v1441 = vadd.f32 %v1440, %v1435
    %v1442 = vrot.slane %v1441, 4
    %v1443 = vadd.f32 %v1441, %v1442
    %v1444 = vrot.slane %v1443, 2
    %v1445 = vadd.f32 %v1443, %v1444
    %v1446 = vrot.slane %v1445, 1
    %v1447 = vadd.f32 %v1445, %v1446
    %v1448 = vadd.f32 %v1424, %v1428
    %v1449 = vadd.f32 %v1448, %v1432
    %v1450 = vadd.f32 %v1449, %v1436
    %v1451 = vrot.slane %v1450, 4
    %v1452 = vadd.f32 %v1450, %v1451
    %v1453 = vrot.slane %v1452, 2
    %v1454 = vadd.f32 %v1452, %v1453
    %v1455 = vrot.slane %v1454, 1
    %v1456 = vadd.f32 %v1454, %v1455
    %v1457 = vadd.f32 %v1425, %v1429
    %v1458 = vadd.f32 %v1457, %v1433
    %v1459 = vadd.f32 %v1458, %v1437
    %v1460 = vrot.slane %v1459, 4
    %v1461 = vadd.f32 %v1459, %v1460
    %v1462 = vrot.slane %v1461, 2
    %v1463 = vadd.f32 %v1461, %v1462
    %v1464 = vrot.slane %v1463, 1
    %v1465 = vadd.f32 %v1463, %v1464
    %v1466 = vadd.f32 %v1426, %v1430
    %v1467 = vadd.f32 %v1466, %v1434
    %v1468 = vadd.f32 %v1467, %v1438
    %v1469 = vrot.slane %v1468, 4
    %v1470 = vadd.f32 %v1468, %v1469
    %v1471 = vrot.slane %v1470, 2
    %v1472 = vadd.f32 %v1470, %v1471
    %v1473 = vrot.slane %v1472, 1
    %v1474 = vadd.f32 %v1472, %v1473
    %v1479 = vcombine.low %v1447, %v1456
    %v1480 = vcombine.low %v1465, %v1474
    %v1482 = vunpack.c.l.s4 1966171168
    %v1483 = vunpack.c.0.s8 %v1482
    %v1484 = vlaneseq
    %v1485 = vshrl.u32 %v1484, 7
    %v1486 = vsub.s32 %v1483, %v1485
    %v1487 = vrot.slane %v1479, %v1486
    %v1489 = vunpack.c.l.s4 1966171168
    %v1490 = vunpack.c.0.s8 %v1489
    %v1491 = vlaneseq
    %v1492 = vshrl.u32 %v1491, 7
    %v1493 = vsub.s32 %v1490, %v1492
    %v1494 = vrot.slane %v1480, %v1493
    %v1495 = vcombine.low %v1487, %v1494
    %v1497 = vunpack.c.l.s4 1966171168
    %v1498 = vunpack.c.0.s8 %v1497
    %v1499 = vlaneseq
    %v1500 = vshrl.u32 %v1499, 7
    %v1501 = vsub.s32 %v1498, %v1500
    %v1502 = vrot.slane %v1495, %v1501
    %s1504 = scalar_lea.vmem [#allocation2], 2
    %1505 = vst.msk [vmem:[%s1504] ss:$8 sm:$0xf] %vm592, %v1502
    %1506 = vst.msk [vmem:[%s1504] ss:$8 sm:$0x0] %vm592, %v1502
    %s1507 = scalar_lea.vmem [#allocation7], 60
    %v1508 = vld [vmem:[%s1507] sm:$0xf]
    %v1509 = vld [vmem:[%s1507 + $0x4] sm:$0xf]
    %v1510 = vld [vmem:[%s1507 + $0x8] sm:$0xf]
    %v1511 = vld [vmem:[%s1507 + $0xc] sm:$0xf]
    %v1512 = vld [vmem:[%s1507 + $0x10] sm:$0xf]
    %v1518 = vunpack.c.l.b16 %v1508
    %v1519 = vunpack.c.l.b16 %v1509
    %v1520 = vunpack.c.l.b16 %v1510
    %v1521 = vunpack.c.l.b16 %v1511
    %v1522 = vunpack.c.l.b16 %v1512
    %v1523 = vpack.c.b16 %v1519, %v1518
    %v1524 = vpack.c.b16 %v1521, %v1520
    %v1525 = vpack.c.b16 %v1522, %v1522
    %v1527 = vsel %vm150, %v1523, 0
    %v1530 = vsel %vm150, %v1524, 0
    %v1533 = vsel %vm150, %v1525, 0
    %1535 = vmatprep.subr.bf16.mxu0 0
    %1536 = vmatpush1.bf16.msra.mxu0 0
    %1537 = vmatprep.subr.bf16.mxu0 0
    %1538 = vmatpush1.bf16.msra.mxu0 0
    %1539 = vmatprep.subr.bf16.mxu0 0
    %1540 = vmatpush1.bf16.msra.mxu0 0
    %1541 = vmatprep.subr.bf16.mxu0 0
    %1542 = vmatpush1.bf16.msra.mxu0 0
    %1543 = vmatprep.subr.bf16.mxu0 0
    %1544 = vmatpush1.bf16.msra.mxu0 0
    %1545 = vmatprep.subr.bf16.mxu0 %v162
    %1546 = vmatpush1.bf16.msra.mxu0 %v162
    %1547 = vmatprep.subr.bf16.mxu0 %v128
    %1548 = vmatpush1.bf16.msra.mxu0 %v127
    %1549 = vmatprep.subr.bf16.mxu0 %v124
    %1550 = vmatpush1.bf16.msra.mxu0 %v123
    %1551 = vmatprep.subr.bf16.mxu0 0
    %1552 = vmatpush2.bf16.msra.mxu0 0
    %1553 = vmatprep.subr.bf16.mxu0 0
    %1554 = vmatpush2.bf16.msra.mxu0 0
    %1555 = vmatprep.subr.bf16.mxu0 0
    %1556 = vmatpush2.bf16.msra.mxu0 0
    %1557 = vmatprep.subr.bf16.mxu0 0
    %1558 = vmatpush2.bf16.msra.mxu0 0
    %1559 = vmatprep.subr.bf16.mxu0 0
    %1560 = vmatpush2.bf16.msra.mxu0 0
    %1561 = vmatprep.subr.bf16.mxu0 0
    %1562 = vmatpush2.bf16.msra.mxu0 0
    %1563 = vmatprep.subr.bf16.mxu0 0
    %1564 = vmatpush2.bf16.msra.mxu0 0
    %1565 = vmatprep.subr.bf16.mxu0 0
    %1566 = vmatpush2.bf16.msra.mxu0 0
    %1567 = vmatprep.mubr.bf16.mxu0 0
    %1568 = vmatmul.mubr.bf16.gmra.mxu0 %v1527
    %v1569 = vpop.f32.mrf.mxu0
    %v1570 = vadd.f32 0.0, %v1569
    %v1571 = vpop.f32.mrf.mxu0
    %v1572 = vadd.f32 0.0, %v1571
    %v1573 = vpop.f32.mrf.mxu0
    %v1574 = vadd.f32 0.0, %v1573
    %v1575 = vpop.f32.mrf.mxu0
    %v1576 = vadd.f32 0.0, %v1575
    %1577 = vmatprep.mubr.bf16.mxu0 0
    %1578 = vmatmul.mubr.bf16.gmra.mxu0 %v1530
    %v1579 = vpop.f32.mrf.mxu0
    %v1580 = vadd.f32 0.0, %v1579
    %v1581 = vpop.f32.mrf.mxu0
    %v1582 = vadd.f32 0.0, %v1581
    %v1583 = vpop.f32.mrf.mxu0
    %v1584 = vadd.f32 0.0, %v1583
    %v1585 = vpop.f32.mrf.mxu0
    %v1586 = vadd.f32 0.0, %v1585
    %1587 = vmatprep.mubr.bf16.mxu0 0
    %1588 = vmatmul.mubr.bf16.gmra.mxu0 %v1533
    %v1589 = vpop.f32.mrf.mxu0
    %v1590 = vadd.f32 0.0, %v1589
    %v1591 = vpop.f32.mrf.mxu0
    %v1592 = vadd.f32 0.0, %v1591
    %v1593 = vpop.f32.mrf.mxu0
    %v1594 = vpop.f32.mrf.mxu0
    %1595 = vdwg.mxu0
    %1596 = vmatprep.subr.bf16.mxu0 0
    %1597 = vmatpush1.bf16.msra.mxu0 0
    %1598 = vmatprep.subr.bf16.mxu0 0
    %1599 = vmatpush1.bf16.msra.mxu0 0
    %1600 = vmatprep.subr.bf16.mxu0 0
    %1601 = vmatpush1.bf16.msra.mxu0 0
    %1602 = vmatprep.subr.bf16.mxu0 0
    %1603 = vmatpush1.bf16.msra.mxu0 0
    %1604 = vmatprep.subr.bf16.mxu0 0
    %1605 = vmatpush1.bf16.msra.mxu0 0
    %1606 = vmatprep.subr.bf16.mxu0 %v162
    %1607 = vmatpush1.bf16.msra.mxu0 %v162
    %1608 = vmatprep.subr.bf16.mxu0 %v130
    %1609 = vmatpush1.bf16.msra.mxu0 %v129
    %1610 = vmatprep.subr.bf16.mxu0 %v126
    %1611 = vmatpush1.bf16.msra.mxu0 %v125
    %1612 = vmatprep.subr.bf16.mxu0 0
    %1613 = vmatpush2.bf16.msra.mxu0 0
    %1614 = vmatprep.subr.bf16.mxu0 0
    %1615 = vmatpush2.bf16.msra.mxu0 0
    %1616 = vmatprep.subr.bf16.mxu0 0
    %1617 = vmatpush2.bf16.msra.mxu0 0
    %1618 = vmatprep.subr.bf16.mxu0 0
    %1619 = vmatpush2.bf16.msra.mxu0 0
    %1620 = vmatprep.subr.bf16.mxu0 0
    %1621 = vmatpush2.bf16.msra.mxu0 0
    %1622 = vmatprep.subr.bf16.mxu0 0
    %1623 = vmatpush2.bf16.msra.mxu0 0
    %1624 = vmatprep.subr.bf16.mxu0 0
    %1625 = vmatpush2.bf16.msra.mxu0 0
    %1626 = vmatprep.subr.bf16.mxu0 0
    %1627 = vmatpush2.bf16.msra.mxu0 0
    %1628 = vmatprep.mubr.bf16.mxu0 0
    %1629 = vmatmul.mubr.bf16.gmra.mxu0 %v1527
    %v1630 = vpop.f32.mrf.mxu0
    %v1631 = vadd.f32 0.0, %v1630
    %v1632 = vpop.f32.mrf.mxu0
    %v1633 = vadd.f32 0.0, %v1632
    %v1634 = vpop.f32.mrf.mxu0
    %v1635 = vadd.f32 0.0, %v1634
    %v1636 = vpop.f32.mrf.mxu0
    %v1637 = vadd.f32 0.0, %v1636
    %1638 = vmatprep.mubr.bf16.mxu0 0
    %1639 = vmatmul.mubr.bf16.gmra.mxu0 %v1530
    %v1640 = vpop.f32.mrf.mxu0
    %v1641 = vadd.f32 0.0, %v1640
    %v1642 = vpop.f32.mrf.mxu0
    %v1643 = vadd.f32 0.0, %v1642
    %v1644 = vpop.f32.mrf.mxu0
    %v1645 = vadd.f32 0.0, %v1644
    %v1646 = vpop.f32.mrf.mxu0
    %v1647 = vadd.f32 0.0, %v1646
    %1648 = vmatprep.mubr.bf16.mxu0 0
    %1649 = vmatmul.mubr.bf16.gmra.mxu0 %v1533
    %v1650 = vpop.f32.mrf.mxu0
    %v1651 = vadd.f32 0.0, %v1650
    %v1652 = vpop.f32.mrf.mxu0
    %v1653 = vadd.f32 0.0, %v1652
    %v1654 = vpop.f32.mrf.mxu0
    %v1655 = vpop.f32.mrf.mxu0
    %1656 = vdwg.mxu0
    %v1657 = vmul.f32 %v1570, 0.2
    %v1658 = vmul.f32 %v1572, 0.2
    %v1659 = vmul.f32 %v1631, 0.2
    %v1660 = vmul.f32 %v1633, 0.2
    %v1661 = vmul.f32 %v1574, 0.2
    %v1662 = vmul.f32 %v1576, 0.2
    %v1663 = vmul.f32 %v1635, 0.2
    %v1664 = vmul.f32 %v1637, 0.2
    %v1665 = vmul.f32 %v1580, 0.2
    %v1666 = vmul.f32 %v1582, 0.2
    %v1667 = vmul.f32 %v1641, 0.2
    %v1668 = vmul.f32 %v1643, 0.2
    %v1669 = vmul.f32 %v1584, 0.2
    %v1670 = vmul.f32 %v1586, 0.2
    %v1671 = vmul.f32 %v1645, 0.2
    %v1672 = vmul.f32 %v1647, 0.2
    %v1673 = vmul.f32 %v1590, 0.2
    %v1674 = vmul.f32 %v1592, 0.2
    %v1675 = vmul.f32 %v1651, 0.2
    %v1676 = vmul.f32 %v1653, 0.2
    %v1677 = vmax.f32 %v1570, %v1657
    %v1678 = vmax.f32 %v1572, %v1658
    %v1679 = vmax.f32 %v1631, %v1659
    %v1680 = vmax.f32 %v1633, %v1660
    %v1681 = vmax.f32 %v1574, %v1661
    %v1682 = vmax.f32 %v1576, %v1662
    %v1683 = vmax.f32 %v1635, %v1663
    %v1684 = vmax.f32 %v1637, %v1664
    %v1685 = vmax.f32 %v1580, %v1665
    %v1686 = vmax.f32 %v1582, %v1666
    %v1687 = vmax.f32 %v1641, %v1667
    %v1688 = vmax.f32 %v1643, %v1668
    %v1689 = vmax.f32 %v1584, %v1669
    %v1690 = vmax.f32 %v1586, %v1670
    %v1691 = vmax.f32 %v1645, %v1671
    %v1692 = vmax.f32 %v1647, %v1672
    %v1693 = vmax.f32 %v1590, %v1673
    %v1694 = vmax.f32 %v1592, %v1674
    %v1695 = vmax.f32 %v1651, %v1675
    %v1696 = vmax.f32 %v1653, %v1676
    %v1697 = vld [vmem:[#allocation9] sm:$0xf]
    %v1698 = vld [vmem:[#allocation9 + $0x4] sm:$0xf]
    %v1699 = vld [vmem:[#allocation9 + $0x8] sm:$0xf]
    %v1700 = vld [vmem:[#allocation9 + $0xc] sm:$0xf]
    %v1701 = vpack.c.bf16 %v1681, %v1677
    %v1702 = vpack.c.bf16 %v1682, %v1678
    %v1703 = vpack.c.bf16 %v1683, %v1679
    %v1704 = vpack.c.bf16 %v1684, %v1680
    %v1705 = vpack.c.bf16 %v1689, %v1685
    %v1706 = vpack.c.bf16 %v1690, %v1686
    %v1707 = vpack.c.bf16 %v1691, %v1687
    %v1708 = vpack.c.bf16 %v1692, %v1688
    %v1709 = vpack.c.bf16 %v1693, %v1693
    %v1710 = vpack.c.bf16 %v1694, %v1694
    %v1711 = vpack.c.bf16 %v1695, %v1695
    %v1712 = vpack.c.bf16 %v1696, %v1696
    %v1717 = vunpack.c.l.b16 %v1697
    %v1718 = vunpack.c.l.b16 %v1698
    %v1719 = vunpack.c.l.b16 %v1699
    %v1720 = vunpack.c.l.b16 %v1700
    %v1721 = vpack.c.b16 %v1718, %v1717
    %v1722 = vpack.c.b16 %v1720, %v1719
    %v1724 = vsel %vm150, %v1721, 0
    %v1727 = vsel %vm150, %v1722, 0
    %v1730 = vsel %vm160, %v1709, 0
    %v1733 = vsel %vm160, %v1710, 0
    %v1736 = vsel %vm160, %v1711, 0
    %v1739 = vsel %vm160, %v1712, 0
    %1741 = vmatprep.subr.bf16.mxu0 0
    %1742 = vmatpush1.bf16.msra.mxu0 0
    %1743 = vmatprep.subr.bf16.mxu0 0
    %1744 = vmatpush1.bf16.msra.mxu0 0
    %1745 = vmatprep.subr.bf16.mxu0 0
    %1746 = vmatpush1.bf16.msra.mxu0 0
    %1747 = vmatprep.subr.bf16.mxu0 0
    %1748 = vmatpush1.bf16.msra.mxu0 0
    %1749 = vmatprep.subr.bf16.mxu0 0
    %1750 = vmatpush1.bf16.msra.mxu0 0
    %1751 = vmatprep.subr.bf16.mxu0 %v1733
    %1752 = vmatpush1.bf16.msra.mxu0 %v1730
    %1753 = vmatprep.subr.bf16.mxu0 %v1706
    %1754 = vmatpush1.bf16.msra.mxu0 %v1705
    %1755 = vmatprep.subr.bf16.mxu0 %v1702
    %1756 = vmatpush1.bf16.msra.mxu0 %v1701
    %1757 = vmatprep.subr.bf16.mxu0 0
    %1758 = vmatpush2.bf16.msra.mxu0 0
    %1759 = vmatprep.subr.bf16.mxu0 0
    %1760 = vmatpush2.bf16.msra.mxu0 0
    %1761 = vmatprep.subr.bf16.mxu0 0
    %1762 = vmatpush2.bf16.msra.mxu0 0
    %1763 = vmatprep.subr.bf16.mxu0 0
    %1764 = vmatpush2.bf16.msra.mxu0 0
    %1765 = vmatprep.subr.bf16.mxu0 0
    %1766 = vmatpush2.bf16.msra.mxu0 0
    %1767 = vmatprep.subr.bf16.mxu0 0
    %1768 = vmatpush2.bf16.msra.mxu0 0
    %1769 = vmatprep.subr.bf16.mxu0 0
    %1770 = vmatpush2.bf16.msra.mxu0 0
    %1771 = vmatprep.subr.bf16.mxu0 0
    %1772 = vmatpush2.bf16.msra.mxu0 0
    %1773 = vmatprep.mubr.bf16.mxu0 0
    %1774 = vmatmul.mubr.bf16.gmra.mxu0 %v1724
    %v1775 = vpop.f32.mrf.mxu0
    %v1776 = vadd.f32 0.0, %v1775
    %v1777 = vpop.f32.mrf.mxu0
    %v1778 = vadd.f32 0.0, %v1777
    %v1779 = vpop.f32.mrf.mxu0
    %v1780 = vadd.f32 0.0, %v1779
    %v1781 = vpop.f32.mrf.mxu0
    %v1782 = vadd.f32 0.0, %v1781
    %1783 = vmatprep.mubr.bf16.mxu0 0
    %1784 = vmatmul.mubr.bf16.gmra.mxu0 %v1727
    %v1785 = vpop.f32.mrf.mxu0
    %v1786 = vadd.f32 0.0, %v1785
    %v1787 = vpop.f32.mrf.mxu0
    %v1788 = vadd.f32 0.0, %v1787
    %v1789 = vpop.f32.mrf.mxu0
    %v1790 = vadd.f32 0.0, %v1789
    %v1791 = vpop.f32.mrf.mxu0
    %v1792 = vadd.f32 0.0, %v1791
    %1793 = vdwg.mxu0
    %1794 = vmatprep.subr.bf16.mxu0 0
    %1795 = vmatpush1.bf16.msra.mxu0 0
    %1796 = vmatprep.subr.bf16.mxu0 0
    %1797 = vmatpush1.bf16.msra.mxu0 0
    %1798 = vmatprep.subr.bf16.mxu0 0
    %1799 = vmatpush1.bf16.msra.mxu0 0
    %1800 = vmatprep.subr.bf16.mxu0 0
    %1801 = vmatpush1.bf16.msra.mxu0 0
    %1802 = vmatprep.subr.bf16.mxu0 0
    %1803 = vmatpush1.bf16.msra.mxu0 0
    %1804 = vmatprep.subr.bf16.mxu0 %v1739
    %1805 = vmatpush1.bf16.msra.mxu0 %v1736
    %1806 = vmatprep.subr.bf16.mxu0 %v1708
    %1807 = vmatpush1.bf16.msra.mxu0 %v1707
    %1808 = vmatprep.subr.bf16.mxu0 %v1704
    %1809 = vmatpush1.bf16.msra.mxu0 %v1703
    %1810 = vmatprep.subr.bf16.mxu0 0
    %1811 = vmatpush2.bf16.msra.mxu0 0
    %1812 = vmatprep.subr.bf16.mxu0 0
    %1813 = vmatpush2.bf16.msra.mxu0 0
    %1814 = vmatprep.subr.bf16.mxu0 0
    %1815 = vmatpush2.bf16.msra.mxu0 0
    %1816 = vmatprep.subr.bf16.mxu0 0
    %1817 = vmatpush2.bf16.msra.mxu0 0
    %1818 = vmatprep.subr.bf16.mxu0 0
    %1819 = vmatpush2.bf16.msra.mxu0 0
    %1820 = vmatprep.subr.bf16.mxu0 0
    %1821 = vmatpush2.bf16.msra.mxu0 0
    %1822 = vmatprep.subr.bf16.mxu0 0
    %1823 = vmatpush2.bf16.msra.mxu0 0
    %1824 = vmatprep.subr.bf16.mxu0 0
    %1825 = vmatpush2.bf16.msra.mxu0 0
    %1826 = vmatprep.mubr.bf16.mxu0 0
    %1827 = vmatmul.mubr.bf16.gmra.mxu0 %v1724
    %v1828 = vpop.f32.mrf.mxu0
    %v1829 = vadd.f32 0.0, %v1828
    %v1830 = vpop.f32.mrf.mxu0
    %v1831 = vadd.f32 0.0, %v1830
    %v1832 = vpop.f32.mrf.mxu0
    %v1833 = vadd.f32 0.0, %v1832
    %v1834 = vpop.f32.mrf.mxu0
    %v1835 = vadd.f32 0.0, %v1834
    %1836 = vmatprep.mubr.bf16.mxu0 0
    %1837 = vmatmul.mubr.bf16.gmra.mxu0 %v1727
    %v1838 = vpop.f32.mrf.mxu0
    %v1839 = vadd.f32 0.0, %v1838
    %v1840 = vpop.f32.mrf.mxu0
    %v1841 = vadd.f32 0.0, %v1840
    %v1842 = vpop.f32.mrf.mxu0
    %v1843 = vadd.f32 0.0, %v1842
    %v1844 = vpop.f32.mrf.mxu0
    %v1845 = vadd.f32 0.0, %v1844
    %1846 = vdwg.mxu0
    %v1847 = vmul.f32 %v1776, 0.2
    %v1848 = vmul.f32 %v1778, 0.2
    %v1849 = vmul.f32 %v1829, 0.2
    %v1850 = vmul.f32 %v1831, 0.2
    %v1851 = vmul.f32 %v1780, 0.2
    %v1852 = vmul.f32 %v1782, 0.2
    %v1853 = vmul.f32 %v1833, 0.2
    %v1854 = vmul.f32 %v1835, 0.2
    %v1855 = vmul.f32 %v1786, 0.2
    %v1856 = vmul.f32 %v1788, 0.2
    %v1857 = vmul.f32 %v1839, 0.2
    %v1858 = vmul.f32 %v1841, 0.2
    %v1859 = vmul.f32 %v1790, 0.2
    %v1860 = vmul.f32 %v1792, 0.2
    %v1861 = vmul.f32 %v1843, 0.2
    %v1862 = vmul.f32 %v1845, 0.2
    %v1863 = vmax.f32 %v1776, %v1847
    %v1864 = vmax.f32 %v1778, %v1848
    %v1865 = vmax.f32 %v1829, %v1849
    %v1866 = vmax.f32 %v1831, %v1850
    %v1867 = vmax.f32 %v1780, %v1851
    %v1868 = vmax.f32 %v1782, %v1852
    %v1869 = vmax.f32 %v1833, %v1853
    %v1870 = vmax.f32 %v1835, %v1854
    %v1871 = vmax.f32 %v1786, %v1855
    %v1872 = vmax.f32 %v1788, %v1856
    %v1873 = vmax.f32 %v1839, %v1857
    %v1874 = vmax.f32 %v1841, %v1858
    %v1875 = vmax.f32 %v1790, %v1859
    %v1876 = vmax.f32 %v1792, %v1860
    %v1877 = vmax.f32 %v1843, %v1861
    %v1878 = vmax.f32 %v1845, %v1862
    %v1879 = vmul.f32 %v1863, %v73
    %v1880 = vmul.f32 %v1864, %v73
    %v1881 = vmul.f32 %v1865, %v73
    %v1882 = vmul.f32 %v1866, %v73
    %v1883 = vmul.f32 %v1867, %v78
    %v1884 = vmul.f32 %v1868, %v78
    %v1885 = vmul.f32 %v1869, %v78
    %v1886 = vmul.f32 %v1870, %v78
    %v1887 = vmul.f32 %v1871, %v83
    %v1888 = vmul.f32 %v1872, %v83
    %v1889 = vmul.f32 %v1873, %v83
    %v1890 = vmul.f32 %v1874, %v83
    %v1891 = vmul.f32 %v1875, %v88
    %v1892 = vmul.f32 %v1876, %v88
    %v1893 = vmul.f32 %v1877, %v88
    %v1894 = vmul.f32 %v1878, %v88
    %v1895 = vadd.f32 %v1879, %v1883
    %v1896 = vadd.f32 %v1895, %v1887
    %v1897 = vadd.f32 %v1896, %v1891
    %v1898 = vrot.slane %v1897, 4
    %v1899 = vadd.f32 %v1897, %v1898
    %v1900 = vrot.slane %v1899, 2
    %v1901 = vadd.f32 %v1899, %v1900
    %v1902 = vrot.slane %v1901, 1
    %v1903 = vadd.f32 %v1901, %v1902
    %v1904 = vadd.f32 %v1880, %v1884
    %v1905 = vadd.f32 %v1904, %v1888
    %v1906 = vadd.f32 %v1905, %v1892
    %v1907 = vrot.slane %v1906, 4
    %v1908 = vadd.f32 %v1906, %v1907
    %v1909 = vrot.slane %v1908, 2
    %v1910 = vadd.f32 %v1908, %v1909
    %v1911 = vrot.slane %v1910, 1
    %v1912 = vadd.f32 %v1910, %v1911
    %v1913 = vadd.f32 %v1881, %v1885
    %v1914 = vadd.f32 %v1913, %v1889
    %v1915 = vadd.f32 %v1914, %v1893
    %v1916 = vrot.slane %v1915, 4
    %v1917 = vadd.f32 %v1915, %v1916
    %v1918 = vrot.slane %v1917, 2
    %v1919 = vadd.f32 %v1917, %v1918
    %v1920 = vrot.slane %v1919, 1
    %v1921 = vadd.f32 %v1919, %v1920
    %v1922 = vadd.f32 %v1882, %v1886
    %v1923 = vadd.f32 %v1922, %v1890
    %v1924 = vadd.f32 %v1923, %v1894
    %v1925 = vrot.slane %v1924, 4
    %v1926 = vadd.f32 %v1924, %v1925
    %v1927 = vrot.slane %v1926, 2
    %v1928 = vadd.f32 %v1926, %v1927
    %v1929 = vrot.slane %v1928, 1
    %v1930 = vadd.f32 %v1928, %v1929
    %v1935 = vcombine.low %v1903, %v1912
    %v1936 = vcombine.low %v1921, %v1930
    %v1938 = vunpack.c.l.s4 1966171168
    %v1939 = vunpack.c.0.s8 %v1938
    %v1940 = vlaneseq
    %v1941 = vshrl.u32 %v1940, 7
    %v1942 = vsub.s32 %v1939, %v1941
    %v1943 = vrot.slane %v1935, %v1942
    %v1945 = vunpack.c.l.s4 1966171168
    %v1946 = vunpack.c.0.s8 %v1945
    %v1947 = vlaneseq
    %v1948 = vshrl.u32 %v1947, 7
    %v1949 = vsub.s32 %v1946, %v1948
    %v1950 = vrot.slane %v1936, %v1949
    %v1951 = vcombine.low %v1943, %v1950
    %v1953 = vunpack.c.l.s4 1966171168
    %v1954 = vunpack.c.0.s8 %v1953
    %v1955 = vlaneseq
    %v1956 = vshrl.u32 %v1955, 7
    %v1957 = vsub.s32 %v1954, %v1956
    %v1958 = vrot.slane %v1951, %v1957
    %s1960 = scalar_lea.vmem [#allocation2], 3
    %1961 = vst.msk [vmem:[%s1960] ss:$8 sm:$0xf] %vm592, %v1958
    %1962 = vst.msk [vmem:[%s1960] ss:$8 sm:$0x0] %vm592, %v1958
    %s1963 = scalar_lea.vmem [#allocation7], 80
    %v1964 = vld [vmem:[%s1963] sm:$0xf]
    %v1965 = vld [vmem:[%s1963 + $0x4] sm:$0xf]
    %v1966 = vld [vmem:[%s1963 + $0x8] sm:$0xf]
    %v1967 = vld [vmem:[%s1963 + $0xc] sm:$0xf]
    %v1968 = vld [vmem:[%s1963 + $0x10] sm:$0xf]
    %v1974 = vunpack.c.l.b16 %v1964
    %v1975 = vunpack.c.l.b16 %v1965
    %v1976 = vunpack.c.l.b16 %v1966
    %v1977 = vunpack.c.l.b16 %v1967
    %v1978 = vunpack.c.l.b16 %v1968
    %v1979 = vpack.c.b16 %v1975, %v1974
    %v1980 = vpack.c.b16 %v1977, %v1976
    %v1981 = vpack.c.b16 %v1978, %v1978
    %v1983 = vsel %vm150, %v1979, 0
    %v1986 = vsel %vm150, %v1980, 0
    %v1989 = vsel %vm150, %v1981, 0
    %1991 = vmatprep.subr.bf16.mxu0 0
    %1992 = vmatpush1.bf16.msra.mxu0 0
    %1993 = vmatprep.subr.bf16.mxu0 0
    %1994 = vmatpush1.bf16.msra.mxu0 0
    %1995 = vmatprep.subr.bf16.mxu0 0
    %1996 = vmatpush1.bf16.msra.mxu0 0
    %1997 = vmatprep.subr.bf16.mxu0 0
    %1998 = vmatpush1.bf16.msra.mxu0 0
    %1999 = vmatprep.subr.bf16.mxu0 0
    %2000 = vmatpush1.bf16.msra.mxu0 0
    %2001 = vmatprep.subr.bf16.mxu0 %v162
    %2002 = vmatpush1.bf16.msra.mxu0 %v162
    %2003 = vmatprep.subr.bf16.mxu0 %v128
    %2004 = vmatpush1.bf16.msra.mxu0 %v127
    %2005 = vmatprep.subr.bf16.mxu0 %v124
    %2006 = vmatpush1.bf16.msra.mxu0 %v123
    %2007 = vmatprep.subr.bf16.mxu0 0
    %2008 = vmatpush2.bf16.msra.mxu0 0
    %2009 = vmatprep.subr.bf16.mxu0 0
    %2010 = vmatpush2.bf16.msra.mxu0 0
    %2011 = vmatprep.subr.bf16.mxu0 0
    %2012 = vmatpush2.bf16.msra.mxu0 0
    %2013 = vmatprep.subr.bf16.mxu0 0
    %2014 = vmatpush2.bf16.msra.mxu0 0
    %2015 = vmatprep.subr.bf16.mxu0 0
    %2016 = vmatpush2.bf16.msra.mxu0 0
    %2017 = vmatprep.subr.bf16.mxu0 0
    %2018 = vmatpush2.bf16.msra.mxu0 0
    %2019 = vmatprep.subr.bf16.mxu0 0
    %2020 = vmatpush2.bf16.msra.mxu0 0
    %2021 = vmatprep.subr.bf16.mxu0 0
    %2022 = vmatpush2.bf16.msra.mxu0 0
    %2023 = vmatprep.mubr.bf16.mxu0 0
    %2024 = vmatmul.mubr.bf16.gmra.mxu0 %v1983
    %v2025 = vpop.f32.mrf.mxu0
    %v2026 = vadd.f32 0.0, %v2025
    %v2027 = vpop.f32.mrf.mxu0
    %v2028 = vadd.f32 0.0, %v2027
    %v2029 = vpop.f32.mrf.mxu0
    %v2030 = vadd.f32 0.0, %v2029
    %v2031 = vpop.f32.mrf.mxu0
    %v2032 = vadd.f32 0.0, %v2031
    %2033 = vmatprep.mubr.bf16.mxu0 0
    %2034 = vmatmul.mubr.bf16.gmra.mxu0 %v1986
    %v2035 = vpop.f32.mrf.mxu0
    %v2036 = vadd.f32 0.0, %v2035
    %v2037 = vpop.f32.mrf.mxu0
    %v2038 = vadd.f32 0.0, %v2037
    %v2039 = vpop.f32.mrf.mxu0
    %v2040 = vadd.f32 0.0, %v2039
    %v2041 = vpop.f32.mrf.mxu0
    %v2042 = vadd.f32 0.0, %v2041
    %2043 = vmatprep.mubr.bf16.mxu0 0
    %2044 = vmatmul.mubr.bf16.gmra.mxu0 %v1989
    %v2045 = vpop.f32.mrf.mxu0
    %v2046 = vadd.f32 0.0, %v2045
    %v2047 = vpop.f32.mrf.mxu0
    %v2048 = vadd.f32 0.0, %v2047
    %v2049 = vpop.f32.mrf.mxu0
    %v2050 = vpop.f32.mrf.mxu0
    %2051 = vdwg.mxu0
    %2052 = vmatprep.subr.bf16.mxu0 0
    %2053 = vmatpush1.bf16.msra.mxu0 0
    %2054 = vmatprep.subr.bf16.mxu0 0
    %2055 = vmatpush1.bf16.msra.mxu0 0
    %2056 = vmatprep.subr.bf16.mxu0 0
    %2057 = vmatpush1.bf16.msra.mxu0 0
    %2058 = vmatprep.subr.bf16.mxu0 0
    %2059 = vmatpush1.bf16.msra.mxu0 0
    %2060 = vmatprep.subr.bf16.mxu0 0
    %2061 = vmatpush1.bf16.msra.mxu0 0
    %2062 = vmatprep.subr.bf16.mxu0 %v162
    %2063 = vmatpush1.bf16.msra.mxu0 %v162
    %2064 = vmatprep.subr.bf16.mxu0 %v130
    %2065 = vmatpush1.bf16.msra.mxu0 %v129
    %2066 = vmatprep.subr.bf16.mxu0 %v126
    %2067 = vmatpush1.bf16.msra.mxu0 %v125
    %2068 = vmatprep.subr.bf16.mxu0 0
    %2069 = vmatpush2.bf16.msra.mxu0 0
    %2070 = vmatprep.subr.bf16.mxu0 0
    %2071 = vmatpush2.bf16.msra.mxu0 0
    %2072 = vmatprep.subr.bf16.mxu0 0
    %2073 = vmatpush2.bf16.msra.mxu0 0
    %2074 = vmatprep.subr.bf16.mxu0 0
    %2075 = vmatpush2.bf16.msra.mxu0 0
    %2076 = vmatprep.subr.bf16.mxu0 0
    %2077 = vmatpush2.bf16.msra.mxu0 0
    %2078 = vmatprep.subr.bf16.mxu0 0
    %2079 = vmatpush2.bf16.msra.mxu0 0
    %2080 = vmatprep.subr.bf16.mxu0 0
    %2081 = vmatpush2.bf16.msra.mxu0 0
    %2082 = vmatprep.subr.bf16.mxu0 0
    %2083 = vmatpush2.bf16.msra.mxu0 0
    %2084 = vmatprep.mubr.bf16.mxu0 0
    %2085 = vmatmul.mubr.bf16.gmra.mxu0 %v1983
    %v2086 = vpop.f32.mrf.mxu0
    %v2087 = vadd.f32 0.0, %v2086
    %v2088 = vpop.f32.mrf.mxu0
    %v2089 = vadd.f32 0.0, %v2088
    %v2090 = vpop.f32.mrf.mxu0
    %v2091 = vadd.f32 0.0, %v2090
    %v2092 = vpop.f32.mrf.mxu0
    %v2093 = vadd.f32 0.0, %v2092
    %2094 = vmatprep.mubr.bf16.mxu0 0
    %2095 = vmatmul.mubr.bf16.gmra.mxu0 %v1986
    %v2096 = vpop.f32.mrf.mxu0
    %v2097 = vadd.f32 0.0, %v2096
    %v2098 = vpop.f32.mrf.mxu0
    %v2099 = vadd.f32 0.0, %v2098
    %v2100 = vpop.f32.mrf.mxu0
    %v2101 = vadd.f32 0.0, %v2100
    %v2102 = vpop.f32.mrf.mxu0
    %v2103 = vadd.f32 0.0, %v2102
    %2104 = vmatprep.mubr.bf16.mxu0 0
    %2105 = vmatmul.mubr.bf16.gmra.mxu0 %v1989
    %v2106 = vpop.f32.mrf.mxu0
    %v2107 = vadd.f32 0.0, %v2106
    %v2108 = vpop.f32.mrf.mxu0
    %v2109 = vadd.f32 0.0, %v2108
    %v2110 = vpop.f32.mrf.mxu0
    %v2111 = vpop.f32.mrf.mxu0
    %2112 = vdwg.mxu0
    %v2113 = vmul.f32 %v2026, 0.2
    %v2114 = vmul.f32 %v2028, 0.2
    %v2115 = vmul.f32 %v2087, 0.2
    %v2116 = vmul.f32 %v2089, 0.2
    %v2117 = vmul.f32 %v2030, 0.2
    %v2118 = vmul.f32 %v2032, 0.2
    %v2119 = vmul.f32 %v2091, 0.2
    %v2120 = vmul.f32 %v2093, 0.2
    %v2121 = vmul.f32 %v2036, 0.2
    %v2122 = vmul.f32 %v2038, 0.2
    %v2123 = vmul.f32 %v2097, 0.2
    %v2124 = vmul.f32 %v2099, 0.2
    %v2125 = vmul.f32 %v2040, 0.2
    %v2126 = vmul.f32 %v2042, 0.2
    %v2127 = vmul.f32 %v2101, 0.2
    %v2128 = vmul.f32 %v2103, 0.2
    %v2129 = vmul.f32 %v2046, 0.2
    %v2130 = vmul.f32 %v2048, 0.2
    %v2131 = vmul.f32 %v2107, 0.2
    %v2132 = vmul.f32 %v2109, 0.2
    %v2133 = vmax.f32 %v2026, %v2113
    %v2134 = vmax.f32 %v2028, %v2114
    %v2135 = vmax.f32 %v2087, %v2115
    %v2136 = vmax.f32 %v2089, %v2116
    %v2137 = vmax.f32 %v2030, %v2117
    %v2138 = vmax.f32 %v2032, %v2118
    %v2139 = vmax.f32 %v2091, %v2119
    %v2140 = vmax.f32 %v2093, %v2120
    %v2141 = vmax.f32 %v2036, %v2121
    %v2142 = vmax.f32 %v2038, %v2122
    %v2143 = vmax.f32 %v2097, %v2123
    %v2144 = vmax.f32 %v2099, %v2124
    %v2145 = vmax.f32 %v2040, %v2125
    %v2146 = vmax.f32 %v2042, %v2126
    %v2147 = vmax.f32 %v2101, %v2127
    %v2148 = vmax.f32 %v2103, %v2128
    %v2149 = vmax.f32 %v2046, %v2129
    %v2150 = vmax.f32 %v2048, %v2130
    %v2151 = vmax.f32 %v2107, %v2131
    %v2152 = vmax.f32 %v2109, %v2132
    %v2153 = vld [vmem:[#allocation9] sm:$0xf]
    %v2154 = vld [vmem:[#allocation9 + $0x4] sm:$0xf]
    %v2155 = vld [vmem:[#allocation9 + $0x8] sm:$0xf]
    %v2156 = vld [vmem:[#allocation9 + $0xc] sm:$0xf]
    %v2157 = vpack.c.bf16 %v2137, %v2133
    %v2158 = vpack.c.bf16 %v2138, %v2134
    %v2159 = vpack.c.bf16 %v2139, %v2135
    %v2160 = vpack.c.bf16 %v2140, %v2136
    %v2161 = vpack.c.bf16 %v2145, %v2141
    %v2162 = vpack.c.bf16 %v2146, %v2142
    %v2163 = vpack.c.bf16 %v2147, %v2143
    %v2164 = vpack.c.bf16 %v2148, %v2144
    %v2165 = vpack.c.bf16 %v2149, %v2149
    %v2166 = vpack.c.bf16 %v2150, %v2150
    %v2167 = vpack.c.bf16 %v2151, %v2151
    %v2168 = vpack.c.bf16 %v2152, %v2152
    %v2173 = vunpack.c.l.b16 %v2153
    %v2174 = vunpack.c.l.b16 %v2154
    %v2175 = vunpack.c.l.b16 %v2155
    %v2176 = vunpack.c.l.b16 %v2156
    %v2177 = vpack.c.b16 %v2174, %v2173
    %v2178 = vpack.c.b16 %v2176, %v2175
    %v2180 = vsel %vm150, %v2177, 0
    %v2183 = vsel %vm150, %v2178, 0
    %v2186 = vsel %vm160, %v2165, 0
    %v2189 = vsel %vm160, %v2166, 0
    %v2192 = vsel %vm160, %v2167, 0
    %v2195 = vsel %vm160, %v2168, 0
    %2197 = vmatprep.subr.bf16.mxu0 0
    %2198 = vmatpush1.bf16.msra.mxu0 0
    %2199 = vmatprep.subr.bf16.mxu0 0
    %2200 = vmatpush1.bf16.msra.mxu0 0
    %2201 = vmatprep.subr.bf16.mxu0 0
    %2202 = vmatpush1.bf16.msra.mxu0 0
    %2203 = vmatprep.subr.bf16.mxu0 0
    %2204 = vmatpush1.bf16.msra.mxu0 0
    %2205 = vmatprep.subr.bf16.mxu0 0
    %2206 = vmatpush1.bf16.msra.mxu0 0
    %2207 = vmatprep.subr.bf16.mxu0 %v2189
    %2208 = vmatpush1.bf16.msra.mxu0 %v2186
    %2209 = vmatprep.subr.bf16.mxu0 %v2162
    %2210 = vmatpush1.bf16.msra.mxu0 %v2161
    %2211 = vmatprep.subr.bf16.mxu0 %v2158
    %2212 = vmatpush1.bf16.msra.mxu0 %v2157
    %2213 = vmatprep.subr.bf16.mxu0 0
    %2214 = vmatpush2.bf16.msra.mxu0 0
    %2215 = vmatprep.subr.bf16.mxu0 0
    %2216 = vmatpush2.bf16.msra.mxu0 0
    %2217 = vmatprep.subr.bf16.mxu0 0
    %2218 = vmatpush2.bf16.msra.mxu0 0
    %2219 = vmatprep.subr.bf16.mxu0 0
    %2220 = vmatpush2.bf16.msra.mxu0 0
    %2221 = vmatprep.subr.bf16.mxu0 0
    %2222 = vmatpush2.bf16.msra.mxu0 0
    %2223 = vmatprep.subr.bf16.mxu0 0
    %2224 = vmatpush2.bf16.msra.mxu0 0
    %2225 = vmatprep.subr.bf16.mxu0 0
    %2226 = vmatpush2.bf16.msra.mxu0 0
    %2227 = vmatprep.subr.bf16.mxu0 0
    %2228 = vmatpush2.bf16.msra.mxu0 0
    %2229 = vmatprep.mubr.bf16.mxu0 0
    %2230 = vmatmul.mubr.bf16.gmra.mxu0 %v2180
    %v2231 = vpop.f32.mrf.mxu0
    %v2232 = vadd.f32 0.0, %v2231
    %v2233 = vpop.f32.mrf.mxu0
    %v2234 = vadd.f32 0.0, %v2233
    %v2235 = vpop.f32.mrf.mxu0
    %v2236 = vadd.f32 0.0, %v2235
    %v2237 = vpop.f32.mrf.mxu0
    %v2238 = vadd.f32 0.0, %v2237
    %2239 = vmatprep.mubr.bf16.mxu0 0
    %2240 = vmatmul.mubr.bf16.gmra.mxu0 %v2183
    %v2241 = vpop.f32.mrf.mxu0
    %v2242 = vadd.f32 0.0, %v2241
    %v2243 = vpop.f32.mrf.mxu0
    %v2244 = vadd.f32 0.0, %v2243
    %v2245 = vpop.f32.mrf.mxu0
    %v2246 = vadd.f32 0.0, %v2245
    %v2247 = vpop.f32.mrf.mxu0
    %v2248 = vadd.f32 0.0, %v2247
    %2249 = vdwg.mxu0
    %2250 = vmatprep.subr.bf16.mxu0 0
    %2251 = vmatpush1.bf16.msra.mxu0 0
    %2252 = vmatprep.subr.bf16.mxu0 0
    %2253 = vmatpush1.bf16.msra.mxu0 0
    %2254 = vmatprep.subr.bf16.mxu0 0
    %2255 = vmatpush1.bf16.msra.mxu0 0
    %2256 = vmatprep.subr.bf16.mxu0 0
    %2257 = vmatpush1.bf16.msra.mxu0 0
    %2258 = vmatprep.subr.bf16.mxu0 0
    %2259 = vmatpush1.bf16.msra.mxu0 0
    %2260 = vmatprep.subr.bf16.mxu0 %v2195
    %2261 = vmatpush1.bf16.msra.mxu0 %v2192
    %2262 = vmatprep.subr.bf16.mxu0 %v2164
    %2263 = vmatpush1.bf16.msra.mxu0 %v2163
    %2264 = vmatprep.subr.bf16.mxu0 %v2160
    %2265 = vmatpush1.bf16.msra.mxu0 %v2159
    %2266 = vmatprep.subr.bf16.mxu0 0
    %2267 = vmatpush2.bf16.msra.mxu0 0
    %2268 = vmatprep.subr.bf16.mxu0 0
    %2269 = vmatpush2.bf16.msra.mxu0 0
    %2270 = vmatprep.subr.bf16.mxu0 0
    %2271 = vmatpush2.bf16.msra.mxu0 0
    %2272 = vmatprep.subr.bf16.mxu0 0
    %2273 = vmatpush2.bf16.msra.mxu0 0
    %2274 = vmatprep.subr.bf16.mxu0 0
    %2275 = vmatpush2.bf16.msra.mxu0 0
    %2276 = vmatprep.subr.bf16.mxu0 0
    %2277 = vmatpush2.bf16.msra.mxu0 0
    %2278 = vmatprep.subr.bf16.mxu0 0
    %2279 = vmatpush2.bf16.msra.mxu0 0
    %2280 = vmatprep.subr.bf16.mxu0 0
    %2281 = vmatpush2.bf16.msra.mxu0 0
    %2282 = vmatprep.mubr.bf16.mxu0 0
    %2283 = vmatmul.mubr.bf16.gmra.mxu0 %v2180
    %v2284 = vpop.f32.mrf.mxu0
    %v2285 = vadd.f32 0.0, %v2284
    %v2286 = vpop.f32.mrf.mxu0
    %v2287 = vadd.f32 0.0, %v2286
    %v2288 = vpop.f32.mrf.mxu0
    %v2289 = vadd.f32 0.0, %v2288
    %v2290 = vpop.f32.mrf.mxu0
    %v2291 = vadd.f32 0.0, %v2290
    %2292 = vmatprep.mubr.bf16.mxu0 0
    %2293 = vmatmul.mubr.bf16.gmra.mxu0 %v2183
    %v2294 = vpop.f32.mrf.mxu0
    %v2295 = vadd.f32 0.0, %v2294
    %v2296 = vpop.f32.mrf.mxu0
    %v2297 = vadd.f32 0.0, %v2296
    %v2298 = vpop.f32.mrf.mxu0
    %v2299 = vadd.f32 0.0, %v2298
    %v2300 = vpop.f32.mrf.mxu0
    %v2301 = vadd.f32 0.0, %v2300
    %2302 = vdwg.mxu0
    %v2303 = vmul.f32 %v2232, 0.2
    %v2304 = vmul.f32 %v2234, 0.2
    %v2305 = vmul.f32 %v2285, 0.2
    %v2306 = vmul.f32 %v2287, 0.2
    %v2307 = vmul.f32 %v2236, 0.2
    %v2308 = vmul.f32 %v2238, 0.2
    %v2309 = vmul.f32 %v2289, 0.2
    %v2310 = vmul.f32 %v2291, 0.2
    %v2311 = vmul.f32 %v2242, 0.2
    %v2312 = vmul.f32 %v2244, 0.2
    %v2313 = vmul.f32 %v2295, 0.2
    %v2314 = vmul.f32 %v2297, 0.2
    %v2315 = vmul.f32 %v2246, 0.2
    %v2316 = vmul.f32 %v2248, 0.2
    %v2317 = vmul.f32 %v2299, 0.2
    %v2318 = vmul.f32 %v2301, 0.2
    %v2319 = vmax.f32 %v2232, %v2303
    %v2320 = vmax.f32 %v2234, %v2304
    %v2321 = vmax.f32 %v2285, %v2305
    %v2322 = vmax.f32 %v2287, %v2306
    %v2323 = vmax.f32 %v2236, %v2307
    %v2324 = vmax.f32 %v2238, %v2308
    %v2325 = vmax.f32 %v2289, %v2309
    %v2326 = vmax.f32 %v2291, %v2310
    %v2327 = vmax.f32 %v2242, %v2311
    %v2328 = vmax.f32 %v2244, %v2312
    %v2329 = vmax.f32 %v2295, %v2313
    %v2330 = vmax.f32 %v2297, %v2314
    %v2331 = vmax.f32 %v2246, %v2315
    %v2332 = vmax.f32 %v2248, %v2316
    %v2333 = vmax.f32 %v2299, %v2317
    %v2334 = vmax.f32 %v2301, %v2318
    %v2335 = vmul.f32 %v2319, %v73
    %v2336 = vmul.f32 %v2320, %v73
    %v2337 = vmul.f32 %v2321, %v73
    %v2338 = vmul.f32 %v2322, %v73
    %v2339 = vmul.f32 %v2323, %v78
    %v2340 = vmul.f32 %v2324, %v78
    %v2341 = vmul.f32 %v2325, %v78
    %v2342 = vmul.f32 %v2326, %v78
    %v2343 = vmul.f32 %v2327, %v83
    %v2344 = vmul.f32 %v2328, %v83
    %v2345 = vmul.f32 %v2329, %v83
    %v2346 = vmul.f32 %v2330, %v83
    %v2347 = vmul.f32 %v2331, %v88
    %v2348 = vmul.f32 %v2332, %v88
    %v2349 = vmul.f32 %v2333, %v88
    %v2350 = vmul.f32 %v2334, %v88
    %v2351 = vadd.f32 %v2335, %v2339
    %v2352 = vadd.f32 %v2351, %v2343
    %v2353 = vadd.f32 %v2352, %v2347
    %v2354 = vrot.slane %v2353, 4
    %v2355 = vadd.f32 %v2353, %v2354
    %v2356 = vrot.slane %v2355, 2
    %v2357 = vadd.f32 %v2355, %v2356
    %v2358 = vrot.slane %v2357, 1
    %v2359 = vadd.f32 %v2357, %v2358
    %v2360 = vadd.f32 %v2336, %v2340
    %v2361 = vadd.f32 %v2360, %v2344
    %v2362 = vadd.f32 %v2361, %v2348
    %v2363 = vrot.slane %v2362, 4
    %v2364 = vadd.f32 %v2362, %v2363
    %v2365 = vrot.slane %v2364, 2
    %v2366 = vadd.f32 %v2364, %v2365
    %v2367 = vrot.slane %v2366, 1
    %v2368 = vadd.f32 %v2366, %v2367
    %v2369 = vadd.f32 %v2337, %v2341
    %v2370 = vadd.f32 %v2369, %v2345
    %v2371 = vadd.f32 %v2370, %v2349
    %v2372 = vrot.slane %v2371, 4
    %v2373 = vadd.f32 %v2371, %v2372
    %v2374 = vrot.slane %v2373, 2
    %v2375 = vadd.f32 %v2373, %v2374
    %v2376 = vrot.slane %v2375, 1
    %v2377 = vadd.f32 %v2375, %v2376
    %v2378 = vadd.f32 %v2338, %v2342
    %v2379 = vadd.f32 %v2378, %v2346
    %v2380 = vadd.f32 %v2379, %v2350
    %v2381 = vrot.slane %v2380, 4
    %v2382 = vadd.f32 %v2380, %v2381
    %v2383 = vrot.slane %v2382, 2
    %v2384 = vadd.f32 %v2382, %v2383
    %v2385 = vrot.slane %v2384, 1
    %v2386 = vadd.f32 %v2384, %v2385
    %v2391 = vcombine.low %v2359, %v2368
    %v2392 = vcombine.low %v2377, %v2386
    %v2394 = vunpack.c.l.s4 1966171168
    %v2395 = vunpack.c.0.s8 %v2394
    %v2396 = vlaneseq
    %v2397 = vshrl.u32 %v2396, 7
    %v2398 = vsub.s32 %v2395, %v2397
    %v2399 = vrot.slane %v2391, %v2398
    %v2401 = vunpack.c.l.s4 1966171168
    %v2402 = vunpack.c.0.s8 %v2401
    %v2403 = vlaneseq
    %v2404 = vshrl.u32 %v2403, 7
    %v2405 = vsub.s32 %v2402, %v2404
    %v2406 = vrot.slane %v2392, %v2405
    %v2407 = vcombine.low %v2399, %v2406
    %v2409 = vunpack.c.l.s4 1966171168
    %v2410 = vunpack.c.0.s8 %v2409
    %v2411 = vlaneseq
    %v2412 = vshrl.u32 %v2411, 7
    %v2413 = vsub.s32 %v2410, %v2412
    %v2414 = vrot.slane %v2407, %v2413
    %s2416 = scalar_lea.vmem [#allocation2], 4
    %2417 = vst.msk [vmem:[%s2416] ss:$8 sm:$0xf] %vm592, %v2414
    %2418 = vst.msk [vmem:[%s2416] ss:$8 sm:$0x0] %vm592, %v2414
    %s2419 = scalar_lea.vmem [#allocation7], 100
    %v2420 = vld [vmem:[%s2419] sm:$0xf]
    %v2421 = vld [vmem:[%s2419 + $0x4] sm:$0xf]
    %v2422 = vld [vmem:[%s2419 + $0x8] sm:$0xf]
    %v2423 = vld [vmem:[%s2419 + $0xc] sm:$0xf]
    %v2424 = vld [vmem:[%s2419 + $0x10] sm:$0xf]
    %v2430 = vunpack.c.l.b16 %v2420
    %v2431 = vunpack.c.l.b16 %v2421
    %v2432 = vunpack.c.l.b16 %v2422
    %v2433 = vunpack.c.l.b16 %v2423
    %v2434 = vunpack.c.l.b16 %v2424
    %v2435 = vpack.c.b16 %v2431, %v2430
    %v2436 = vpack.c.b16 %v2433, %v2432
    %v2437 = vpack.c.b16 %v2434, %v2434
    %v2439 = vsel %vm150, %v2435, 0
    %v2442 = vsel %vm150, %v2436, 0
    %v2445 = vsel %vm150, %v2437, 0
    %2447 = vmatprep.subr.bf16.mxu0 0
    %2448 = vmatpush1.bf16.msra.mxu0 0
    %2449 = vmatprep.subr.bf16.mxu0 0
    %2450 = vmatpush1.bf16.msra.mxu0 0
    %2451 = vmatprep.subr.bf16.mxu0 0
    %2452 = vmatpush1.bf16.msra.mxu0 0
    %2453 = vmatprep.subr.bf16.mxu0 0
    %2454 = vmatpush1.bf16.msra.mxu0 0
    %2455 = vmatprep.subr.bf16.mxu0 0
    %2456 = vmatpush1.bf16.msra.mxu0 0
    %2457 = vmatprep.subr.bf16.mxu0 %v162
    %2458 = vmatpush1.bf16.msra.mxu0 %v162
    %2459 = vmatprep.subr.bf16.mxu0 %v128
    %2460 = vmatpush1.bf16.msra.mxu0 %v127
    %2461 = vmatprep.subr.bf16.mxu0 %v124
    %2462 = vmatpush1.bf16.msra.mxu0 %v123
    %2463 = vmatprep.subr.bf16.mxu0 0
    %2464 = vmatpush2.bf16.msra.mxu0 0
    %2465 = vmatprep.subr.bf16.mxu0 0
    %2466 = vmatpush2.bf16.msra.mxu0 0
    %2467 = vmatprep.subr.bf16.mxu0 0
    %2468 = vmatpush2.bf16.msra.mxu0 0
    %2469 = vmatprep.subr.bf16.mxu0 0
    %2470 = vmatpush2.bf16.msra.mxu0 0
    %2471 = vmatprep.subr.bf16.mxu0 0
    %2472 = vmatpush2.bf16.msra.mxu0 0
    %2473 = vmatprep.subr.bf16.mxu0 0
    %2474 = vmatpush2.bf16.msra.mxu0 0
    %2475 = vmatprep.subr.bf16.mxu0 0
    %2476 = vmatpush2.bf16.msra.mxu0 0
    %2477 = vmatprep.subr.bf16.mxu0 0
    %2478 = vmatpush2.bf16.msra.mxu0 0
    %2479 = vmatprep.mubr.bf16.mxu0 0
    %2480 = vmatmul.mubr.bf16.gmra.mxu0 %v2439
    %v2481 = vpop.f32.mrf.mxu0
    %v2482 = vadd.f32 0.0, %v2481
    %v2483 = vpop.f32.mrf.mxu0
    %v2484 = vadd.f32 0.0, %v2483
    %v2485 = vpop.f32.mrf.mxu0
    %v2486 = vadd.f32 0.0, %v2485
    %v2487 = vpop.f32.mrf.mxu0
    %v2488 = vadd.f32 0.0, %v2487
    %2489 = vmatprep.mubr.bf16.mxu0 0
    %2490 = vmatmul.mubr.bf16.gmra.mxu0 %v2442
    %v2491 = vpop.f32.mrf.mxu0
    %v2492 = vadd.f32 0.0, %v2491
    %v2493 = vpop.f32.mrf.mxu0
    %v2494 = vadd.f32 0.0, %v2493
    %v2495 = vpop.f32.mrf.mxu0
    %v2496 = vadd.f32 0.0, %v2495
    %v2497 = vpop.f32.mrf.mxu0
    %v2498 = vadd.f32 0.0, %v2497
    %2499 = vmatprep.mubr.bf16.mxu0 0
    %2500 = vmatmul.mubr.bf16.gmra.mxu0 %v2445
    %v2501 = vpop.f32.mrf.mxu0
    %v2502 = vadd.f32 0.0, %v2501
    %v2503 = vpop.f32.mrf.mxu0
    %v2504 = vadd.f32 0.0, %v2503
    %v2505 = vpop.f32.mrf.mxu0
    %v2506 = vpop.f32.mrf.mxu0
    %2507 = vdwg.mxu0
    %2508 = vmatprep.subr.bf16.mxu0 0
    %2509 = vmatpush1.bf16.msra.mxu0 0
    %2510 = vmatprep.subr.bf16.mxu0 0
    %2511 = vmatpush1.bf16.msra.mxu0 0
    %2512 = vmatprep.subr.bf16.mxu0 0
    %2513 = vmatpush1.bf16.msra.mxu0 0
    %2514 = vmatprep.subr.bf16.mxu0 0
    %2515 = vmatpush1.bf16.msra.mxu0 0
    %2516 = vmatprep.subr.bf16.mxu0 0
    %2517 = vmatpush1.bf16.msra.mxu0 0
    %2518 = vmatprep.subr.bf16.mxu0 %v162
    %2519 = vmatpush1.bf16.msra.mxu0 %v162
    %2520 = vmatprep.subr.bf16.mxu0 %v130
    %2521 = vmatpush1.bf16.msra.mxu0 %v129
    %2522 = vmatprep.subr.bf16.mxu0 %v126
    %2523 = vmatpush1.bf16.msra.mxu0 %v125
    %2524 = vmatprep.subr.bf16.mxu0 0
    %2525 = vmatpush2.bf16.msra.mxu0 0
    %2526 = vmatprep.subr.bf16.mxu0 0
    %2527 = vmatpush2.bf16.msra.mxu0 0
    %2528 = vmatprep.subr.bf16.mxu0 0
    %2529 = vmatpush2.bf16.msra.mxu0 0
    %2530 = vmatprep.subr.bf16.mxu0 0
    %2531 = vmatpush2.bf16.msra.mxu0 0
    %2532 = vmatprep.subr.bf16.mxu0 0
    %2533 = vmatpush2.bf16.msra.mxu0 0
    %2534 = vmatprep.subr.bf16.mxu0 0
    %2535 = vmatpush2.bf16.msra.mxu0 0
    %2536 = vmatprep.subr.bf16.mxu0 0
    %2537 = vmatpush2.bf16.msra.mxu0 0
    %2538 = vmatprep.subr.bf16.mxu0 0
    %2539 = vmatpush2.bf16.msra.mxu0 0
    %2540 = vmatprep.mubr.bf16.mxu0 0
    %2541 = vmatmul.mubr.bf16.gmra.mxu0 %v2439
    %v2542 = vpop.f32.mrf.mxu0
    %v2543 = vadd.f32 0.0, %v2542
    %v2544 = vpop.f32.mrf.mxu0
    %v2545 = vadd.f32 0.0, %v2544
    %v2546 = vpop.f32.mrf.mxu0
    %v2547 = vadd.f32 0.0, %v2546
    %v2548 = vpop.f32.mrf.mxu0
    %v2549 = vadd.f32 0.0, %v2548
    %2550 = vmatprep.mubr.bf16.mxu0 0
    %2551 = vmatmul.mubr.bf16.gmra.mxu0 %v2442
    %v2552 = vpop.f32.mrf.mxu0
    %v2553 = vadd.f32 0.0, %v2552
    %v2554 = vpop.f32.mrf.mxu0
    %v2555 = vadd.f32 0.0, %v2554
    %v2556 = vpop.f32.mrf.mxu0
    %v2557 = vadd.f32 0.0, %v2556
    %v2558 = vpop.f32.mrf.mxu0
    %v2559 = vadd.f32 0.0, %v2558
    %2560 = vmatprep.mubr.bf16.mxu0 0
    %2561 = vmatmul.mubr.bf16.gmra.mxu0 %v2445
    %v2562 = vpop.f32.mrf.mxu0
    %v2563 = vadd.f32 0.0, %v2562
    %v2564 = vpop.f32.mrf.mxu0
    %v2565 = vadd.f32 0.0, %v2564
    %v2566 = vpop.f32.mrf.mxu0
    %v2567 = vpop.f32.mrf.mxu0
    %2568 = vdwg.mxu0
    %v2569 = vmul.f32 %v2482, 0.2
    %v2570 = vmul.f32 %v2484, 0.2
    %v2571 = vmul.f32 %v2543, 0.2
    %v2572 = vmul.f32 %v2545, 0.2
    %v2573 = vmul.f32 %v2486, 0.2
    %v2574 = vmul.f32 %v2488, 0.2
    %v2575 = vmul.f32 %v2547, 0.2
    %v2576 = vmul.f32 %v2549, 0.2
    %v2577 = vmul.f32 %v2492, 0.2
    %v2578 = vmul.f32 %v2494, 0.2
    %v2579 = vmul.f32 %v2553, 0.2
    %v2580 = vmul.f32 %v2555, 0.2
    %v2581 = vmul.f32 %v2496, 0.2
    %v2582 = vmul.f32 %v2498, 0.2
    %v2583 = vmul.f32 %v2557, 0.2
    %v2584 = vmul.f32 %v2559, 0.2
    %v2585 = vmul.f32 %v2502, 0.2
    %v2586 = vmul.f32 %v2504, 0.2
    %v2587 = vmul.f32 %v2563, 0.2
    %v2588 = vmul.f32 %v2565, 0.2
    %v2589 = vmax.f32 %v2482, %v2569
    %v2590 = vmax.f32 %v2484, %v2570
    %v2591 = vmax.f32 %v2543, %v2571
    %v2592 = vmax.f32 %v2545, %v2572
    %v2593 = vmax.f32 %v2486, %v2573
    %v2594 = vmax.f32 %v2488, %v2574
    %v2595 = vmax.f32 %v2547, %v2575
    %v2596 = vmax.f32 %v2549, %v2576
    %v2597 = vmax.f32 %v2492, %v2577
    %v2598 = vmax.f32 %v2494, %v2578
    %v2599 = vmax.f32 %v2553, %v2579
    %v2600 = vmax.f32 %v2555, %v2580
    %v2601 = vmax.f32 %v2496, %v2581
    %v2602 = vmax.f32 %v2498, %v2582
    %v2603 = vmax.f32 %v2557, %v2583
    %v2604 = vmax.f32 %v2559, %v2584
    %v2605 = vmax.f32 %v2502, %v2585
    %v2606 = vmax.f32 %v2504, %v2586
    %v2607 = vmax.f32 %v2563, %v2587
    %v2608 = vmax.f32 %v2565, %v2588
    %v2609 = vld [vmem:[#allocation9] sm:$0xf]
    %v2610 = vld [vmem:[#allocation9 + $0x4] sm:$0xf]
    %v2611 = vld [vmem:[#allocation9 + $0x8] sm:$0xf]
    %v2612 = vld [vmem:[#allocation9 + $0xc] sm:$0xf]
    %v2613 = vpack.c.bf16 %v2593, %v2589
    %v2614 = vpack.c.bf16 %v2594, %v2590
    %v2615 = vpack.c.bf16 %v2595, %v2591
    %v2616 = vpack.c.bf16 %v2596, %v2592
    %v2617 = vpack.c.bf16 %v2601, %v2597
    %v2618 = vpack.c.bf16 %v2602, %v2598
    %v2619 = vpack.c.bf16 %v2603, %v2599
    %v2620 = vpack.c.bf16 %v2604, %v2600
    %v2621 = vpack.c.bf16 %v2605, %v2605
    %v2622 = vpack.c.bf16 %v2606, %v2606
    %v2623 = vpack.c.bf16 %v2607, %v2607
    %v2624 = vpack.c.bf16 %v2608, %v2608
    %v2629 = vunpack.c.l.b16 %v2609
    %v2630 = vunpack.c.l.b16 %v2610
    %v2631 = vunpack.c.l.b16 %v2611
    %v2632 = vunpack.c.l.b16 %v2612
    %v2633 = vpack.c.b16 %v2630, %v2629
    %v2634 = vpack.c.b16 %v2632, %v2631
    %v2636 = vsel %vm150, %v2633, 0
    %v2639 = vsel %vm150, %v2634, 0
    %v2642 = vsel %vm160, %v2621, 0
    %v2645 = vsel %vm160, %v2622, 0
    %v2648 = vsel %vm160, %v2623, 0
    %v2651 = vsel %vm160, %v2624, 0
    %2653 = vmatprep.subr.bf16.mxu0 0
    %2654 = vmatpush1.bf16.msra.mxu0 0
    %2655 = vmatprep.subr.bf16.mxu0 0
    %2656 = vmatpush1.bf16.msra.mxu0 0
    %2657 = vmatprep.subr.bf16.mxu0 0
    %2658 = vmatpush1.bf16.msra.mxu0 0
    %2659 = vmatprep.subr.bf16.mxu0 0
    %2660 = vmatpush1.bf16.msra.mxu0 0
    %2661 = vmatprep.subr.bf16.mxu0 0
    %2662 = vmatpush1.bf16.msra.mxu0 0
    %2663 = vmatprep.subr.bf16.mxu0 %v2645
    %2664 = vmatpush1.bf16.msra.mxu0 %v2642
    %2665 = vmatprep.subr.bf16.mxu0 %v2618
    %2666 = vmatpush1.bf16.msra.mxu0 %v2617
    %2667 = vmatprep.subr.bf16.mxu0 %v2614
    %2668 = vmatpush1.bf16.msra.mxu0 %v2613
    %2669 = vmatprep.subr.bf16.mxu0 0
    %2670 = vmatpush2.bf16.msra.mxu0 0
    %2671 = vmatprep.subr.bf16.mxu0 0
    %2672 = vmatpush2.bf16.msra.mxu0 0
    %2673 = vmatprep.subr.bf16.mxu0 0
    %2674 = vmatpush2.bf16.msra.mxu0 0
    %2675 = vmatprep.subr.bf16.mxu0 0
    %2676 = vmatpush2.bf16.msra.mxu0 0
    %2677 = vmatprep.subr.bf16.mxu0 0
    %2678 = vmatpush2.bf16.msra.mxu0 0
    %2679 = vmatprep.subr.bf16.mxu0 0
    %2680 = vmatpush2.bf16.msra.mxu0 0
    %2681 = vmatprep.subr.bf16.mxu0 0
    %2682 = vmatpush2.bf16.msra.mxu0 0
    %2683 = vmatprep.subr.bf16.mxu0 0
    %2684 = vmatpush2.bf16.msra.mxu0 0
    %2685 = vmatprep.mubr.bf16.mxu0 0
    %2686 = vmatmul.mubr.bf16.gmra.mxu0 %v2636
    %v2687 = vpop.f32.mrf.mxu0
    %v2688 = vadd.f32 0.0, %v2687
    %v2689 = vpop.f32.mrf.mxu0
    %v2690 = vadd.f32 0.0, %v2689
    %v2691 = vpop.f32.mrf.mxu0
    %v2692 = vadd.f32 0.0, %v2691
    %v2693 = vpop.f32.mrf.mxu0
    %v2694 = vadd.f32 0.0, %v2693
    %2695 = vmatprep.mubr.bf16.mxu0 0
    %2696 = vmatmul.mubr.bf16.gmra.mxu0 %v2639
    %v2697 = vpop.f32.mrf.mxu0
    %v2698 = vadd.f32 0.0, %v2697
    %v2699 = vpop.f32.mrf.mxu0
    %v2700 = vadd.f32 0.0, %v2699
    %v2701 = vpop.f32.mrf.mxu0
    %v2702 = vadd.f32 0.0, %v2701
    %v2703 = vpop.f32.mrf.mxu0
    %v2704 = vadd.f32 0.0, %v2703
    %2705 = vdwg.mxu0
    %2706 = vmatprep.subr.bf16.mxu0 0
    %2707 = vmatpush1.bf16.msra.mxu0 0
    %2708 = vmatprep.subr.bf16.mxu0 0
    %2709 = vmatpush1.bf16.msra.mxu0 0
    %2710 = vmatprep.subr.bf16.mxu0 0
    %2711 = vmatpush1.bf16.msra.mxu0 0
    %2712 = vmatprep.subr.bf16.mxu0 0
    %2713 = vmatpush1.bf16.msra.mxu0 0
    %2714 = vmatprep.subr.bf16.mxu0 0
    %2715 = vmatpush1.bf16.msra.mxu0 0
    %2716 = vmatprep.subr.bf16.mxu0 %v2651
    %2717 = vmatpush1.bf16.msra.mxu0 %v2648
    %2718 = vmatprep.subr.bf16.mxu0 %v2620
    %2719 = vmatpush1.bf16.msra.mxu0 %v2619
    %2720 = vmatprep.subr.bf16.mxu0 %v2616
    %2721 = vmatpush1.bf16.msra.mxu0 %v2615
    %2722 = vmatprep.subr.bf16.mxu0 0
    %2723 = vmatpush2.bf16.msra.mxu0 0
    %2724 = vmatprep.subr.bf16.mxu0 0
    %2725 = vmatpush2.bf16.msra.mxu0 0
    %2726 = vmatprep.subr.bf16.mxu0 0
    %2727 = vmatpush2.bf16.msra.mxu0 0
    %2728 = vmatprep.subr.bf16.mxu0 0
    %2729 = vmatpush2.bf16.msra.mxu0 0
    %2730 = vmatprep.subr.bf16.mxu0 0
    %2731 = vmatpush2.bf16.msra.mxu0 0
    %2732 = vmatprep.subr.bf16.mxu0 0
    %2733 = vmatpush2.bf16.msra.mxu0 0
    %2734 = vmatprep.subr.bf16.mxu0 0
    %2735 = vmatpush2.bf16.msra.mxu0 0
    %2736 = vmatprep.subr.bf16.mxu0 0
    %2737 = vmatpush2.bf16.msra.mxu0 0
    %2738 = vmatprep.mubr.bf16.mxu0 0
    %2739 = vmatmul.mubr.bf16.gmra.mxu0 %v2636
    %v2740 = vpop.f32.mrf.mxu0
    %v2741 = vadd.f32 0.0, %v2740
    %v2742 = vpop.f32.mrf.mxu0
    %v2743 = vadd.f32 0.0, %v2742
    %v2744 = vpop.f32.mrf.mxu0
    %v2745 = vadd.f32 0.0, %v2744
    %v2746 = vpop.f32.mrf.mxu0
    %v2747 = vadd.f32 0.0, %v2746
    %2748 = vmatprep.mubr.bf16.mxu0 0
    %2749 = vmatmul.mubr.bf16.gmra.mxu0 %v2639
    %v2750 = vpop.f32.mrf.mxu0
    %v2751 = vadd.f32 0.0, %v2750
    %v2752 = vpop.f32.mrf.mxu0
    %v2753 = vadd.f32 0.0, %v2752
    %v2754 = vpop.f32.mrf.mxu0
    %v2755 = vadd.f32 0.0, %v2754
    %v2756 = vpop.f32.mrf.mxu0
    %v2757 = vadd.f32 0.0, %v2756
    %2758 = vdwg.mxu0
    %v2759 = vmul.f32 %v2688, 0.2
    %v2760 = vmul.f32 %v2690, 0.2
    %v2761 = vmul.f32 %v2741, 0.2
    %v2762 = vmul.f32 %v2743, 0.2
    %v2763 = vmul.f32 %v2692, 0.2
    %v2764 = vmul.f32 %v2694, 0.2
    %v2765 = vmul.f32 %v2745, 0.2
    %v2766 = vmul.f32 %v2747, 0.2
    %v2767 = vmul.f32 %v2698, 0.2
    %v2768 = vmul.f32 %v2700, 0.2
    %v2769 = vmul.f32 %v2751, 0.2
    %v2770 = vmul.f32 %v2753, 0.2
    %v2771 = vmul.f32 %v2702, 0.2
    %v2772 = vmul.f32 %v2704, 0.2
    %v2773 = vmul.f32 %v2755, 0.2
    %v2774 = vmul.f32 %v2757, 0.2
    %v2775 = vmax.f32 %v2688, %v2759
    %v2776 = vmax.f32 %v2690, %v2760
    %v2777 = vmax.f32 %v2741, %v2761
    %v2778 = vmax.f32 %v2743, %v2762
    %v2779 = vmax.f32 %v2692, %v2763
    %v2780 = vmax.f32 %v2694, %v2764
    %v2781 = vmax.f32 %v2745, %v2765
    %v2782 = vmax.f32 %v2747, %v2766
    %v2783 = vmax.f32 %v2698, %v2767
    %v2784 = vmax.f32 %v2700, %v2768
    %v2785 = vmax.f32 %v2751, %v2769
    %v2786 = vmax.f32 %v2753, %v2770
    %v2787 = vmax.f32 %v2702, %v2771
    %v2788 = vmax.f32 %v2704, %v2772
    %v2789 = vmax.f32 %v2755, %v2773
    %v2790 = vmax.f32 %v2757, %v2774
    %v2791 = vmul.f32 %v2775, %v73
    %v2792 = vmul.f32 %v2776, %v73
    %v2793 = vmul.f32 %v2777, %v73
    %v2794 = vmul.f32 %v2778, %v73
    %v2795 = vmul.f32 %v2779, %v78
    %v2796 = vmul.f32 %v2780, %v78
    %v2797 = vmul.f32 %v2781, %v78
    %v2798 = vmul.f32 %v2782, %v78
    %v2799 = vmul.f32 %v2783, %v83
    %v2800 = vmul.f32 %v2784, %v83
    %v2801 = vmul.f32 %v2785, %v83
    %v2802 = vmul.f32 %v2786, %v83
    %v2803 = vmul.f32 %v2787, %v88
    %v2804 = vmul.f32 %v2788, %v88
    %v2805 = vmul.f32 %v2789, %v88
    %v2806 = vmul.f32 %v2790, %v88
    %v2807 = vadd.f32 %v2791, %v2795
    %v2808 = vadd.f32 %v2807, %v2799
    %v2809 = vadd.f32 %v2808, %v2803
    %v2810 = vrot.slane %v2809, 4
    %v2811 = vadd.f32 %v2809, %v2810
    %v2812 = vrot.slane %v2811, 2
    %v2813 = vadd.f32 %v2811, %v2812
    %v2814 = vrot.slane %v2813, 1
    %v2815 = vadd.f32 %v2813, %v2814
    %v2816 = vadd.f32 %v2792, %v2796
    %v2817 = vadd.f32 %v2816, %v2800
    %v2818 = vadd.f32 %v2817, %v2804
    %v2819 = vrot.slane %v2818, 4
    %v2820 = vadd.f32 %v2818, %v2819
    %v2821 = vrot.slane %v2820, 2
    %v2822 = vadd.f32 %v2820, %v2821
    %v2823 = vrot.slane %v2822, 1
    %v2824 = vadd.f32 %v2822, %v2823
    %v2825 = vadd.f32 %v2793, %v2797
    %v2826 = vadd.f32 %v2825, %v2801
    %v2827 = vadd.f32 %v2826, %v2805
    %v2828 = vrot.slane %v2827, 4
    %v2829 = vadd.f32 %v2827, %v2828
    %v2830 = vrot.slane %v2829, 2
    %v2831 = vadd.f32 %v2829, %v2830
    %v2832 = vrot.slane %v2831, 1
    %v2833 = vadd.f32 %v2831, %v2832
    %v2834 = vadd.f32 %v2794, %v2798
    %v2835 = vadd.f32 %v2834, %v2802
    %v2836 = vadd.f32 %v2835, %v2806
    %v2837 = vrot.slane %v2836, 4
    %v2838 = vadd.f32 %v2836, %v2837
    %v2839 = vrot.slane %v2838, 2
    %v2840 = vadd.f32 %v2838, %v2839
    %v2841 = vrot.slane %v2840, 1
    %v2842 = vadd.f32 %v2840, %v2841
    %v2847 = vcombine.low %v2815, %v2824
    %v2848 = vcombine.low %v2833, %v2842
    %v2850 = vunpack.c.l.s4 1966171168
    %v2851 = vunpack.c.0.s8 %v2850
    %v2852 = vlaneseq
    %v2853 = vshrl.u32 %v2852, 7
    %v2854 = vsub.s32 %v2851, %v2853
    %v2855 = vrot.slane %v2847, %v2854
    %v2857 = vunpack.c.l.s4 1966171168
    %v2858 = vunpack.c.0.s8 %v2857
    %v2859 = vlaneseq
    %v2860 = vshrl.u32 %v2859, 7
    %v2861 = vsub.s32 %v2858, %v2860
    %v2862 = vrot.slane %v2848, %v2861
    %v2863 = vcombine.low %v2855, %v2862
    %v2865 = vunpack.c.l.s4 1966171168
    %v2866 = vunpack.c.0.s8 %v2865
    %v2867 = vlaneseq
    %v2868 = vshrl.u32 %v2867, 7
    %v2869 = vsub.s32 %v2866, %v2868
    %v2870 = vrot.slane %v2863, %v2869
    %s2872 = scalar_lea.vmem [#allocation2], 5
    %2873 = vst.msk [vmem:[%s2872] ss:$8 sm:$0xf] %vm592, %v2870
    %2874 = vst.msk [vmem:[%s2872] ss:$8 sm:$0x0] %vm592, %v2870
    %s2875 = scalar_lea.vmem [#allocation7], 120
    %v2876 = vld [vmem:[%s2875] sm:$0xf]
    %v2877 = vld [vmem:[%s2875 + $0x4] sm:$0xf]
    %v2878 = vld [vmem:[%s2875 + $0x8] sm:$0xf]
    %v2879 = vld [vmem:[%s2875 + $0xc] sm:$0xf]
    %v2880 = vld [vmem:[%s2875 + $0x10] sm:$0xf]
    %v2886 = vunpack.c.l.b16 %v2876
    %v2887 = vunpack.c.l.b16 %v2877
    %v2888 = vunpack.c.l.b16 %v2878
    %v2889 = vunpack.c.l.b16 %v2879
    %v2890 = vunpack.c.l.b16 %v2880
    %v2891 = vpack.c.b16 %v2887, %v2886
    %v2892 = vpack.c.b16 %v2889, %v2888
    %v2893 = vpack.c.b16 %v2890, %v2890
    %v2895 = vsel %vm150, %v2891, 0
    %v2898 = vsel %vm150, %v2892, 0
    %v2901 = vsel %vm150, %v2893, 0
    %2903 = vmatprep.subr.bf16.mxu0 0
    %2904 = vmatpush1.bf16.msra.mxu0 0
    %2905 = vmatprep.subr.bf16.mxu0 0
    %2906 = vmatpush1.bf16.msra.mxu0 0
    %2907 = vmatprep.subr.bf16.mxu0 0
    %2908 = vmatpush1.bf16.msra.mxu0 0
    %2909 = vmatprep.subr.bf16.mxu0 0
    %2910 = vmatpush1.bf16.msra.mxu0 0
    %2911 = vmatprep.subr.bf16.mxu0 0
    %2912 = vmatpush1.bf16.msra.mxu0 0
    %2913 = vmatprep.subr.bf16.mxu0 %v162
    %2914 = vmatpush1.bf16.msra.mxu0 %v162
    %2915 = vmatprep.subr.bf16.mxu0 %v128
    %2916 = vmatpush1.bf16.msra.mxu0 %v127
    %2917 = vmatprep.subr.bf16.mxu0 %v124
    %2918 = vmatpush1.bf16.msra.mxu0 %v123
    %2919 = vmatprep.subr.bf16.mxu0 0
    %2920 = vmatpush2.bf16.msra.mxu0 0
    %2921 = vmatprep.subr.bf16.mxu0 0
    %2922 = vmatpush2.bf16.msra.mxu0 0
    %2923 = vmatprep.subr.bf16.mxu0 0
    %2924 = vmatpush2.bf16.msra.mxu0 0
    %2925 = vmatprep.subr.bf16.mxu0 0
    %2926 = vmatpush2.bf16.msra.mxu0 0
    %2927 = vmatprep.subr.bf16.mxu0 0
    %2928 = vmatpush2.bf16.msra.mxu0 0
    %2929 = vmatprep.subr.bf16.mxu0 0
    %2930 = vmatpush2.bf16.msra.mxu0 0
    %2931 = vmatprep.subr.bf16.mxu0 0
    %2932 = vmatpush2.bf16.msra.mxu0 0
    %2933 = vmatprep.subr.bf16.mxu0 0
    %2934 = vmatpush2.bf16.msra.mxu0 0
    %2935 = vmatprep.mubr.bf16.mxu0 0
    %2936 = vmatmul.mubr.bf16.gmra.mxu0 %v2895
    %v2937 = vpop.f32.mrf.mxu0
    %v2938 = vadd.f32 0.0, %v2937
    %v2939 = vpop.f32.mrf.mxu0
    %v2940 = vadd.f32 0.0, %v2939
    %v2941 = vpop.f32.mrf.mxu0
    %v2942 = vadd.f32 0.0, %v2941
    %v2943 = vpop.f32.mrf.mxu0
    %v2944 = vadd.f32 0.0, %v2943
    %2945 = vmatprep.mubr.bf16.mxu0 0
    %2946 = vmatmul.mubr.bf16.gmra.mxu0 %v2898
    %v2947 = vpop.f32.mrf.mxu0
    %v2948 = vadd.f32 0.0, %v2947
    %v2949 = vpop.f32.mrf.mxu0
    %v2950 = vadd.f32 0.0, %v2949
    %v2951 = vpop.f32.mrf.mxu0
    %v2952 = vadd.f32 0.0, %v2951
    %v2953 = vpop.f32.mrf.mxu0
    %v2954 = vadd.f32 0.0, %v2953
    %2955 = vmatprep.mubr.bf16.mxu0 0
    %2956 = vmatmul.mubr.bf16.gmra.mxu0 %v2901
    %v2957 = vpop.f32.mrf.mxu0
    %v2958 = vadd.f32 0.0, %v2957
    %v2959 = vpop.f32.mrf.mxu0
    %v2960 = vadd.f32 0.0, %v2959
    %v2961 = vpop.f32.mrf.mxu0
    %v2962 = vpop.f32.mrf.mxu0
    %2963 = vdwg.mxu0
    %2964 = vmatprep.subr.bf16.mxu0 0
    %2965 = vmatpush1.bf16.msra.mxu0 0
    %2966 = vmatprep.subr.bf16.mxu0 0
    %2967 = vmatpush1.bf16.msra.mxu0 0
    %2968 = vmatprep.subr.bf16.mxu0 0
    %2969 = vmatpush1.bf16.msra.mxu0 0
    %2970 = vmatprep.subr.bf16.mxu0 0
    %2971 = vmatpush1.bf16.msra.mxu0 0
    %2972 = vmatprep.subr.bf16.mxu0 0
    %2973 = vmatpush1.bf16.msra.mxu0 0
    %2974 = vmatprep.subr.bf16.mxu0 %v162
    %2975 = vmatpush1.bf16.msra.mxu0 %v162
    %2976 = vmatprep.subr.bf16.mxu0 %v130
    %2977 = vmatpush1.bf16.msra.mxu0 %v129
    %2978 = vmatprep.subr.bf16.mxu0 %v126
    %2979 = vmatpush1.bf16.msra.mxu0 %v125
    %2980 = vmatprep.subr.bf16.mxu0 0
    %2981 = vmatpush2.bf16.msra.mxu0 0
    %2982 = vmatprep.subr.bf16.mxu0 0
    %2983 = vmatpush2.bf16.msra.mxu0 0
    %2984 = vmatprep.subr.bf16.mxu0 0
    %2985 = vmatpush2.bf16.msra.mxu0 0
    %2986 = vmatprep.subr.bf16.mxu0 0
    %2987 = vmatpush2.bf16.msra.mxu0 0
    %2988 = vmatprep.subr.bf16.mxu0 0
    %2989 = vmatpush2.bf16.msra.mxu0 0
    %2990 = vmatprep.subr.bf16.mxu0 0
    %2991 = vmatpush2.bf16.msra.mxu0 0
    %2992 = vmatprep.subr.bf16.mxu0 0
    %2993 = vmatpush2.bf16.msra.mxu0 0
    %2994 = vmatprep.subr.bf16.mxu0 0
    %2995 = vmatpush2.bf16.msra.mxu0 0
    %2996 = vmatprep.mubr.bf16.mxu0 0
    %2997 = vmatmul.mubr.bf16.gmra.mxu0 %v2895
    %v2998 = vpop.f32.mrf.mxu0
    %v2999 = vadd.f32 0.0, %v2998
    %v3000 = vpop.f32.mrf.mxu0
    %v3001 = vadd.f32 0.0, %v3000
    %v3002 = vpop.f32.mrf.mxu0
    %v3003 = vadd.f32 0.0, %v3002
    %v3004 = vpop.f32.mrf.mxu0
    %v3005 = vadd.f32 0.0, %v3004
    %3006 = vmatprep.mubr.bf16.mxu0 0
    %3007 = vmatmul.mubr.bf16.gmra.mxu0 %v2898
    %v3008 = vpop.f32.mrf.mxu0
    %v3009 = vadd.f32 0.0, %v3008
    %v3010 = vpop.f32.mrf.mxu0
    %v3011 = vadd.f32 0.0, %v3010
    %v3012 = vpop.f32.mrf.mxu0
    %v3013 = vadd.f32 0.0, %v3012
    %v3014 = vpop.f32.mrf.mxu0
    %v3015 = vadd.f32 0.0, %v3014
    %3016 = vmatprep.mubr.bf16.mxu0 0
    %3017 = vmatmul.mubr.bf16.gmra.mxu0 %v2901
    %v3018 = vpop.f32.mrf.mxu0
    %v3019 = vadd.f32 0.0, %v3018
    %v3020 = vpop.f32.mrf.mxu0
    %v3021 = vadd.f32 0.0, %v3020
    %v3022 = vpop.f32.mrf.mxu0
    %v3023 = vpop.f32.mrf.mxu0
    %3024 = vdwg.mxu0
    %v3025 = vmul.f32 %v2938, 0.2
    %v3026 = vmul.f32 %v2940, 0.2
    %v3027 = vmul.f32 %v2999, 0.2
    %v3028 = vmul.f32 %v3001, 0.2
    %v3029 = vmul.f32 %v2942, 0.2
    %v3030 = vmul.f32 %v2944, 0.2
    %v3031 = vmul.f32 %v3003, 0.2
    %v3032 = vmul.f32 %v3005, 0.2
    %v3033 = vmul.f32 %v2948, 0.2
    %v3034 = vmul.f32 %v2950, 0.2
    %v3035 = vmul.f32 %v3009, 0.2
    %v3036 = vmul.f32 %v3011, 0.2
    %v3037 = vmul.f32 %v2952, 0.2
    %v3038 = vmul.f32 %v2954, 0.2
    %v3039 = vmul.f32 %v3013, 0.2
    %v3040 = vmul.f32 %v3015, 0.2
    %v3041 = vmul.f32 %v2958, 0.2
    %v3042 = vmul.f32 %v2960, 0.2
    %v3043 = vmul.f32 %v3019, 0.2
    %v3044 = vmul.f32 %v3021, 0.2
    %v3045 = vmax.f32 %v2938, %v3025
    %v3046 = vmax.f32 %v2940, %v3026
    %v3047 = vmax.f32 %v2999, %v3027
    %v3048 = vmax.f32 %v3001, %v3028
    %v3049 = vmax.f32 %v2942, %v3029
    %v3050 = vmax.f32 %v2944, %v3030
    %v3051 = vmax.f32 %v3003, %v3031
    %v3052 = vmax.f32 %v3005, %v3032
    %v3053 = vmax.f32 %v2948, %v3033
    %v3054 = vmax.f32 %v2950, %v3034
    %v3055 = vmax.f32 %v3009, %v3035
    %v3056 = vmax.f32 %v3011, %v3036
    %v3057 = vmax.f32 %v2952, %v3037
    %v3058 = vmax.f32 %v2954, %v3038
    %v3059 = vmax.f32 %v3013, %v3039
    %v3060 = vmax.f32 %v3015, %v3040
    %v3061 = vmax.f32 %v2958, %v3041
    %v3062 = vmax.f32 %v2960, %v3042
    %v3063 = vmax.f32 %v3019, %v3043
    %v3064 = vmax.f32 %v3021, %v3044
    %v3065 = vld [vmem:[#allocation9] sm:$0xf]
    %v3066 = vld [vmem:[#allocation9 + $0x4] sm:$0xf]
    %v3067 = vld [vmem:[#allocation9 + $0x8] sm:$0xf]
    %v3068 = vld [vmem:[#allocation9 + $0xc] sm:$0xf]
    %v3069 = vpack.c.bf16 %v3049, %v3045
    %v3070 = vpack.c.bf16 %v3050, %v3046
    %v3071 = vpack.c.bf16 %v3051, %v3047
    %v3072 = vpack.c.bf16 %v3052, %v3048
    %v3073 = vpack.c.bf16 %v3057, %v3053
    %v3074 = vpack.c.bf16 %v3058, %v3054
    %v3075 = vpack.c.bf16 %v3059, %v3055
    %v3076 = vpack.c.bf16 %v3060, %v3056
    %v3077 = vpack.c.bf16 %v3061, %v3061
    %v3078 = vpack.c.bf16 %v3062, %v3062
    %v3079 = vpack.c.bf16 %v3063, %v3063
    %v3080 = vpack.c.bf16 %v3064, %v3064
    %v3085 = vunpack.c.l.b16 %v3065
    %v3086 = vunpack.c.l.b16 %v3066
    %v3087 = vunpack.c.l.b16 %v3067
    %v3088 = vunpack.c.l.b16 %v3068
    %v3089 = vpack.c.b16 %v3086, %v3085
    %v3090 = vpack.c.b16 %v3088, %v3087
    %v3092 = vsel %vm150, %v3089, 0
    %v3095 = vsel %vm150, %v3090, 0
    %v3098 = vsel %vm160, %v3077, 0
    %v3101 = vsel %vm160, %v3078, 0
    %v3104 = vsel %vm160, %v3079, 0
    %v3107 = vsel %vm160, %v3080, 0
    %3109 = vmatprep.subr.bf16.mxu0 0
    %3110 = vmatpush1.bf16.msra.mxu0 0
    %3111 = vmatprep.subr.bf16.mxu0 0
    %3112 = vmatpush1.bf16.msra.mxu0 0
    %3113 = vmatprep.subr.bf16.mxu0 0
    %3114 = vmatpush1.bf16.msra.mxu0 0
    %3115 = vmatprep.subr.bf16.mxu0 0
    %3116 = vmatpush1.bf16.msra.mxu0 0
    %3117 = vmatprep.subr.bf16.mxu0 0
    %3118 = vmatpush1.bf16.msra.mxu0 0
    %3119 = vmatprep.subr.bf16.mxu0 %v3101
    %3120 = vmatpush1.bf16.msra.mxu0 %v3098
    %3121 = vmatprep.subr.bf16.mxu0 %v3074
    %3122 = vmatpush1.bf16.msra.mxu0 %v3073
    %3123 = vmatprep.subr.bf16.mxu0 %v3070
    %3124 = vmatpush1.bf16.msra.mxu0 %v3069
    %3125 = vmatprep.subr.bf16.mxu0 0
    %3126 = vmatpush2.bf16.msra.mxu0 0
    %3127 = vmatprep.subr.bf16.mxu0 0
    %3128 = vmatpush2.bf16.msra.mxu0 0
    %3129 = vmatprep.subr.bf16.mxu0 0
    %3130 = vmatpush2.bf16.msra.mxu0 0
    %3131 = vmatprep.subr.bf16.mxu0 0
    %3132 = vmatpush2.bf16.msra.mxu0 0
    %3133 = vmatprep.subr.bf16.mxu0 0
    %3134 = vmatpush2.bf16.msra.mxu0 0
    %3135 = vmatprep.subr.bf16.mxu0 0
    %3136 = vmatpush2.bf16.msra.mxu0 0
    %3137 = vmatprep.subr.bf16.mxu0 0
    %3138 = vmatpush2.bf16.msra.mxu0 0
    %3139 = vmatprep.subr.bf16.mxu0 0
    %3140 = vmatpush2.bf16.msra.mxu0 0
    %3141 = vmatprep.mubr.bf16.mxu0 0
    %3142 = vmatmul.mubr.bf16.gmra.mxu0 %v3092
    %v3143 = vpop.f32.mrf.mxu0
    %v3144 = vadd.f32 0.0, %v3143
    %v3145 = vpop.f32.mrf.mxu0
    %v3146 = vadd.f32 0.0, %v3145
    %v3147 = vpop.f32.mrf.mxu0
    %v3148 = vadd.f32 0.0, %v3147
    %v3149 = vpop.f32.mrf.mxu0
    %v3150 = vadd.f32 0.0, %v3149
    %3151 = vmatprep.mubr.bf16.mxu0 0
    %3152 = vmatmul.mubr.bf16.gmra.mxu0 %v3095
    %v3153 = vpop.f32.mrf.mxu0
    %v3154 = vadd.f32 0.0, %v3153
    %v3155 = vpop.f32.mrf.mxu0
    %v3156 = vadd.f32 0.0, %v3155
    %v3157 = vpop.f32.mrf.mxu0
    %v3158 = vadd.f32 0.0, %v3157
    %v3159 = vpop.f32.mrf.mxu0
    %v3160 = vadd.f32 0.0, %v3159
    %3161 = vdwg.mxu0
    %3162 = vmatprep.subr.bf16.mxu0 0
    %3163 = vmatpush1.bf16.msra.mxu0 0
    %3164 = vmatprep.subr.bf16.mxu0 0
    %3165 = vmatpush1.bf16.msra.mxu0 0
    %3166 = vmatprep.subr.bf16.mxu0 0
    %3167 = vmatpush1.bf16.msra.mxu0 0
    %3168 = vmatprep.subr.bf16.mxu0 0
    %3169 = vmatpush1.bf16.msra.mxu0 0
    %3170 = vmatprep.subr.bf16.mxu0 0
    %3171 = vmatpush1.bf16.msra.mxu0 0
    %3172 = vmatprep.subr.bf16.mxu0 %v3107
    %3173 = vmatpush1.bf16.msra.mxu0 %v3104
    %3174 = vmatprep.subr.bf16.mxu0 %v3076
    %3175 = vmatpush1.bf16.msra.mxu0 %v3075
    %3176 = vmatprep.subr.bf16.mxu0 %v3072
    %3177 = vmatpush1.bf16.msra.mxu0 %v3071
    %3178 = vmatprep.subr.bf16.mxu0 0
    %3179 = vmatpush2.bf16.msra.mxu0 0
    %3180 = vmatprep.subr.bf16.mxu0 0
    %3181 = vmatpush2.bf16.msra.mxu0 0
    %3182 = vmatprep.subr.bf16.mxu0 0
    %3183 = vmatpush2.bf16.msra.mxu0 0
    %3184 = vmatprep.subr.bf16.mxu0 0
    %3185 = vmatpush2.bf16.msra.mxu0 0
    %3186 = vmatprep.subr.bf16.mxu0 0
    %3187 = vmatpush2.bf16.msra.mxu0 0
    %3188 = vmatprep.subr.bf16.mxu0 0
    %3189 = vmatpush2.bf16.msra.mxu0 0
    %3190 = vmatprep.subr.bf16.mxu0 0
    %3191 = vmatpush2.bf16.msra.mxu0 0
    %3192 = vmatprep.subr.bf16.mxu0 0
    %3193 = vmatpush2.bf16.msra.mxu0 0
    %3194 = vmatprep.mubr.bf16.mxu0 0
    %3195 = vmatmul.mubr.bf16.gmra.mxu0 %v3092
    %v3196 = vpop.f32.mrf.mxu0
    %v3197 = vadd.f32 0.0, %v3196
    %v3198 = vpop.f32.mrf.mxu0
    %v3199 = vadd.f32 0.0, %v3198
    %v3200 = vpop.f32.mrf.mxu0
    %v3201 = vadd.f32 0.0, %v3200
    %v3202 = vpop.f32.mrf.mxu0
    %v3203 = vadd.f32 0.0, %v3202
    %3204 = vmatprep.mubr.bf16.mxu0 0
    %3205 = vmatmul.mubr.bf16.gmra.mxu0 %v3095
    %v3206 = vpop.f32.mrf.mxu0
    %v3207 = vadd.f32 0.0, %v3206
    %v3208 = vpop.f32.mrf.mxu0
    %v3209 = vadd.f32 0.0, %v3208
    %v3210 = vpop.f32.mrf.mxu0
    %v3211 = vadd.f32 0.0, %v3210
    %v3212 = vpop.f32.mrf.mxu0
    %v3213 = vadd.f32 0.0, %v3212
    %3214 = vdwg.mxu0
    %v3215 = vmul.f32 %v3144, 0.2
    %v3216 = vmul.f32 %v3146, 0.2
    %v3217 = vmul.f32 %v3197, 0.2
    %v3218 = vmul.f32 %v3199, 0.2
    %v3219 = vmul.f32 %v3148, 0.2
    %v3220 = vmul.f32 %v3150, 0.2
    %v3221 = vmul.f32 %v3201, 0.2
    %v3222 = vmul.f32 %v3203, 0.2
    %v3223 = vmul.f32 %v3154, 0.2
    %v3224 = vmul.f32 %v3156, 0.2
    %v3225 = vmul.f32 %v3207, 0.2
    %v3226 = vmul.f32 %v3209, 0.2
    %v3227 = vmul.f32 %v3158, 0.2
    %v3228 = vmul.f32 %v3160, 0.2
    %v3229 = vmul.f32 %v3211, 0.2
    %v3230 = vmul.f32 %v3213, 0.2
    %v3231 = vmax.f32 %v3144, %v3215
    %v3232 = vmax.f32 %v3146, %v3216
    %v3233 = vmax.f32 %v3197, %v3217
    %v3234 = vmax.f32 %v3199, %v3218
    %v3235 = vmax.f32 %v3148, %v3219
    %v3236 = vmax.f32 %v3150, %v3220
    %v3237 = vmax.f32 %v3201, %v3221
    %v3238 = vmax.f32 %v3203, %v3222
    %v3239 = vmax.f32 %v3154, %v3223
    %v3240 = vmax.f32 %v3156, %v3224
    %v3241 = vmax.f32 %v3207, %v3225
    %v3242 = vmax.f32 %v3209, %v3226
    %v3243 = vmax.f32 %v3158, %v3227
    %v3244 = vmax.f32 %v3160, %v3228
    %v3245 = vmax.f32 %v3211, %v3229
    %v3246 = vmax.f32 %v3213, %v3230
    %v3247 = vmul.f32 %v3231, %v73
    %v3248 = vmul.f32 %v3232, %v73
    %v3249 = vmul.f32 %v3233, %v73
    %v3250 = vmul.f32 %v3234, %v73
    %v3251 = vmul.f32 %v3235, %v78
    %v3252 = vmul.f32 %v3236, %v78
    %v3253 = vmul.f32 %v3237, %v78
    %v3254 = vmul.f32 %v3238, %v78
    %v3255 = vmul.f32 %v3239, %v83
    %v3256 = vmul.f32 %v3240, %v83
    %v3257 = vmul.f32 %v3241, %v83
    %v3258 = vmul.f32 %v3242, %v83
    %v3259 = vmul.f32 %v3243, %v88
    %v3260 = vmul.f32 %v3244, %v88
    %v3261 = vmul.f32 %v3245, %v88
    %v3262 = vmul.f32 %v3246, %v88
    %v3263 = vadd.f32 %v3247, %v3251
    %v3264 = vadd.f32 %v3263, %v3255
    %v3265 = vadd.f32 %v3264, %v3259
    %v3266 = vrot.slane %v3265, 4
    %v3267 = vadd.f32 %v3265, %v3266
    %v3268 = vrot.slane %v3267, 2
    %v3269 = vadd.f32 %v3267, %v3268
    %v3270 = vrot.slane %v3269, 1
    %v3271 = vadd.f32 %v3269, %v3270
    %v3272 = vadd.f32 %v3248, %v3252
    %v3273 = vadd.f32 %v3272, %v3256
    %v3274 = vadd.f32 %v3273, %v3260
    %v3275 = vrot.slane %v3274, 4
    %v3276 = vadd.f32 %v3274, %v3275
    %v3277 = vrot.slane %v3276, 2
    %v3278 = vadd.f32 %v3276, %v3277
    %v3279 = vrot.slane %v3278, 1
    %v3280 = vadd.f32 %v3278, %v3279
    %v3281 = vadd.f32 %v3249, %v3253
    %v3282 = vadd.f32 %v3281, %v3257
    %v3283 = vadd.f32 %v3282, %v3261
    %v3284 = vrot.slane %v3283, 4
    %v3285 = vadd.f32 %v3283, %v3284
    %v3286 = vrot.slane %v3285, 2
    %v3287 = vadd.f32 %v3285, %v3286
    %v3288 = vrot.slane %v3287, 1
    %v3289 = vadd.f32 %v3287, %v3288
    %v3290 = vadd.f32 %v3250, %v3254
    %v3291 = vadd.f32 %v3290, %v3258
    %v3292 = vadd.f32 %v3291, %v3262
    %v3293 = vrot.slane %v3292, 4
    %v3294 = vadd.f32 %v3292, %v3293
    %v3295 = vrot.slane %v3294, 2
    %v3296 = vadd.f32 %v3294, %v3295
    %v3297 = vrot.slane %v3296, 1
    %v3298 = vadd.f32 %v3296, %v3297
    %v3303 = vcombine.low %v3271, %v3280
    %v3304 = vcombine.low %v3289, %v3298
    %v3306 = vunpack.c.l.s4 1966171168
    %v3307 = vunpack.c.0.s8 %v3306
    %v3308 = vlaneseq
    %v3309 = vshrl.u32 %v3308, 7
    %v3310 = vsub.s32 %v3307, %v3309
    %v3311 = vrot.slane %v3303, %v3310
    %v3313 = vunpack.c.l.s4 1966171168
    %v3314 = vunpack.c.0.s8 %v3313
    %v3315 = vlaneseq
    %v3316 = vshrl.u32 %v3315, 7
    %v3317 = vsub.s32 %v3314, %v3316
    %v3318 = vrot.slane %v3304, %v3317
    %v3319 = vcombine.low %v3311, %v3318
    %v3321 = vunpack.c.l.s4 1966171168
    %v3322 = vunpack.c.0.s8 %v3321
    %v3323 = vlaneseq
    %v3324 = vshrl.u32 %v3323, 7
    %v3325 = vsub.s32 %v3322, %v3324
    %v3326 = vrot.slane %v3319, %v3325
    %s3328 = scalar_lea.vmem [#allocation2], 6
    %3329 = vst.msk [vmem:[%s3328] ss:$8 sm:$0xf] %vm592, %v3326
    %3330 = vst.msk [vmem:[%s3328] ss:$8 sm:$0x0] %vm592, %v3326
    %s3331 = scalar_lea.vmem [#allocation7], 140
    %v3332 = vld [vmem:[%s3331] sm:$0xf]
    %v3333 = vld [vmem:[%s3331 + $0x4] sm:$0xf]
    %v3334 = vld [vmem:[%s3331 + $0x8] sm:$0xf]
    %v3335 = vld [vmem:[%s3331 + $0xc] sm:$0xf]
    %v3336 = vld [vmem:[%s3331 + $0x10] sm:$0xf]
    %v3342 = vunpack.c.l.b16 %v3332
    %v3343 = vunpack.c.l.b16 %v3333
    %v3344 = vunpack.c.l.b16 %v3334
    %v3345 = vunpack.c.l.b16 %v3335
    %v3346 = vunpack.c.l.b16 %v3336
    %v3347 = vpack.c.b16 %v3343, %v3342
    %v3348 = vpack.c.b16 %v3345, %v3344
    %v3349 = vpack.c.b16 %v3346, %v3346
    %v3351 = vsel %vm150, %v3347, 0
    %v3354 = vsel %vm150, %v3348, 0
    %v3357 = vsel %vm150, %v3349, 0
    %3359 = vmatprep.subr.bf16.mxu0 0
    %3360 = vmatpush1.bf16.msra.mxu0 0
    %3361 = vmatprep.subr.bf16.mxu0 0
    %3362 = vmatpush1.bf16.msra.mxu0 0
    %3363 = vmatprep.subr.bf16.mxu0 0
    %3364 = vmatpush1.bf16.msra.mxu0 0
    %3365 = vmatprep.subr.bf16.mxu0 0
    %3366 = vmatpush1.bf16.msra.mxu0 0
    %3367 = vmatprep.subr.bf16.mxu0 0
    %3368 = vmatpush1.bf16.msra.mxu0 0
    %3369 = vmatprep.subr.bf16.mxu0 %v162
    %3370 = vmatpush1.bf16.msra.mxu0 %v162
    %3371 = vmatprep.subr.bf16.mxu0 %v128
    %3372 = vmatpush1.bf16.msra.mxu0 %v127
    %3373 = vmatprep.subr.bf16.mxu0 %v124
    %3374 = vmatpush1.bf16.msra.mxu0 %v123
    %3375 = vmatprep.subr.bf16.mxu0 0
    %3376 = vmatpush2.bf16.msra.mxu0 0
    %3377 = vmatprep.subr.bf16.mxu0 0
    %3378 = vmatpush2.bf16.msra.mxu0 0
    %3379 = vmatprep.subr.bf16.mxu0 0
    %3380 = vmatpush2.bf16.msra.mxu0 0
    %3381 = vmatprep.subr.bf16.mxu0 0
    %3382 = vmatpush2.bf16.msra.mxu0 0
    %3383 = vmatprep.subr.bf16.mxu0 0
    %3384 = vmatpush2.bf16.msra.mxu0 0
    %3385 = vmatprep.subr.bf16.mxu0 0
    %3386 = vmatpush2.bf16.msra.mxu0 0
    %3387 = vmatprep.subr.bf16.mxu0 0
    %3388 = vmatpush2.bf16.msra.mxu0 0
    %3389 = vmatprep.subr.bf16.mxu0 0
    %3390 = vmatpush2.bf16.msra.mxu0 0
    %3391 = vmatprep.mubr.bf16.mxu0 0
    %3392 = vmatmul.mubr.bf16.gmra.mxu0 %v3351
    %v3393 = vpop.f32.mrf.mxu0
    %v3394 = vadd.f32 0.0, %v3393
    %v3395 = vpop.f32.mrf.mxu0
    %v3396 = vadd.f32 0.0, %v3395
    %v3397 = vpop.f32.mrf.mxu0
    %v3398 = vadd.f32 0.0, %v3397
    %v3399 = vpop.f32.mrf.mxu0
    %v3400 = vadd.f32 0.0, %v3399
    %3401 = vmatprep.mubr.bf16.mxu0 0
    %3402 = vmatmul.mubr.bf16.gmra.mxu0 %v3354
    %v3403 = vpop.f32.mrf.mxu0
    %v3404 = vadd.f32 0.0, %v3403
    %v3405 = vpop.f32.mrf.mxu0
    %v3406 = vadd.f32 0.0, %v3405
    %v3407 = vpop.f32.mrf.mxu0
    %v3408 = vadd.f32 0.0, %v3407
    %v3409 = vpop.f32.mrf.mxu0
    %v3410 = vadd.f32 0.0, %v3409
    %3411 = vmatprep.mubr.bf16.mxu0 0
    %3412 = vmatmul.mubr.bf16.gmra.mxu0 %v3357
    %v3413 = vpop.f32.mrf.mxu0
    %v3414 = vadd.f32 0.0, %v3413
    %v3415 = vpop.f32.mrf.mxu0
    %v3416 = vadd.f32 0.0, %v3415
    %v3417 = vpop.f32.mrf.mxu0
    %v3418 = vpop.f32.mrf.mxu0
    %3419 = vdwg.mxu0
    %3420 = vmatprep.subr.bf16.mxu0 0
    %3421 = vmatpush1.bf16.msra.mxu0 0
    %3422 = vmatprep.subr.bf16.mxu0 0
    %3423 = vmatpush1.bf16.msra.mxu0 0
    %3424 = vmatprep.subr.bf16.mxu0 0
    %3425 = vmatpush1.bf16.msra.mxu0 0
    %3426 = vmatprep.subr.bf16.mxu0 0
    %3427 = vmatpush1.bf16.msra.mxu0 0
    %3428 = vmatprep.subr.bf16.mxu0 0
    %3429 = vmatpush1.bf16.msra.mxu0 0
    %3430 = vmatprep.subr.bf16.mxu0 %v162
    %3431 = vmatpush1.bf16.msra.mxu0 %v162
    %3432 = vmatprep.subr.bf16.mxu0 %v130
    %3433 = vmatpush1.bf16.msra.mxu0 %v129
    %3434 = vmatprep.subr.bf16.mxu0 %v126
    %3435 = vmatpush1.bf16.msra.mxu0 %v125
    %3436 = vmatprep.subr.bf16.mxu0 0
    %3437 = vmatpush2.bf16.msra.mxu0 0
    %3438 = vmatprep.subr.bf16.mxu0 0
    %3439 = vmatpush2.bf16.msra.mxu0 0
    %3440 = vmatprep.subr.bf16.mxu0 0
    %3441 = vmatpush2.bf16.msra.mxu0 0
    %3442 = vmatprep.subr.bf16.mxu0 0
    %3443 = vmatpush2.bf16.msra.mxu0 0
    %3444 = vmatprep.subr.bf16.mxu0 0
    %3445 = vmatpush2.bf16.msra.mxu0 0
    %3446 = vmatprep.subr.bf16.mxu0 0
    %3447 = vmatpush2.bf16.msra.mxu0 0
    %3448 = vmatprep.subr.bf16.mxu0 0
    %3449 = vmatpush2.bf16.msra.mxu0 0
    %3450 = vmatprep.subr.bf16.mxu0 0
    %3451 = vmatpush2.bf16.msra.mxu0 0
    %3452 = vmatprep.mubr.bf16.mxu0 0
    %3453 = vmatmul.mubr.bf16.gmra.mxu0 %v3351
    %v3454 = vpop.f32.mrf.mxu0
    %v3455 = vadd.f32 0.0, %v3454
    %v3456 = vpop.f32.mrf.mxu0
    %v3457 = vadd.f32 0.0, %v3456
    %v3458 = vpop.f32.mrf.mxu0
    %v3459 = vadd.f32 0.0, %v3458
    %v3460 = vpop.f32.mrf.mxu0
    %v3461 = vadd.f32 0.0, %v3460
    %3462 = vmatprep.mubr.bf16.mxu0 0
    %3463 = vmatmul.mubr.bf16.gmra.mxu0 %v3354
    %v3464 = vpop.f32.mrf.mxu0
    %v3465 = vadd.f32 0.0, %v3464
    %v3466 = vpop.f32.mrf.mxu0
    %v3467 = vadd.f32 0.0, %v3466
    %v3468 = vpop.f32.mrf.mxu0
    %v3469 = vadd.f32 0.0, %v3468
    %v3470 = vpop.f32.mrf.mxu0
    %v3471 = vadd.f32 0.0, %v3470
    %3472 = vmatprep.mubr.bf16.mxu0 0
    %3473 = vmatmul.mubr.bf16.gmra.mxu0 %v3357
    %v3474 = vpop.f32.mrf.mxu0
    %v3475 = vadd.f32 0.0, %v3474
    %v3476 = vpop.f32.mrf.mxu0
    %v3477 = vadd.f32 0.0, %v3476
    %v3478 = vpop.f32.mrf.mxu0
    %v3479 = vpop.f32.mrf.mxu0
    %3480 = vdwg.mxu0
    %v3481 = vmul.f32 %v3394, 0.2
    %v3482 = vmul.f32 %v3396, 0.2
    %v3483 = vmul.f32 %v3455, 0.2
    %v3484 = vmul.f32 %v3457, 0.2
    %v3485 = vmul.f32 %v3398, 0.2
    %v3486 = vmul.f32 %v3400, 0.2
    %v3487 = vmul.f32 %v3459, 0.2
    %v3488 = vmul.f32 %v3461, 0.2
    %v3489 = vmul.f32 %v3404, 0.2
    %v3490 = vmul.f32 %v3406, 0.2
    %v3491 = vmul.f32 %v3465, 0.2
    %v3492 = vmul.f32 %v3467, 0.2
    %v3493 = vmul.f32 %v3408, 0.2
    %v3494 = vmul.f32 %v3410, 0.2
    %v3495 = vmul.f32 %v3469, 0.2
    %v3496 = vmul.f32 %v3471, 0.2
    %v3497 = vmul.f32 %v3414, 0.2
    %v3498 = vmul.f32 %v3416, 0.2
    %v3499 = vmul.f32 %v3475, 0.2
    %v3500 = vmul.f32 %v3477, 0.2
    %v3501 = vmax.f32 %v3394, %v3481
    %v3502 = vmax.f32 %v3396, %v3482
    %v3503 = vmax.f32 %v3455, %v3483
    %v3504 = vmax.f32 %v3457, %v3484
    %v3505 = vmax.f32 %v3398, %v3485
    %v3506 = vmax.f32 %v3400, %v3486
    %v3507 = vmax.f32 %v3459, %v3487
    %v3508 = vmax.f32 %v3461, %v3488
    %v3509 = vmax.f32 %v3404, %v3489
    %v3510 = vmax.f32 %v3406, %v3490
    %v3511 = vmax.f32 %v3465, %v3491
    %v3512 = vmax.f32 %v3467, %v3492
    %v3513 = vmax.f32 %v3408, %v3493
    %v3514 = vmax.f32 %v3410, %v3494
    %v3515 = vmax.f32 %v3469, %v3495
    %v3516 = vmax.f32 %v3471, %v3496
    %v3517 = vmax.f32 %v3414, %v3497
    %v3518 = vmax.f32 %v3416, %v3498
    %v3519 = vmax.f32 %v3475, %v3499
    %v3520 = vmax.f32 %v3477, %v3500
    %v3521 = vld [vmem:[#allocation9] sm:$0xf]
    %v3522 = vld [vmem:[#allocation9 + $0x4] sm:$0xf]
    %v3523 = vld [vmem:[#allocation9 + $0x8] sm:$0xf]
    %v3524 = vld [vmem:[#allocation9 + $0xc] sm:$0xf]
    %v3525 = vpack.c.bf16 %v3505, %v3501
    %v3526 = vpack.c.bf16 %v3506, %v3502
    %v3527 = vpack.c.bf16 %v3507, %v3503
    %v3528 = vpack.c.bf16 %v3508, %v3504
    %v3529 = vpack.c.bf16 %v3513, %v3509
    %v3530 = vpack.c.bf16 %v3514, %v3510
    %v3531 = vpack.c.bf16 %v3515, %v3511
    %v3532 = vpack.c.bf16 %v3516, %v3512
    %v3533 = vpack.c.bf16 %v3517, %v3517
    %v3534 = vpack.c.bf16 %v3518, %v3518
    %v3535 = vpack.c.bf16 %v3519, %v3519
    %v3536 = vpack.c.bf16 %v3520, %v3520
    %v3541 = vunpack.c.l.b16 %v3521
    %v3542 = vunpack.c.l.b16 %v3522
    %v3543 = vunpack.c.l.b16 %v3523
    %v3544 = vunpack.c.l.b16 %v3524
    %v3545 = vpack.c.b16 %v3542, %v3541
    %v3546 = vpack.c.b16 %v3544, %v3543
    %v3548 = vsel %vm150, %v3545, 0
    %v3551 = vsel %vm150, %v3546, 0
    %v3554 = vsel %vm160, %v3533, 0
    %v3557 = vsel %vm160, %v3534, 0
    %v3560 = vsel %vm160, %v3535, 0
    %v3563 = vsel %vm160, %v3536, 0
    %3565 = vmatprep.subr.bf16.mxu0 0
    %3566 = vmatpush1.bf16.msra.mxu0 0
    %3567 = vmatprep.subr.bf16.mxu0 0
    %3568 = vmatpush1.bf16.msra.mxu0 0
    %3569 = vmatprep.subr.bf16.mxu0 0
    %3570 = vmatpush1.bf16.msra.mxu0 0
    %3571 = vmatprep.subr.bf16.mxu0 0
    %3572 = vmatpush1.bf16.msra.mxu0 0
    %3573 = vmatprep.subr.bf16.mxu0 0
    %3574 = vmatpush1.bf16.msra.mxu0 0
    %3575 = vmatprep.subr.bf16.mxu0 %v3557
    %3576 = vmatpush1.bf16.msra.mxu0 %v3554
    %3577 = vmatprep.subr.bf16.mxu0 %v3530
    %3578 = vmatpush1.bf16.msra.mxu0 %v3529
    %3579 = vmatprep.subr.bf16.mxu0 %v3526
    %3580 = vmatpush1.bf16.msra.mxu0 %v3525
    %3581 = vmatprep.subr.bf16.mxu0 0
    %3582 = vmatpush2.bf16.msra.mxu0 0
    %3583 = vmatprep.subr.bf16.mxu0 0
    %3584 = vmatpush2.bf16.msra.mxu0 0
    %3585 = vmatprep.subr.bf16.mxu0 0
    %3586 = vmatpush2.bf16.msra.mxu0 0
    %3587 = vmatprep.subr.bf16.mxu0 0
    %3588 = vmatpush2.bf16.msra.mxu0 0
    %3589 = vmatprep.subr.bf16.mxu0 0
    %3590 = vmatpush2.bf16.msra.mxu0 0
    %3591 = vmatprep.subr.bf16.mxu0 0
    %3592 = vmatpush2.bf16.msra.mxu0 0
    %3593 = vmatprep.subr.bf16.mxu0 0
    %3594 = vmatpush2.bf16.msra.mxu0 0
    %3595 = vmatprep.subr.bf16.mxu0 0
    %3596 = vmatpush2.bf16.msra.mxu0 0
    %3597 = vmatprep.mubr.bf16.mxu0 0
    %3598 = vmatmul.mubr.bf16.gmra.mxu0 %v3548
    %v3599 = vpop.f32.mrf.mxu0
    %v3600 = vadd.f32 0.0, %v3599
    %v3601 = vpop.f32.mrf.mxu0
    %v3602 = vadd.f32 0.0, %v3601
    %v3603 = vpop.f32.mrf.mxu0
    %v3604 = vadd.f32 0.0, %v3603
    %v3605 = vpop.f32.mrf.mxu0
    %v3606 = vadd.f32 0.0, %v3605
    %3607 = vmatprep.mubr.bf16.mxu0 0
    %3608 = vmatmul.mubr.bf16.gmra.mxu0 %v3551
    %v3609 = vpop.f32.mrf.mxu0
    %v3610 = vadd.f32 0.0, %v3609
    %v3611 = vpop.f32.mrf.mxu0
    %v3612 = vadd.f32 0.0, %v3611
    %v3613 = vpop.f32.mrf.mxu0
    %v3614 = vadd.f32 0.0, %v3613
    %v3615 = vpop.f32.mrf.mxu0
    %v3616 = vadd.f32 0.0, %v3615
    %3617 = vdwg.mxu0
    %3618 = vmatprep.subr.bf16.mxu0 0
    %3619 = vmatpush1.bf16.msra.mxu0 0
    %3620 = vmatprep.subr.bf16.mxu0 0
    %3621 = vmatpush1.bf16.msra.mxu0 0
    %3622 = vmatprep.subr.bf16.mxu0 0
    %3623 = vmatpush1.bf16.msra.mxu0 0
    %3624 = vmatprep.subr.bf16.mxu0 0
    %3625 = vmatpush1.bf16.msra.mxu0 0
    %3626 = vmatprep.subr.bf16.mxu0 0
    %3627 = vmatpush1.bf16.msra.mxu0 0
    %3628 = vmatprep.subr.bf16.mxu0 %v3563
    %3629 = vmatpush1.bf16.msra.mxu0 %v3560
    %3630 = vmatprep.subr.bf16.mxu0 %v3532
    %3631 = vmatpush1.bf16.msra.mxu0 %v3531
    %3632 = vmatprep.subr.bf16.mxu0 %v3528
    %3633 = vmatpush1.bf16.msra.mxu0 %v3527
    %3634 = vmatprep.subr.bf16.mxu0 0
    %3635 = vmatpush2.bf16.msra.mxu0 0
    %3636 = vmatprep.subr.bf16.mxu0 0
    %3637 = vmatpush2.bf16.msra.mxu0 0
    %3638 = vmatprep.subr.bf16.mxu0 0
    %3639 = vmatpush2.bf16.msra.mxu0 0
    %3640 = vmatprep.subr.bf16.mxu0 0
    %3641 = vmatpush2.bf16.msra.mxu0 0
    %3642 = vmatprep.subr.bf16.mxu0 0
    %3643 = vmatpush2.bf16.msra.mxu0 0
    %3644 = vmatprep.subr.bf16.mxu0 0
    %3645 = vmatpush2.bf16.msra.mxu0 0
    %3646 = vmatprep.subr.bf16.mxu0 0
    %3647 = vmatpush2.bf16.msra.mxu0 0
    %3648 = vmatprep.subr.bf16.mxu0 0
    %3649 = vmatpush2.bf16.msra.mxu0 0
    %3650 = vmatprep.mubr.bf16.mxu0 0
    %3651 = vmatmul.mubr.bf16.gmra.mxu0 %v3548
    %v3652 = vpop.f32.mrf.mxu0
    %v3653 = vadd.f32 0.0, %v3652
    %v3654 = vpop.f32.mrf.mxu0
    %v3655 = vadd.f32 0.0, %v3654
    %v3656 = vpop.f32.mrf.mxu0
    %v3657 = vadd.f32 0.0, %v3656
    %v3658 = vpop.f32.mrf.mxu0
    %v3659 = vadd.f32 0.0, %v3658
    %3660 = vmatprep.mubr.bf16.mxu0 0
    %3661 = vmatmul.mubr.bf16.gmra.mxu0 %v3551
    %v3662 = vpop.f32.mrf.mxu0
    %v3663 = vadd.f32 0.0, %v3662
    %v3664 = vpop.f32.mrf.mxu0
    %v3665 = vadd.f32 0.0, %v3664
    %v3666 = vpop.f32.mrf.mxu0
    %v3667 = vadd.f32 0.0, %v3666
    %v3668 = vpop.f32.mrf.mxu0
    %v3669 = vadd.f32 0.0, %v3668
    %3670 = vdwg.mxu0
    %v3671 = vmul.f32 %v3600, 0.2
    %v3672 = vmul.f32 %v3602, 0.2
    %v3673 = vmul.f32 %v3653, 0.2
    %v3674 = vmul.f32 %v3655, 0.2
    %v3675 = vmul.f32 %v3604, 0.2
    %v3676 = vmul.f32 %v3606, 0.2
    %v3677 = vmul.f32 %v3657, 0.2
    %v3678 = vmul.f32 %v3659, 0.2
    %v3679 = vmul.f32 %v3610, 0.2
    %v3680 = vmul.f32 %v3612, 0.2
    %v3681 = vmul.f32 %v3663, 0.2
    %v3682 = vmul.f32 %v3665, 0.2
    %v3683 = vmul.f32 %v3614, 0.2
    %v3684 = vmul.f32 %v3616, 0.2
    %v3685 = vmul.f32 %v3667, 0.2
    %v3686 = vmul.f32 %v3669, 0.2
    %v3687 = vmax.f32 %v3600, %v3671
    %v3688 = vmax.f32 %v3602, %v3672
    %v3689 = vmax.f32 %v3653, %v3673
    %v3690 = vmax.f32 %v3655, %v3674
    %v3691 = vmax.f32 %v3604, %v3675
    %v3692 = vmax.f32 %v3606, %v3676
    %v3693 = vmax.f32 %v3657, %v3677
    %v3694 = vmax.f32 %v3659, %v3678
    %v3695 = vmax.f32 %v3610, %v3679
    %v3696 = vmax.f32 %v3612, %v3680
    %v3697 = vmax.f32 %v3663, %v3681
    %v3698 = vmax.f32 %v3665, %v3682
    %v3699 = vmax.f32 %v3614, %v3683
    %v3700 = vmax.f32 %v3616, %v3684
    %v3701 = vmax.f32 %v3667, %v3685
    %v3702 = vmax.f32 %v3669, %v3686
    %v3703 = vmul.f32 %v3687, %v73
    %v3704 = vmul.f32 %v3688, %v73
    %v3705 = vmul.f32 %v3689, %v73
    %v3706 = vmul.f32 %v3690, %v73
    %v3707 = vmul.f32 %v3691, %v78
    %v3708 = vmul.f32 %v3692, %v78
    %v3709 = vmul.f32 %v3693, %v78
    %v3710 = vmul.f32 %v3694, %v78
    %v3711 = vmul.f32 %v3695, %v83
    %v3712 = vmul.f32 %v3696, %v83
    %v3713 = vmul.f32 %v3697, %v83
    %v3714 = vmul.f32 %v3698, %v83
    %v3715 = vmul.f32 %v3699, %v88
    %v3716 = vmul.f32 %v3700, %v88
    %v3717 = vmul.f32 %v3701, %v88
    %v3718 = vmul.f32 %v3702, %v88
    %v3719 = vadd.f32 %v3703, %v3707
    %v3720 = vadd.f32 %v3719, %v3711
    %v3721 = vadd.f32 %v3720, %v3715
    %v3722 = vrot.slane %v3721, 4
    %v3723 = vadd.f32 %v3721, %v3722
    %v3724 = vrot.slane %v3723, 2
    %v3725 = vadd.f32 %v3723, %v3724
    %v3726 = vrot.slane %v3725, 1
    %v3727 = vadd.f32 %v3725, %v3726
    %v3728 = vadd.f32 %v3704, %v3708
    %v3729 = vadd.f32 %v3728, %v3712
    %v3730 = vadd.f32 %v3729, %v3716
    %v3731 = vrot.slane %v3730, 4
    %v3732 = vadd.f32 %v3730, %v3731
    %v3733 = vrot.slane %v3732, 2
    %v3734 = vadd.f32 %v3732, %v3733
    %v3735 = vrot.slane %v3734, 1
    %v3736 = vadd.f32 %v3734, %v3735
    %v3737 = vadd.f32 %v3705, %v3709
    %v3738 = vadd.f32 %v3737, %v3713
    %v3739 = vadd.f32 %v3738, %v3717
    %v3740 = vrot.slane %v3739, 4
    %v3741 = vadd.f32 %v3739, %v3740
    %v3742 = vrot.slane %v3741, 2
    %v3743 = vadd.f32 %v3741, %v3742
    %v3744 = vrot.slane %v3743, 1
    %v3745 = vadd.f32 %v3743, %v3744
    %v3746 = vadd.f32 %v3706, %v3710
    %v3747 = vadd.f32 %v3746, %v3714
    %v3748 = vadd.f32 %v3747, %v3718
    %v3749 = vrot.slane %v3748, 4
    %v3750 = vadd.f32 %v3748, %v3749
    %v3751 = vrot.slane %v3750, 2
    %v3752 = vadd.f32 %v3750, %v3751
    %v3753 = vrot.slane %v3752, 1
    %v3754 = vadd.f32 %v3752, %v3753
    %v3759 = vcombine.low %v3727, %v3736
    %v3760 = vcombine.low %v3745, %v3754
    %v3762 = vunpack.c.l.s4 1966171168
    %v3763 = vunpack.c.0.s8 %v3762
    %v3764 = vlaneseq
    %v3765 = vshrl.u32 %v3764, 7
    %v3766 = vsub.s32 %v3763, %v3765
    %v3767 = vrot.slane %v3759, %v3766
    %v3769 = vunpack.c.l.s4 1966171168
    %v3770 = vunpack.c.0.s8 %v3769
    %v3771 = vlaneseq
    %v3772 = vshrl.u32 %v3771, 7
    %v3773 = vsub.s32 %v3770, %v3772
    %v3774 = vrot.slane %v3760, %v3773
    %v3775 = vcombine.low %v3767, %v3774
    %v3777 = vunpack.c.l.s4 1966171168
    %v3778 = vunpack.c.0.s8 %v3777
    %v3779 = vlaneseq
    %v3780 = vshrl.u32 %v3779, 7
    %v3781 = vsub.s32 %v3778, %v3780
    %v3782 = vrot.slane %v3775, %v3781
    %s3784 = scalar_lea.vmem [#allocation2], 7
    %3785 = vst.msk [vmem:[%s3784] ss:$8 sm:$0xf] %vm592, %v3782
    %3786 = vst.msk [vmem:[%s3784] ss:$8 sm:$0x0] %vm592, %v3782
    %v3787 = vld [vmem:[#allocation2] sm:$0xff]
    %v3788 = vld [vmem:[#allocation2 + $0x8] sm:$0xff]
    %v3789 = vld [vmem:[#allocation2 + $0x10] sm:$0xff]
    %v3790 = vld [vmem:[#allocation2 + $0x18] sm:$0xff]
    %v3792 = vlaneseq
    %v3793 = vshrl.u32 %v3792, 7
    %v3794 = vsub.s32 0, %v3793
    %v3795 = vrot.slane %v90, %v3794
    %3796 = vset.pattern.permute.xlu0 0
    %3797 = vperm.xlu0 %3796, %v3795
    %v3798 = vpop.permute.xlu0 %3797
    %v3800 = vadd.f32 %v3787, %v3798
    %v3801 = vadd.f32 %v3788, %v3798
    %v3802 = vadd.f32 %v3789, %v3798
    %v3803 = vadd.f32 %v3790, %v3798
    %v3804 = vsub.f32 0.0, %v3800
    %v3805 = vsub.f32 0.0, %v3801
    %v3806 = vsub.f32 0.0, %v3802
    %v3807 = vsub.f32 0.0, %v3803
    %v3808 = vmul.f32 %v3804, 1.442695
    %v3809 = vpow.pop %v3808
    %v3810 = vmul.f32 %v3805, 1.442695
    %v3811 = vpow.pop %v3810
    %v3812 = vmul.f32 %v3806, 1.442695
    %v3813 = vpow.pop %v3812
    %v3814 = vmul.f32 %v3807, 1.442695
    %v3815 = vpow.pop %v3814
    %v3816 = vadd.f32 %v3809, 1.0
    %v3817 = vadd.f32 %v3811, 1.0
    %v3818 = vadd.f32 %v3813, 1.0
    %v3819 = vadd.f32 %v3815, 1.0
    %v3820 = vrcp.pop %v3816
    %v3821 = vrcp.pop %v3817
    %v3822 = vrcp.pop %v3818
    %v3823 = vrcp.pop %v3819
    %3824 = vst [vmem:[#allocation10] sm:$0xff] %v3820
    %3825 = vst [vmem:[#allocation10 + $0x8] sm:$0xff] %v3821
    %3826 = vst [vmem:[#allocation10 + $0x10] sm:$0xff] %v3822
    %3827 = vst [vmem:[#allocation10 + $0x18] sm:$0xff] %v3823
    // Predicated region
    $region38: #{tpu_custom_call.1} parent=1 // pred_check
      _
    $region39: #{tpu_custom_call.1} parent=1 // pred_check_branch
      %3829 = sbr.rel (0) target = $region41
    $region40: #{tpu_custom_call.1} parent=1 // pred_region
      %s3831 = ssub.s32 512, 512
      %3832 = vsyncadd [#allocation6], %s3831
      %s3834 = sshll.u32 [#allocation10], 4
      %s3835 = int_to_ptr.vmem [resolvable:$true] %s3834
      %3837 = dma.vmem_to_hbm [thread:$0]  %s3835, 512, %s6, [#allocation6]
    $region41: #{tpu_custom_call.1} parent=1 // pred_fallthru
      _
    // Predicated region
    $region42: #{tpu_custom_call.1} parent=1 // pred_check
      _
    $region43: #{tpu_custom_call.1} parent=1 // pred_check_branch
      %3839 = sbr.rel (0) target = $region45
    $region44: #{tpu_custom_call.1} parent=1 // pred_region
      %3840 = dma.done [#allocation6], 512
    $region45: #{tpu_custom_call.1} parent=1 // pred_fallthru
      _
    %3841 = vsyncpa [#allocation5], 1
    %3842 = vsyncpa [#allocation8], 1
    %3843 = vsyncpa [#allocation6], 1

</llo_original>
